<compile_context>
chip_gen: v7x
topology: tpu7x:2x2x1
jax: 0.10.0
libtpu: 0.0.40
codegen_flags: <defaults>
</compile_context>

<pallas_src>
import functools

import jax
import jax.numpy as jnp
from jax.experimental import pallas as pl
from jax.experimental.pallas import tpu as pltpu

C_FEAT = 1024          # DenseNet121 .features output channels
BN_DIM = 2 * C_FEAT    # after torch.cat([x, x], dim=1) -> 2048
EPS = 1e-5             # BatchNorm1d default eps


def _reid_head_kernel(x_ref, w_ref, scale_ref, bias_ref, out_ref,
                      sum_acc, max_acc, *, inv_hw):
    # x_ref:     (B_TILE, TILE_S, Cin)  bf16 spatial tile of B_TILE images, channels-last
    # w_ref:     (Cin, C_FEAT)          bf16 1x1-conv (backbone proxy) weight
    # scale_ref: (1, BN_DIM)            folded BN scale  (gamma * rsqrt(var+eps))
    # bias_ref:  (1, BN_DIM)            folded BN bias   (beta - mean * scale)
    # out_ref:   (B_TILE, BN_DIM)       lane-dense per-image output
    # sum_acc:   (B_TILE, 8, C_FEAT)    f32 GAP partials kept in sublane form
    # max_acc:   (B_TILE, 8, C_FEAT)    f32 GMP partials kept in sublane form
    s = pl.program_id(1)
    b_tile, tile_s, cin = x_ref.shape

    @pl.when(s == 0)
    def _():
        sum_acc[...] = jnp.zeros_like(sum_acc)
        # relu output is >= 0, so 0 is a valid identity for the running max
        # (this also keeps the zero-padded spatial rows harmless for GAP/GMP;
        #  guard this if the backbone proxy ever grows a bias / non-ReLU act).
        max_acc[...] = jnp.zeros_like(max_acc)

    # backbone proxy: 1x1 conv == matmul over channels; one MXU call covering
    # all B_TILE images of this tile (M = B_TILE*TILE_S), bf16 in, f32 accumulate.
    x2d = x_ref[...].reshape(b_tile * tile_s, cin)
    feat = jnp.dot(x2d, w_ref[...], preferred_element_type=jnp.float32)
    feat = jnp.maximum(feat, 0.0)                               # F.relu

    # keep running GAP/GMP partials in (8, C) sublane form: the per-step
    # reduction is plain VPU adds/maxes across vregs; only the finalize below
    # pays one cross-sublane (XLU) collapse per image block.
    feat4 = feat.reshape(b_tile, tile_s // 8, 8, C_FEAT)
    sum_acc[...] += jnp.sum(feat4, axis=1)
    max_acc[...] = jnp.maximum(max_acc[...], jnp.max(feat4, axis=1))

    @pl.when(s == pl.num_programs(1) - 1)
    def _():
        pooled = (jnp.sum(sum_acc[...], axis=1) * inv_hw       # GAP
                  + jnp.max(max_acc[...], axis=1))              # + GMP  -> (B_TILE, C)
        # torch.cat([x, x], 1) + eval BatchNorm1d(2048), folded; lane-dense store
        dup = jnp.concatenate([pooled, pooled], axis=-1)        # (B_TILE, 2C)
        out_ref[...] = dup * scale_ref[...] + bias_ref[...]


def densenet121_reid_forward(x_nchw, w_proxy, gamma, beta, run_mean, run_var,
                             tile_s=1024, max_rows=2048):
    N, Cin, H, W = x_nchw.shape
    HW = H * W
    assert w_proxy.shape == (Cin, C_FEAT)

    # ---- batch tiling: amortize per-grid-step overhead over several images.
    if N <= 8:
        b_tile, n_pad = N, N          # single batch block; block dim == full dim is legal
    else:
        b_tile = 8                    # multiple of 8 -> sublane-clean output blocks,
        n_pad = ((N + 7) // 8) * 8    # and >= 2 batch blocks for v7x's two TensorCores

    # ---- spatial tiling: multiple of 8 sublanes, capped so the f32 feat
    # intermediate (rows * C_FEAT * 4B) stays well inside v7x's 64 MiB VMEM.
    hw8 = ((HW + 7) // 8) * 8
    rows_cap = max(8, (max_rows // b_tile) // 8 * 8)
    tile_s = max(8, min(tile_s, hw8, rows_cap))
    tile_s = (tile_s // 8) * 8
    hw_pad = ((HW + tile_s - 1) // tile_s) * tile_s
    s_tiles = hw_pad // tile_s

    # ---- single fused producer pass (run this wrapper under jax.jit):
    # NCHW -> (N, HW, Cin) channels-last bf16, then zero-pad batch/spatial only.
    # Cin is deliberately NOT padded (see header comment).
    x_flat = (jnp.transpose(x_nchw, (0, 2, 3, 1))
              .reshape(N, HW, Cin)
              .astype(jnp.bfloat16))
    x_flat = jnp.pad(x_flat, ((0, n_pad - N), (0, hw_pad - HW), (0, 0)))
    w_bf16 = w_proxy.astype(jnp.bfloat16)

    # fold eval-mode BatchNorm1d(2048): y = cat * scale + bias
    scale = (gamma * jax.lax.rsqrt(run_var + EPS)).astype(jnp.float32)
    bias = (beta - run_mean * scale).astype(jnp.float32)
    scale2 = scale.reshape(1, BN_DIM)
    bias2 = bias.reshape(1, BN_DIM)

    kernel = functools.partial(_reid_head_kernel, inv_hw=1.0 / HW)

    # ---- explicit VMEM budget: v7x has 64 MiB physical (32 MiB scoped default),
    # v5e's scoped default is only 16 MiB, so set the limit ourselves.
    cin_vmem = ((Cin + 127) // 128) * 128             # lane-padded VMEM footprint of x tiles
    vmem_bytes = (
        b_tile * tile_s * C_FEAT * 4                  # f32 feat intermediate
        + 2 * b_tile * tile_s * cin_vmem * 2          # double-buffered x tiles (bf16)
        + 2 * cin_vmem * C_FEAT * 2                   # double-buffered weight (bf16)
        + 2 * b_tile * 8 * C_FEAT * 4 * 2             # GAP/GMP scratch (+margin)
        + 2 * b_tile * BN_DIM * 4                     # double-buffered output
        + 4 * BN_DIM * 4)                             # scale / bias
    vmem_limit = int(min(max(vmem_bytes * 2, 32 << 20), 48 << 20))

    out = pl.pallas_call(
        kernel,
        out_shape=jax.ShapeDtypeStruct((n_pad, BN_DIM), jnp.float32),
        grid_spec=pltpu.PrefetchScalarGridSpec(
            num_scalar_prefetch=0,
            grid=(n_pad // b_tile, s_tiles),          # spatial reduction axis last
            in_specs=[
                pl.BlockSpec((b_tile, tile_s, Cin), lambda b, s: (b, s, 0)),
                # grid-invariant operands below; pl.Buffered(1) could drop their
                # second buffer, but VMEM has ample headroom at this budget.
                pl.BlockSpec((Cin, C_FEAT), lambda b, s: (0, 0)),
                pl.BlockSpec((1, BN_DIM), lambda b, s: (0, 0)),
                pl.BlockSpec((1, BN_DIM), lambda b, s: (0, 0)),
            ],
            out_specs=pl.BlockSpec((b_tile, BN_DIM), lambda b, s: (b, 0)),
            scratch_shapes=[
                pltpu.VMEM((b_tile, 8, C_FEAT), jnp.float32),   # GAP partials
                pltpu.VMEM((b_tile, 8, C_FEAT), jnp.float32),   # GMP partials
            ],
        ),
        compiler_params=pltpu.CompilerParams(
            dimension_semantics=("parallel", "arbitrary"),
            vmem_limit_bytes=vmem_limit),
    )(x_flat, w_bf16, scale2, bias2)
    return out[:N]


def reference_forward(x_nchw, w_proxy, gamma, beta, run_mean, run_var):
    # pure-JAX reference mirroring the PyTorch eval-mode forward
    # (matmul inputs in bf16, f32 accumulation, like the kernel)
    N, Cin, H, W = x_nchw.shape
    x_flat = jnp.transpose(x_nchw, (0, 2, 3, 1)).reshape(N, H * W, Cin)
    feat = jnp.einsum("nsc,cf->nsf",
                      x_flat.astype(jnp.bfloat16),
                      w_proxy.astype(jnp.bfloat16),
                      preferred_element_type=jnp.float32)
    feat = jnp.maximum(feat, 0.0)
    pooled = jnp.mean(feat, axis=1) + jnp.max(feat, axis=1)     # (N, C)
    cat = jnp.concatenate([pooled, pooled], axis=1)             # (N, 2C)
    return (cat - run_mean) * jax.lax.rsqrt(run_var + EPS) * gamma + beta


if __name__ == "__main__":
    key = jax.random.PRNGKey(0)
    k_x, k_w, k_g, k_b, k_m, k_v = jax.random.split(key, 6)

    N, Cin, H, W = 2, 4, 16, 16
    x = jax.random.normal(k_x, (N, Cin, H, W), dtype=jnp.float32)

    # deterministic synthetic parameters
    w_proxy = jax.random.normal(k_w, (Cin, C_FEAT), dtype=jnp.float32) * 0.1
    gamma = 1.0 + 0.1 * jax.random.normal(k_g, (BN_DIM,), dtype=jnp.float32)
    beta = 0.1 * jax.random.normal(k_b, (BN_DIM,), dtype=jnp.float32)
    run_mean = 0.1 * jax.random.normal(k_m, (BN_DIM,), dtype=jnp.float32)
    run_var = 0.5 + jnp.abs(jax.random.normal(k_v, (BN_DIM,), dtype=jnp.float32))

    # jit the wrapper so the NCHW->NHWC / bf16 / pad producer is one fused pass
    fwd = jax.jit(densenet121_reid_forward)
    out = jax.block_until_ready(fwd(x, w_proxy, gamma, beta, run_mean, run_var))

    ref = reference_forward(x, w_proxy, gamma, beta, run_mean, run_var)
    assert out.shape == (N, BN_DIM), out.shape
    assert jnp.allclose(out, ref, atol=1e-3, rtol=1e-3), \
        float(jnp.max(jnp.abs(out - ref)))

    print("KERNEL_OK")
</pallas_src>

<mosaic_0001>
module attributes {stable_mosaic.version = 11 : i64} {
  func.func @_reid_head_kernel(%arg0: i32, %arg1: i32, %arg2: memref<2x256x4xbf16, #tpu.memory_space<vmem>>, %arg3: memref<4x1024xbf16, #tpu.memory_space<vmem>>, %arg4: memref<1x2048xf32, #tpu.memory_space<vmem>>, %arg5: memref<1x2048xf32, #tpu.memory_space<vmem>>, %arg6: memref<2x2048xf32, #tpu.memory_space<vmem>>, %arg7: memref<2x8x1024xf32, #tpu.memory_space<vmem>>, %arg8: memref<2x8x1024xf32, #tpu.memory_space<vmem>>) attributes {dimension_semantics = [#tpu.dimension_semantics<parallel>, #tpu.dimension_semantics<arbitrary>], iteration_bounds = array<i64: 1, 1>, scalar_prefetch = 0 : i64, scratch_operands = 2 : i64, tpu.core_type = #tpu.core_type<tc>, window_params = [{transform_indices = @transform_0, window_bounds = array<i64: 2, 256, 4>}, {pipeline_mode = #tpu.pipeline_mode<synchronous>, transform_indices = @transform_1, window_bounds = array<i64: 4, 1024>}, {pipeline_mode = #tpu.pipeline_mode<synchronous>, transform_indices = @transform_2, window_bounds = array<i64: 1, 2048>}, {pipeline_mode = #tpu.pipeline_mode<synchronous>, transform_indices = @transform_3, window_bounds = array<i64: 1, 2048>}, {transform_indices = @transform_4, window_bounds = array<i64: 2, 2048>}]} {
    %c0_i32 = arith.constant 0 : i32
    %0 = arith.cmpi eq, %arg1, %c0_i32 : i32
    %1 = arith.extui %0 : i1 to i32
    %c0_i32_0 = arith.constant 0 : i32
    %2 = arith.cmpi ne, %1, %c0_i32_0 : i32
    scf.if %2 {
      %cst_22 = arith.constant 0.000000e+00 : f32
      %21 = vector.broadcast %cst_22 : f32 to vector<2x8x1024xf32>
      %c0_23 = arith.constant 0 : index
      %c0_24 = arith.constant 0 : index
      %c0_25 = arith.constant 0 : index
      %22 = vector.load %arg7[%c0_23, %c0_24, %c0_25] : memref<2x8x1024xf32, #tpu.memory_space<vmem>>, vector<2x8x1024xf32>
      tpu.vector_store %arg7[%c0_23, %c0_24, %c0_25], %21 {strides = array<i32>} : memref<2x8x1024xf32, #tpu.memory_space<vmem>>, vector<2x8x1024xf32>,
      %cst_26 = arith.constant 0.000000e+00 : f32
      %23 = vector.broadcast %cst_26 : f32 to vector<2x8x1024xf32>
      %c0_27 = arith.constant 0 : index
      %c0_28 = arith.constant 0 : index
      %c0_29 = arith.constant 0 : index
      %24 = vector.load %arg8[%c0_27, %c0_28, %c0_29] : memref<2x8x1024xf32, #tpu.memory_space<vmem>>, vector<2x8x1024xf32>
      tpu.vector_store %arg8[%c0_27, %c0_28, %c0_29], %23 {strides = array<i32>} : memref<2x8x1024xf32, #tpu.memory_space<vmem>>, vector<2x8x1024xf32>,
    } else {
    }
    %c0 = arith.constant 0 : index
    %c0_1 = arith.constant 0 : index
    %c0_2 = arith.constant 0 : index
    %3 = vector.load %arg2[%c0, %c0_1, %c0_2] : memref<2x256x4xbf16, #tpu.memory_space<vmem>>, vector<2x256x4xbf16>
    %4 = vector.shape_cast %3 : vector<2x256x4xbf16> to vector<512x4xbf16>
    %c0_3 = arith.constant 0 : index
    %c0_4 = arith.constant 0 : index
    %5 = vector.load %arg3[%c0_3, %c0_4] : memref<4x1024xbf16, #tpu.memory_space<vmem>>, vector<4x1024xbf16>
    %cst = arith.constant dense<0.000000e+00> : vector<512x1024xf32>
    %6 = tpu.matmul %4, %5, %cst {dimension_numbers = #tpu.dot_dimension_numbers<[1], [0], [0], [1], [0, 0, 1, 1], [], []>} : vector<512x4xbf16>, vector<4x1024xbf16>, vector<512x1024xf32> -> vector<512x1024xf32>
    %cst_5 = arith.constant 0.000000e+00 : f32
    %7 = vector.broadcast %cst_5 : f32 to vector<512x1024xf32>
    %8 = arith.maximumf %6, %7 : vector<512x1024xf32>
    %9 = vector.shape_cast %8 : vector<512x1024xf32> to vector<2x32x8x1024xf32>
    %c0_6 = arith.constant 0 : index
    %c0_7 = arith.constant 0 : index
    %c0_8 = arith.constant 0 : index
    %10 = vector.load %arg7[%c0_6, %c0_7, %c0_8] : memref<2x8x1024xf32, #tpu.memory_space<vmem>>, vector<2x8x1024xf32>
    %cst_9 = arith.constant dense<0.000000e+00> : vector<2x8x1024xf32>
    %11 = vector.multi_reduction <add>, %9, %cst_9 [1] : vector<2x32x8x1024xf32> to vector<2x8x1024xf32>
    %12 = arith.addf %10, %11 : vector<2x8x1024xf32>
    %c0_10 = arith.constant 0 : index
    %c0_11 = arith.constant 0 : index
    %c0_12 = arith.constant 0 : index
    %13 = vector.load %arg7[%c0_10, %c0_11, %c0_12] : memref<2x8x1024xf32, #tpu.memory_space<vmem>>, vector<2x8x1024xf32>
    tpu.vector_store %arg7[%c0_10, %c0_11, %c0_12], %12 {strides = array<i32>} : memref<2x8x1024xf32, #tpu.memory_space<vmem>>, vector<2x8x1024xf32>,
    %c0_13 = arith.constant 0 : index
    %c0_14 = arith.constant 0 : index
    %c0_15 = arith.constant 0 : index
    %14 = vector.load %arg8[%c0_13, %c0_14, %c0_15] : memref<2x8x1024xf32, #tpu.memory_space<vmem>>, vector<2x8x1024xf32>
    %cst_16 = arith.constant dense<0xFF800000> : vector<2x8x1024xf32>
    %15 = vector.multi_reduction <maximumf>, %9, %cst_16 [1] : vector<2x32x8x1024xf32> to vector<2x8x1024xf32>
    %16 = arith.maximumf %14, %15 : vector<2x8x1024xf32>
    %c0_17 = arith.constant 0 : index
    %c0_18 = arith.constant 0 : index
    %c0_19 = arith.constant 0 : index
    %17 = vector.load %arg8[%c0_17, %c0_18, %c0_19] : memref<2x8x1024xf32, #tpu.memory_space<vmem>>, vector<2x8x1024xf32>
    tpu.vector_store %arg8[%c0_17, %c0_18, %c0_19], %16 {strides = array<i32>} : memref<2x8x1024xf32, #tpu.memory_space<vmem>>, vector<2x8x1024xf32>,
    %c0_i32_20 = arith.constant 0 : i32
    %18 = arith.cmpi eq, %arg1, %c0_i32_20 : i32
    %19 = arith.extui %18 : i1 to i32
    %c0_i32_21 = arith.constant 0 : i32
    %20 = arith.cmpi ne, %19, %c0_i32_21 : i32
    scf.if %20 {
      %c0_22 = arith.constant 0 : index
      %c0_23 = arith.constant 0 : index
      %c0_24 = arith.constant 0 : index
      %21 = vector.load %arg7[%c0_22, %c0_23, %c0_24] : memref<2x8x1024xf32, #tpu.memory_space<vmem>>, vector<2x8x1024xf32>
      %cst_25 = arith.constant dense<0.000000e+00> : vector<2x1024xf32>
      %22 = vector.multi_reduction <add>, %21, %cst_25 [1] : vector<2x8x1024xf32> to vector<2x1024xf32>
      %cst_26 = arith.constant 3.906250e-03 : f32
      %23 = vector.broadcast %cst_26 : f32 to vector<2x1024xf32>
      %24 = arith.mulf %22, %23 : vector<2x1024xf32>
      %c0_27 = arith.constant 0 : index
      %c0_28 = arith.constant 0 : index
      %c0_29 = arith.constant 0 : index
      %25 = vector.load %arg8[%c0_27, %c0_28, %c0_29] : memref<2x8x1024xf32, #tpu.memory_space<vmem>>, vector<2x8x1024xf32>
      %cst_30 = arith.constant dense<0xFF800000> : vector<2x1024xf32>
      %26 = vector.multi_reduction <maximumf>, %25, %cst_30 [1] : vector<2x8x1024xf32> to vector<2x1024xf32>
      %27 = arith.addf %24, %26 : vector<2x1024xf32>
      %28 = tpu.concatenate %27, %27 in 1 : vector<2x1024xf32>, vector<2x1024xf32> -> vector<2x2048xf32>
      %c0_31 = arith.constant 0 : index
      %c0_32 = arith.constant 0 : index
      %29 = vector.load %arg4[%c0_31, %c0_32] : memref<1x2048xf32, #tpu.memory_space<vmem>>, vector<1x2048xf32>
      %30 = vector.broadcast %29 : vector<1x2048xf32> to vector<2x2048xf32>
      %31 = arith.mulf %28, %30 : vector<2x2048xf32>
      %c0_33 = arith.constant 0 : index
      %c0_34 = arith.constant 0 : index
      %32 = vector.load %arg5[%c0_33, %c0_34] : memref<1x2048xf32, #tpu.memory_space<vmem>>, vector<1x2048xf32>
      %33 = vector.broadcast %32 : vector<1x2048xf32> to vector<2x2048xf32>
      %34 = arith.addf %31, %33 : vector<2x2048xf32>
      %c0_35 = arith.constant 0 : index
      %c0_36 = arith.constant 0 : index
      %35 = vector.load %arg6[%c0_35, %c0_36] : memref<2x2048xf32, #tpu.memory_space<vmem>>, vector<2x2048xf32>
      tpu.vector_store %arg6[%c0_35, %c0_36], %34 {strides = array<i32>} : memref<2x2048xf32, #tpu.memory_space<vmem>>, vector<2x2048xf32>,
    } else {
    }
    return
  }
  func.func @transform_0(%arg0: i32, %arg1: i32) -> (i32, i32, i32) {
    %c0_i32 = arith.constant 0 : i32
    %c0_i32_0 = arith.constant 0 : i32
    return %arg0, %arg1, %c0_i32 : i32, i32, i32
  }
  func.func @transform_1(%arg0: i32, %arg1: i32) -> (i32, i32) {
    %c0_i32 = arith.constant 0 : i32
    %c0_i32_0 = arith.constant 0 : i32
    %c0_i32_1 = arith.constant 0 : i32
    return %c0_i32, %c0_i32_0 : i32, i32
  }
  func.func @transform_2(%arg0: i32, %arg1: i32) -> (i32, i32) {
    %c0_i32 = arith.constant 0 : i32
    %c0_i32_0 = arith.constant 0 : i32
    %c0_i32_1 = arith.constant 0 : i32
    return %c0_i32, %c0_i32_0 : i32, i32
  }
  func.func @transform_3(%arg0: i32, %arg1: i32) -> (i32, i32) {
    %c0_i32 = arith.constant 0 : i32
    %c0_i32_0 = arith.constant 0 : i32
    %c0_i32_1 = arith.constant 0 : i32
    return %c0_i32, %c0_i32_0 : i32, i32
  }
  func.func @transform_4(%arg0: i32, %arg1: i32) -> (i32, i32) {
    %c0_i32 = arith.constant 0 : i32
    %c0_i32_0 = arith.constant 0 : i32
    return %arg0, %c0_i32 : i32, i32
  }
}

</mosaic_0001>

<llo_original>
// kernel: densenet121_reid_forward.1
$region0: #{densenet121_reid_forward.1}
  #allocation0 [shape = 'u32[]', space=smem, size = 0x4, offset = 0x4, fixed_abs, tag = 'smem constant byte address 0x4 - core index']
  #allocation1 [shape = 'u32[144,128]{1,0:T(1,128)}', space=vmem, size = 0x12000, scoped, tag = 'internal scratch']
  #allocation2 [shape = 'f32[2,8,1024]{2,1,0:T(8,128)}', space=vmem, size = 0x10000, scoped, tag = 'scratch operand']
  #allocation3 [shape = 'f32[2,8,1024]{2,1,0:T(8,128)}', space=vmem, size = 0x10000, scoped, tag = 'scratch operand']
  %s0 = inlined_call_operand.vmem [shape: bf16[2,256,4], index: 0, kind: input, shape index: {}]
  %s1 = inlined_call_operand.vmem [shape: bf16[4,1024], index: 1, kind: input, shape index: {}]
  %s2 = inlined_call_operand.vmem [shape: f32[1,2048], index: 2, kind: input, shape index: {}]
  %s3 = inlined_call_operand.vmem [shape: f32[1,2048], index: 3, kind: input, shape index: {}]
  %s4 = inlined_call_operand.hbm [shape: f32[2,2048], index: 4, kind: output, shape index: {}]
  %s5 = sld [smem:[#allocation0]]
  $region34: #{densenet121_reid_forward.1} parent=0
    _
  %s7 = ssub.s32 1, %s5
  %s8 = scalar_select 0, %s7, %s5
  $region1: #{densenet121_reid_forward.1} parent=0
    #allocation4 [shape = 'u8[16384]{0}', space=vmem, size = 0x4000, scoped, tag = 'output window, operand 0, single buffered']
    #allocation5 [shape = 's32[1]{0}', space=sflag, size = 0x4, scoped, tag = 'scoped memory for densenet121_reid_forward.1']
    %9 = vsyncpa [#allocation5], 0
    // Predicated region
    $region2: #{densenet121_reid_forward.1} parent=1 // pred_check
      _
    $region3: #{densenet121_reid_forward.1} parent=1 // pred_check_branch
      %11 = sbr.rel (0) target = $region5
    $region4: #{densenet121_reid_forward.1} parent=1 // pred_region
      _
    $region5: #{densenet121_reid_forward.1} parent=1 // pred_fallthru
      _
    // Predicated region
    $region6: #{densenet121_reid_forward.1} parent=1 // pred_check
      _
    $region7: #{densenet121_reid_forward.1} parent=1 // pred_check_branch
      %13 = sbr.rel (0) target = $region9
    $region8: #{densenet121_reid_forward.1} parent=1 // pred_region
      _
    $region9: #{densenet121_reid_forward.1} parent=1 // pred_fallthru
      _
    // Predicated region
    $region10: #{densenet121_reid_forward.1} parent=1 // pred_check
      _
    $region11: #{densenet121_reid_forward.1} parent=1 // pred_check_branch
      %15 = sbr.rel (0) target = $region13
    $region12: #{densenet121_reid_forward.1} parent=1 // pred_region
      _
    $region13: #{densenet121_reid_forward.1} parent=1 // pred_fallthru
      _
    // Predicated region
    $region14: #{densenet121_reid_forward.1} parent=1 // pred_check
      _
    $region15: #{densenet121_reid_forward.1} parent=1 // pred_check_branch
      %17 = sbr.rel (0) target = $region17
    $region16: #{densenet121_reid_forward.1} parent=1 // pred_region
      _
    $region17: #{densenet121_reid_forward.1} parent=1 // pred_fallthru
      _
    %p19 = scmp.eq.s32.totalorder 0, 0
    // Predicated region
    $region18: #{densenet121_reid_forward.1} parent=1 // pred_check
      %p20 = pneg %p19
    $region19: #{densenet121_reid_forward.1} parent=1 // pred_check_branch
      %22 = sbr.rel (%p20) target = $region21
    $region20: #{densenet121_reid_forward.1} parent=1 // pred_region
      %23 = vst [vmem:[#allocation2] sm:$0xff] 0.0
      %24 = vst [vmem:[#allocation2 + $0x8] sm:$0xff] 0.0
      %25 = vst [vmem:[#allocation2 + $0x10] sm:$0xff] 0.0
      %26 = vst [vmem:[#allocation2 + $0x18] sm:$0xff] 0.0
      %27 = vst [vmem:[#allocation2 + $0x20] sm:$0xff] 0.0
      %28 = vst [vmem:[#allocation2 + $0x28] sm:$0xff] 0.0
      %29 = vst [vmem:[#allocation2 + $0x30] sm:$0xff] 0.0
      %30 = vst [vmem:[#allocation2 + $0x38] sm:$0xff] 0.0
      %31 = vst [vmem:[#allocation2 + $0x40] sm:$0xff] 0.0
      %32 = vst [vmem:[#allocation2 + $0x48] sm:$0xff] 0.0
      %33 = vst [vmem:[#allocation2 + $0x50] sm:$0xff] 0.0
      %34 = vst [vmem:[#allocation2 + $0x58] sm:$0xff] 0.0
      %35 = vst [vmem:[#allocation2 + $0x60] sm:$0xff] 0.0
      %36 = vst [vmem:[#allocation2 + $0x68] sm:$0xff] 0.0
      %37 = vst [vmem:[#allocation2 + $0x70] sm:$0xff] 0.0
      %38 = vst [vmem:[#allocation2 + $0x78] sm:$0xff] 0.0
      %39 = vst [vmem:[#allocation3] sm:$0xff] 0.0
      %40 = vst [vmem:[#allocation3 + $0x8] sm:$0xff] 0.0
      %41 = vst [vmem:[#allocation3 + $0x10] sm:$0xff] 0.0
      %42 = vst [vmem:[#allocation3 + $0x18] sm:$0xff] 0.0
      %43 = vst [vmem:[#allocation3 + $0x20] sm:$0xff] 0.0
      %44 = vst [vmem:[#allocation3 + $0x28] sm:$0xff] 0.0
      %45 = vst [vmem:[#allocation3 + $0x30] sm:$0xff] 0.0
      %46 = vst [vmem:[#allocation3 + $0x38] sm:$0xff] 0.0
      %47 = vst [vmem:[#allocation3 + $0x40] sm:$0xff] 0.0
      %48 = vst [vmem:[#allocation3 + $0x48] sm:$0xff] 0.0
      %49 = vst [vmem:[#allocation3 + $0x50] sm:$0xff] 0.0
      %50 = vst [vmem:[#allocation3 + $0x58] sm:$0xff] 0.0
      %51 = vst [vmem:[#allocation3 + $0x60] sm:$0xff] 0.0
      %52 = vst [vmem:[#allocation3 + $0x68] sm:$0xff] 0.0
      %53 = vst [vmem:[#allocation3 + $0x70] sm:$0xff] 0.0
      %54 = vst [vmem:[#allocation3 + $0x78] sm:$0xff] 0.0
    $region21: #{densenet121_reid_forward.1} parent=1 // pred_fallthru
      _
    %v55 = vld [vmem:[%s0] sm:$0xf]
    %v56 = vld [vmem:[%s0 + $0x4] sm:$0xf]
    %v57 = vld [vmem:[%s0 + $0x8] sm:$0xf]
    %v58 = vld [vmem:[%s0 + $0xc] sm:$0xf]
    %v59 = vld [vmem:[%s0 + $0x10] sm:$0xf]
    %v60 = vld [vmem:[%s0 + $0x14] sm:$0xf]
    %v61 = vld [vmem:[%s0 + $0x18] sm:$0xf]
    %v62 = vld [vmem:[%s0 + $0x1c] sm:$0xf]
    %v63 = vld [vmem:[%s0 + $0x20] sm:$0xf]
    %v64 = vld [vmem:[%s0 + $0x24] sm:$0xf]
    %v65 = vld [vmem:[%s0 + $0x28] sm:$0xf]
    %v66 = vld [vmem:[%s0 + $0x2c] sm:$0xf]
    %v67 = vld [vmem:[%s0 + $0x30] sm:$0xf]
    %v68 = vld [vmem:[%s0 + $0x34] sm:$0xf]
    %v69 = vld [vmem:[%s0 + $0x38] sm:$0xf]
    %v70 = vld [vmem:[%s0 + $0x3c] sm:$0xf]
    %v71 = vld [vmem:[%s0 + $0x40] sm:$0xf]
    %v72 = vld [vmem:[%s0 + $0x44] sm:$0xf]
    %v73 = vld [vmem:[%s0 + $0x48] sm:$0xf]
    %v74 = vld [vmem:[%s0 + $0x4c] sm:$0xf]
    %v75 = vld [vmem:[%s0 + $0x50] sm:$0xf]
    %v76 = vld [vmem:[%s0 + $0x54] sm:$0xf]
    %v77 = vld [vmem:[%s0 + $0x58] sm:$0xf]
    %v78 = vld [vmem:[%s0 + $0x5c] sm:$0xf]
    %v79 = vld [vmem:[%s0 + $0x60] sm:$0xf]
    %v80 = vld [vmem:[%s0 + $0x64] sm:$0xf]
    %v81 = vld [vmem:[%s0 + $0x68] sm:$0xf]
    %v82 = vld [vmem:[%s0 + $0x6c] sm:$0xf]
    %v83 = vld [vmem:[%s0 + $0x70] sm:$0xf]
    %v84 = vld [vmem:[%s0 + $0x74] sm:$0xf]
    %v85 = vld [vmem:[%s0 + $0x78] sm:$0xf]
    %v86 = vld [vmem:[%s0 + $0x7c] sm:$0xf]
    %v87 = vld [vmem:[%s0 + $0x80] sm:$0xf]
    %v88 = vld [vmem:[%s0 + $0x84] sm:$0xf]
    %v89 = vld [vmem:[%s0 + $0x88] sm:$0xf]
    %v90 = vld [vmem:[%s0 + $0x8c] sm:$0xf]
    %v91 = vld [vmem:[%s0 + $0x90] sm:$0xf]
    %v92 = vld [vmem:[%s0 + $0x94] sm:$0xf]
    %v93 = vld [vmem:[%s0 + $0x98] sm:$0xf]
    %v94 = vld [vmem:[%s0 + $0x9c] sm:$0xf]
    %v95 = vld [vmem:[%s0 + $0xa0] sm:$0xf]
    %v96 = vld [vmem:[%s0 + $0xa4] sm:$0xf]
    %v97 = vld [vmem:[%s0 + $0xa8] sm:$0xf]
    %v98 = vld [vmem:[%s0 + $0xac] sm:$0xf]
    %v99 = vld [vmem:[%s0 + $0xb0] sm:$0xf]
    %v100 = vld [vmem:[%s0 + $0xb4] sm:$0xf]
    %v101 = vld [vmem:[%s0 + $0xb8] sm:$0xf]
    %v102 = vld [vmem:[%s0 + $0xbc] sm:$0xf]
    %v103 = vld [vmem:[%s0 + $0xc0] sm:$0xf]
    %v104 = vld [vmem:[%s0 + $0xc4] sm:$0xf]
    %v105 = vld [vmem:[%s0 + $0xc8] sm:$0xf]
    %v106 = vld [vmem:[%s0 + $0xcc] sm:$0xf]
    %v107 = vld [vmem:[%s0 + $0xd0] sm:$0xf]
    %v108 = vld [vmem:[%s0 + $0xd4] sm:$0xf]
    %v109 = vld [vmem:[%s0 + $0xd8] sm:$0xf]
    %v110 = vld [vmem:[%s0 + $0xdc] sm:$0xf]
    %v111 = vld [vmem:[%s0 + $0xe0] sm:$0xf]
    %v112 = vld [vmem:[%s0 + $0xe4] sm:$0xf]
    %v113 = vld [vmem:[%s0 + $0xe8] sm:$0xf]
    %v114 = vld [vmem:[%s0 + $0xec] sm:$0xf]
    %v115 = vld [vmem:[%s0 + $0xf0] sm:$0xf]
    %v116 = vld [vmem:[%s0 + $0xf4] sm:$0xf]
    %v117 = vld [vmem:[%s0 + $0xf8] sm:$0xf]
    %v118 = vld [vmem:[%s0 + $0xfc] sm:$0xf]
    %v119 = vld [vmem:[%s1] sm:$0xff]
    %v120 = vld [vmem:[%s1 + $0x8] sm:$0xff]
    %v185 = vunpack.c.l.b16 %v55
    %v186 = vunpack.c.l.b16 %v56
    %v187 = vunpack.c.l.b16 %v57
    %v188 = vunpack.c.l.b16 %v58
    %v189 = vunpack.c.l.b16 %v59
    %v190 = vunpack.c.l.b16 %v60
    %v191 = vunpack.c.l.b16 %v61
    %v192 = vunpack.c.l.b16 %v62
    %v193 = vunpack.c.l.b16 %v63
    %v194 = vunpack.c.l.b16 %v64
    %v195 = vunpack.c.l.b16 %v65
    %v196 = vunpack.c.l.b16 %v66
    %v197 = vunpack.c.l.b16 %v67
    %v198 = vunpack.c.l.b16 %v68
    %v199 = vunpack.c.l.b16 %v69
    %v200 = vunpack.c.l.b16 %v70
    %v201 = vunpack.c.l.b16 %v71
    %v202 = vunpack.c.l.b16 %v72
    %v203 = vunpack.c.l.b16 %v73
    %v204 = vunpack.c.l.b16 %v74
    %v205 = vunpack.c.l.b16 %v75
    %v206 = vunpack.c.l.b16 %v76
    %v207 = vunpack.c.l.b16 %v77
    %v208 = vunpack.c.l.b16 %v78
    %v209 = vunpack.c.l.b16 %v79
    %v210 = vunpack.c.l.b16 %v80
    %v211 = vunpack.c.l.b16 %v81
    %v212 = vunpack.c.l.b16 %v82
    %v213 = vunpack.c.l.b16 %v83
    %v214 = vunpack.c.l.b16 %v84
    %v215 = vunpack.c.l.b16 %v85
    %v216 = vunpack.c.l.b16 %v86
    %v217 = vunpack.c.l.b16 %v87
    %v218 = vunpack.c.l.b16 %v88
    %v219 = vunpack.c.l.b16 %v89
    %v220 = vunpack.c.l.b16 %v90
    %v221 = vunpack.c.l.b16 %v91
    %v222 = vunpack.c.l.b16 %v92
    %v223 = vunpack.c.l.b16 %v93
    %v224 = vunpack.c.l.b16 %v94
    %v225 = vunpack.c.l.b16 %v95
    %v226 = vunpack.c.l.b16 %v96
    %v227 = vunpack.c.l.b16 %v97
    %v228 = vunpack.c.l.b16 %v98
    %v229 = vunpack.c.l.b16 %v99
    %v230 = vunpack.c.l.b16 %v100
    %v231 = vunpack.c.l.b16 %v101
    %v232 = vunpack.c.l.b16 %v102
    %v233 = vunpack.c.l.b16 %v103
    %v234 = vunpack.c.l.b16 %v104
    %v235 = vunpack.c.l.b16 %v105
    %v236 = vunpack.c.l.b16 %v106
    %v237 = vunpack.c.l.b16 %v107
    %v238 = vunpack.c.l.b16 %v108
    %v239 = vunpack.c.l.b16 %v109
    %v240 = vunpack.c.l.b16 %v110
    %v241 = vunpack.c.l.b16 %v111
    %v242 = vunpack.c.l.b16 %v112
    %v243 = vunpack.c.l.b16 %v113
    %v244 = vunpack.c.l.b16 %v114
    %v245 = vunpack.c.l.b16 %v115
    %v246 = vunpack.c.l.b16 %v116
    %v247 = vunpack.c.l.b16 %v117
    %v248 = vunpack.c.l.b16 %v118
    %v249 = vpack.c.b16 %v186, %v185
    %v250 = vpack.c.b16 %v188, %v187
    %v251 = vpack.c.b16 %v190, %v189
    %v252 = vpack.c.b16 %v192, %v191
    %v253 = vpack.c.b16 %v194, %v193
    %v254 = vpack.c.b16 %v196, %v195
    %v255 = vpack.c.b16 %v198, %v197
    %v256 = vpack.c.b16 %v200, %v199
    %v257 = vpack.c.b16 %v202, %v201
    %v258 = vpack.c.b16 %v204, %v203
    %v259 = vpack.c.b16 %v206, %v205
    %v260 = vpack.c.b16 %v208, %v207
    %v261 = vpack.c.b16 %v210, %v209
    %v262 = vpack.c.b16 %v212, %v211
    %v263 = vpack.c.b16 %v214, %v213
    %v264 = vpack.c.b16 %v216, %v215
    %v265 = vpack.c.b16 %v218, %v217
    %v266 = vpack.c.b16 %v220, %v219
    %v267 = vpack.c.b16 %v222, %v221
    %v268 = vpack.c.b16 %v224, %v223
    %v269 = vpack.c.b16 %v226, %v225
    %v270 = vpack.c.b16 %v228, %v227
    %v271 = vpack.c.b16 %v230, %v229
    %v272 = vpack.c.b16 %v232, %v231
    %v273 = vpack.c.b16 %v234, %v233
    %v274 = vpack.c.b16 %v236, %v235
    %v275 = vpack.c.b16 %v238, %v237
    %v276 = vpack.c.b16 %v240, %v239
    %v277 = vpack.c.b16 %v242, %v241
    %v278 = vpack.c.b16 %v244, %v243
    %v279 = vpack.c.b16 %v246, %v245
    %v280 = vpack.c.b16 %v248, %v247
    %v283 = vcombine.high %v119, %v119
    %v285 = vunpack.c.l.s4 1983009808
    %v286 = vunpack.c.0.s8 %v285
    %v287 = vlaneseq
    %v288 = vshrl.u32 %v287, 7
    %v289 = vsub.s32 %v286, %v288
    %v290 = vrot.slane %v119, %v289
    %v292 = vunpack.c.l.s4 1983009808
    %v293 = vunpack.c.0.s8 %v292
    %v294 = vlaneseq
    %v295 = vshrl.u32 %v294, 7
    %v296 = vsub.s32 %v293, %v295
    %v297 = vrot.slane %v283, %v296
    %v298 = vcombine.high %v290, %v290
    %v299 = vcombine.high %v297, %v297
    %v300 = vcombine.high %v120, %v120
    %v302 = vunpack.c.l.s4 1983009808
    %v303 = vunpack.c.0.s8 %v302
    %v304 = vlaneseq
    %v305 = vshrl.u32 %v304, 7
    %v306 = vsub.s32 %v303, %v305
    %v307 = vrot.slane %v120, %v306
    %v309 = vunpack.c.l.s4 1983009808
    %v310 = vunpack.c.0.s8 %v309
    %v311 = vlaneseq
    %v312 = vshrl.u32 %v311, 7
    %v313 = vsub.s32 %v310, %v312
    %v314 = vrot.slane %v300, %v313
    %v315 = vcombine.high %v307, %v307
    %v316 = vcombine.high %v314, %v314
    %vm317 = vcmask 31744
    %v319 = vsel %vm317, %v249, 0
    %v322 = vsel %vm317, %v250, 0
    %v325 = vsel %vm317, %v251, 0
    %v328 = vsel %vm317, %v252, 0
    %v331 = vsel %vm317, %v253, 0
    %v334 = vsel %vm317, %v254, 0
    %v337 = vsel %vm317, %v255, 0
    %v340 = vsel %vm317, %v256, 0
    %v343 = vsel %vm317, %v257, 0
    %v346 = vsel %vm317, %v258, 0
    %v349 = vsel %vm317, %v259, 0
    %v352 = vsel %vm317, %v260, 0
    %v355 = vsel %vm317, %v261, 0
    %v358 = vsel %vm317, %v262, 0
    %v361 = vsel %vm317, %v263, 0
    %v364 = vsel %vm317, %v264, 0
    %v367 = vsel %vm317, %v265, 0
    %v370 = vsel %vm317, %v266, 0
    %v373 = vsel %vm317, %v267, 0
    %v376 = vsel %vm317, %v268, 0
    %v379 = vsel %vm317, %v269, 0
    %v382 = vsel %vm317, %v270, 0
    %v385 = vsel %vm317, %v271, 0
    %v388 = vsel %vm317, %v272, 0
    %v391 = vsel %vm317, %v273, 0
    %v394 = vsel %vm317, %v274, 0
    %v397 = vsel %vm317, %v275, 0
    %v400 = vsel %vm317, %v276, 0
    %v403 = vsel %vm317, %v277, 0
    %v406 = vsel %vm317, %v278, 0
    %v409 = vsel %vm317, %v279, 0
    %v412 = vsel %vm317, %v280, 0
    %vm414 = vcmask 1041408
    %v416 = vsel %vm414, %v290, 0
    %v419 = vsel %vm414, %v298, 0
    %v422 = vsel %vm414, %v297, 0
    %v425 = vsel %vm414, %v299, 0
    %v428 = vsel %vm414, %v307, 0
    %v431 = vsel %vm414, %v315, 0
    %v434 = vsel %vm414, %v314, 0
    %v437 = vsel %vm414, %v316, 0
    %439 = vmatprep.subr.bf16.mxu0 %v419
    %440 = vmatpush1.bf16.msra.mxu0 %v416
    %441 = vmatprep.subr.bf16.mxu0 0
    %442 = vmatpush1.bf16.msra.mxu0 0
    %443 = vmatprep.subr.bf16.mxu0 0
    %444 = vmatpush1.bf16.msra.mxu0 0
    %445 = vmatprep.subr.bf16.mxu0 0
    %446 = vmatpush1.bf16.msra.mxu0 0
    %447 = vmatprep.subr.bf16.mxu0 0
    %448 = vmatpush1.bf16.msra.mxu0 0
    %449 = vmatprep.subr.bf16.mxu0 0
    %450 = vmatpush1.bf16.msra.mxu0 0
    %451 = vmatprep.subr.bf16.mxu0 0
    %452 = vmatpush1.bf16.msra.mxu0 0
    %453 = vmatprep.subr.bf16.mxu0 0
    %454 = vmatpush1.bf16.msra.mxu0 0
    %455 = vmatprep.subr.bf16.mxu0 0
    %456 = vmatpush1.bf16.msra.mxu0 0
    %457 = vmatprep.subr.bf16.mxu0 0
    %458 = vmatpush1.bf16.msra.mxu0 0
    %459 = vmatprep.subr.bf16.mxu0 0
    %460 = vmatpush1.bf16.msra.mxu0 0
    %461 = vmatprep.subr.bf16.mxu0 0
    %462 = vmatpush1.bf16.msra.mxu0 0
    %463 = vmatprep.subr.bf16.mxu0 0
    %464 = vmatpush1.bf16.msra.mxu0 0
    %465 = vmatprep.subr.bf16.mxu0 0
    %466 = vmatpush1.bf16.msra.mxu0 0
    %467 = vmatprep.subr.bf16.mxu0 0
    %468 = vmatpush1.bf16.msra.mxu0 0
    %469 = vmatprep.subr.bf16.mxu0 0
    %470 = vmatpush1.bf16.msra.mxu0 0
    %471 = vmatprep.mubr.bf16.mxu0 0
    %472 = vmatmul.mubr.bf16.gmra.mrb[0].mxu0 %v319
    %v473 = vpop.f32.mrb[0].mxu0
    %v474 = vadd.f32 0.0, %v473
    %v475 = vpop.f32.mrb[0].mxu0
    %v476 = vadd.f32 0.0, %v475
    %v477 = vpop.f32.mrb[0].mxu0
    %v478 = vadd.f32 0.0, %v477
    %v479 = vpop.f32.mrb[0].mxu0
    %v480 = vadd.f32 0.0, %v479
    %481 = vmatprep.mubr.bf16.mxu0 0
    %482 = vmatmul.mubr.bf16.gmra.mrb[0].mxu0 %v322
    %v483 = vpop.f32.mrb[0].mxu0
    %v484 = vadd.f32 0.0, %v483
    %v485 = vpop.f32.mrb[0].mxu0
    %v486 = vadd.f32 0.0, %v485
    %v487 = vpop.f32.mrb[0].mxu0
    %v488 = vadd.f32 0.0, %v487
    %v489 = vpop.f32.mrb[0].mxu0
    %v490 = vadd.f32 0.0, %v489
    %491 = vmatprep.mubr.bf16.mxu0 0
    %492 = vmatmul.mubr.bf16.gmra.mrb[0].mxu0 %v325
    %v493 = vpop.f32.mrb[0].mxu0
    %v494 = vadd.f32 0.0, %v493
    %v495 = vpop.f32.mrb[0].mxu0
    %v496 = vadd.f32 0.0, %v495
    %v497 = vpop.f32.mrb[0].mxu0
    %v498 = vadd.f32 0.0, %v497
    %v499 = vpop.f32.mrb[0].mxu0
    %v500 = vadd.f32 0.0, %v499
    %501 = vmatprep.mubr.bf16.mxu0 0
    %502 = vmatmul.mubr.bf16.gmra.mrb[0].mxu0 %v328
    %v503 = vpop.f32.mrb[0].mxu0
    %v504 = vadd.f32 0.0, %v503
    %v505 = vpop.f32.mrb[0].mxu0
    %v506 = vadd.f32 0.0, %v505
    %v507 = vpop.f32.mrb[0].mxu0
    %v508 = vadd.f32 0.0, %v507
    %v509 = vpop.f32.mrb[0].mxu0
    %v510 = vadd.f32 0.0, %v509
    %511 = vmatprep.mubr.bf16.mxu0 0
    %512 = vmatmul.mubr.bf16.gmra.mrb[0].mxu0 %v331
    %v513 = vpop.f32.mrb[0].mxu0
    %v514 = vadd.f32 0.0, %v513
    %v515 = vpop.f32.mrb[0].mxu0
    %v516 = vadd.f32 0.0, %v515
    %v517 = vpop.f32.mrb[0].mxu0
    %v518 = vadd.f32 0.0, %v517
    %v519 = vpop.f32.mrb[0].mxu0
    %v520 = vadd.f32 0.0, %v519
    %521 = vmatprep.mubr.bf16.mxu0 0
    %522 = vmatmul.mubr.bf16.gmra.mrb[0].mxu0 %v334
    %v523 = vpop.f32.mrb[0].mxu0
    %v524 = vadd.f32 0.0, %v523
    %v525 = vpop.f32.mrb[0].mxu0
    %v526 = vadd.f32 0.0, %v525
    %v527 = vpop.f32.mrb[0].mxu0
    %v528 = vadd.f32 0.0, %v527
    %v529 = vpop.f32.mrb[0].mxu0
    %v530 = vadd.f32 0.0, %v529
    %531 = vmatprep.mubr.bf16.mxu0 0
    %532 = vmatmul.mubr.bf16.gmra.mrb[0].mxu0 %v337
    %v533 = vpop.f32.mrb[0].mxu0
    %v534 = vadd.f32 0.0, %v533
    %v535 = vpop.f32.mrb[0].mxu0
    %v536 = vadd.f32 0.0, %v535
    %v537 = vpop.f32.mrb[0].mxu0
    %v538 = vadd.f32 0.0, %v537
    %v539 = vpop.f32.mrb[0].mxu0
    %v540 = vadd.f32 0.0, %v539
    %541 = vmatprep.mubr.bf16.mxu0 0
    %542 = vmatmul.mubr.bf16.gmra.mrb[0].mxu0 %v340
    %v543 = vpop.f32.mrb[0].mxu0
    %v544 = vadd.f32 0.0, %v543
    %v545 = vpop.f32.mrb[0].mxu0
    %v546 = vadd.f32 0.0, %v545
    %v547 = vpop.f32.mrb[0].mxu0
    %v548 = vadd.f32 0.0, %v547
    %v549 = vpop.f32.mrb[0].mxu0
    %v550 = vadd.f32 0.0, %v549
    %551 = vmatprep.mubr.bf16.mxu0 0
    %552 = vmatmul.mubr.bf16.gmra.mrb[0].mxu0 %v343
    %v553 = vpop.f32.mrb[0].mxu0
    %v554 = vadd.f32 0.0, %v553
    %v555 = vpop.f32.mrb[0].mxu0
    %v556 = vadd.f32 0.0, %v555
    %v557 = vpop.f32.mrb[0].mxu0
    %v558 = vadd.f32 0.0, %v557
    %v559 = vpop.f32.mrb[0].mxu0
    %v560 = vadd.f32 0.0, %v559
    %561 = vmatprep.mubr.bf16.mxu0 0
    %562 = vmatmul.mubr.bf16.gmra.mrb[0].mxu0 %v346
    %v563 = vpop.f32.mrb[0].mxu0
    %v564 = vadd.f32 0.0, %v563
    %v565 = vpop.f32.mrb[0].mxu0
    %v566 = vadd.f32 0.0, %v565
    %v567 = vpop.f32.mrb[0].mxu0
    %v568 = vadd.f32 0.0, %v567
    %v569 = vpop.f32.mrb[0].mxu0
    %v570 = vadd.f32 0.0, %v569
    %571 = vmatprep.mubr.bf16.mxu0 0
    %572 = vmatmul.mubr.bf16.gmra.mrb[0].mxu0 %v349
    %v573 = vpop.f32.mrb[0].mxu0
    %v574 = vadd.f32 0.0, %v573
    %v575 = vpop.f32.mrb[0].mxu0
    %v576 = vadd.f32 0.0, %v575
    %v577 = vpop.f32.mrb[0].mxu0
    %v578 = vadd.f32 0.0, %v577
    %v579 = vpop.f32.mrb[0].mxu0
    %v580 = vadd.f32 0.0, %v579
    %581 = vmatprep.mubr.bf16.mxu0 0
    %582 = vmatmul.mubr.bf16.gmra.mrb[0].mxu0 %v352
    %v583 = vpop.f32.mrb[0].mxu0
    %v584 = vadd.f32 0.0, %v583
    %v585 = vpop.f32.mrb[0].mxu0
    %v586 = vadd.f32 0.0, %v585
    %v587 = vpop.f32.mrb[0].mxu0
    %v588 = vadd.f32 0.0, %v587
    %v589 = vpop.f32.mrb[0].mxu0
    %v590 = vadd.f32 0.0, %v589
    %591 = vmatprep.mubr.bf16.mxu0 0
    %592 = vmatmul.mubr.bf16.gmra.mrb[0].mxu0 %v355
    %v593 = vpop.f32.mrb[0].mxu0
    %v594 = vadd.f32 0.0, %v593
    %v595 = vpop.f32.mrb[0].mxu0
    %v596 = vadd.f32 0.0, %v595
    %v597 = vpop.f32.mrb[0].mxu0
    %v598 = vadd.f32 0.0, %v597
    %v599 = vpop.f32.mrb[0].mxu0
    %v600 = vadd.f32 0.0, %v599
    %601 = vmatprep.mubr.bf16.mxu0 0
    %602 = vmatmul.mubr.bf16.gmra.mrb[0].mxu0 %v358
    %v603 = vpop.f32.mrb[0].mxu0
    %v604 = vadd.f32 0.0, %v603
    %v605 = vpop.f32.mrb[0].mxu0
    %v606 = vadd.f32 0.0, %v605
    %v607 = vpop.f32.mrb[0].mxu0
    %v608 = vadd.f32 0.0, %v607
    %v609 = vpop.f32.mrb[0].mxu0
    %v610 = vadd.f32 0.0, %v609
    %611 = vmatprep.mubr.bf16.mxu0 0
    %612 = vmatmul.mubr.bf16.gmra.mrb[0].mxu0 %v361
    %v613 = vpop.f32.mrb[0].mxu0
    %v614 = vadd.f32 0.0, %v613
    %v615 = vpop.f32.mrb[0].mxu0
    %v616 = vadd.f32 0.0, %v615
    %v617 = vpop.f32.mrb[0].mxu0
    %v618 = vadd.f32 0.0, %v617
    %v619 = vpop.f32.mrb[0].mxu0
    %v620 = vadd.f32 0.0, %v619
    %621 = vmatprep.mubr.bf16.mxu0 0
    %622 = vmatmul.mubr.bf16.gmra.mrb[0].mxu0 %v364
    %v623 = vpop.f32.mrb[0].mxu0
    %v624 = vadd.f32 0.0, %v623
    %v625 = vpop.f32.mrb[0].mxu0
    %v626 = vadd.f32 0.0, %v625
    %v627 = vpop.f32.mrb[0].mxu0
    %v628 = vadd.f32 0.0, %v627
    %v629 = vpop.f32.mrb[0].mxu0
    %v630 = vadd.f32 0.0, %v629
    %631 = vmatprep.mubr.bf16.mxu0 0
    %632 = vmatmul.mubr.bf16.gmra.mrb[0].mxu0 %v367
    %v633 = vpop.f32.mrb[0].mxu0
    %v634 = vadd.f32 0.0, %v633
    %v635 = vpop.f32.mrb[0].mxu0
    %v636 = vadd.f32 0.0, %v635
    %v637 = vpop.f32.mrb[0].mxu0
    %v638 = vadd.f32 0.0, %v637
    %v639 = vpop.f32.mrb[0].mxu0
    %v640 = vadd.f32 0.0, %v639
    %641 = vmatprep.mubr.bf16.mxu0 0
    %642 = vmatmul.mubr.bf16.gmra.mrb[0].mxu0 %v370
    %v643 = vpop.f32.mrb[0].mxu0
    %v644 = vadd.f32 0.0, %v643
    %v645 = vpop.f32.mrb[0].mxu0
    %v646 = vadd.f32 0.0, %v645
    %v647 = vpop.f32.mrb[0].mxu0
    %v648 = vadd.f32 0.0, %v647
    %v649 = vpop.f32.mrb[0].mxu0
    %v650 = vadd.f32 0.0, %v649
    %651 = vmatprep.mubr.bf16.mxu0 0
    %652 = vmatmul.mubr.bf16.gmra.mrb[0].mxu0 %v373
    %v653 = vpop.f32.mrb[0].mxu0
    %v654 = vadd.f32 0.0, %v653
    %v655 = vpop.f32.mrb[0].mxu0
    %v656 = vadd.f32 0.0, %v655
    %v657 = vpop.f32.mrb[0].mxu0
    %v658 = vadd.f32 0.0, %v657
    %v659 = vpop.f32.mrb[0].mxu0
    %v660 = vadd.f32 0.0, %v659
    %661 = vmatprep.mubr.bf16.mxu0 0
    %662 = vmatmul.mubr.bf16.gmra.mrb[0].mxu0 %v376
    %v663 = vpop.f32.mrb[0].mxu0
    %v664 = vadd.f32 0.0, %v663
    %v665 = vpop.f32.mrb[0].mxu0
    %v666 = vadd.f32 0.0, %v665
    %v667 = vpop.f32.mrb[0].mxu0
    %v668 = vadd.f32 0.0, %v667
    %v669 = vpop.f32.mrb[0].mxu0
    %v670 = vadd.f32 0.0, %v669
    %671 = vmatprep.mubr.bf16.mxu0 0
    %672 = vmatmul.mubr.bf16.gmra.mrb[0].mxu0 %v379
    %v673 = vpop.f32.mrb[0].mxu0
    %v674 = vadd.f32 0.0, %v673
    %v675 = vpop.f32.mrb[0].mxu0
    %v676 = vadd.f32 0.0, %v675
    %v677 = vpop.f32.mrb[0].mxu0
    %v678 = vadd.f32 0.0, %v677
    %v679 = vpop.f32.mrb[0].mxu0
    %v680 = vadd.f32 0.0, %v679
    %681 = vmatprep.mubr.bf16.mxu0 0
    %682 = vmatmul.mubr.bf16.gmra.mrb[0].mxu0 %v382
    %v683 = vpop.f32.mrb[0].mxu0
    %v684 = vadd.f32 0.0, %v683
    %v685 = vpop.f32.mrb[0].mxu0
    %v686 = vadd.f32 0.0, %v685
    %v687 = vpop.f32.mrb[0].mxu0
    %v688 = vadd.f32 0.0, %v687
    %v689 = vpop.f32.mrb[0].mxu0
    %v690 = vadd.f32 0.0, %v689
    %691 = vmatprep.mubr.bf16.mxu0 0
    %692 = vmatmul.mubr.bf16.gmra.mrb[0].mxu0 %v385
    %v693 = vpop.f32.mrb[0].mxu0
    %v694 = vadd.f32 0.0, %v693
    %v695 = vpop.f32.mrb[0].mxu0
    %v696 = vadd.f32 0.0, %v695
    %v697 = vpop.f32.mrb[0].mxu0
    %v698 = vadd.f32 0.0, %v697
    %v699 = vpop.f32.mrb[0].mxu0
    %v700 = vadd.f32 0.0, %v699
    %701 = vmatprep.mubr.bf16.mxu0 0
    %702 = vmatmul.mubr.bf16.gmra.mrb[0].mxu0 %v388
    %v703 = vpop.f32.mrb[0].mxu0
    %v704 = vadd.f32 0.0, %v703
    %v705 = vpop.f32.mrb[0].mxu0
    %v706 = vadd.f32 0.0, %v705
    %v707 = vpop.f32.mrb[0].mxu0
    %v708 = vadd.f32 0.0, %v707
    %v709 = vpop.f32.mrb[0].mxu0
    %v710 = vadd.f32 0.0, %v709
    %711 = vmatprep.mubr.bf16.mxu0 0
    %712 = vmatmul.mubr.bf16.gmra.mrb[0].mxu0 %v391
    %v713 = vpop.f32.mrb[0].mxu0
    %v714 = vadd.f32 0.0, %v713
    %v715 = vpop.f32.mrb[0].mxu0
    %v716 = vadd.f32 0.0, %v715
    %v717 = vpop.f32.mrb[0].mxu0
    %v718 = vadd.f32 0.0, %v717
    %v719 = vpop.f32.mrb[0].mxu0
    %v720 = vadd.f32 0.0, %v719
    %721 = vmatprep.mubr.bf16.mxu0 0
    %722 = vmatmul.mubr.bf16.gmra.mrb[0].mxu0 %v394
    %v723 = vpop.f32.mrb[0].mxu0
    %v724 = vadd.f32 0.0, %v723
    %v725 = vpop.f32.mrb[0].mxu0
    %v726 = vadd.f32 0.0, %v725
    %v727 = vpop.f32.mrb[0].mxu0
    %v728 = vadd.f32 0.0, %v727
    %v729 = vpop.f32.mrb[0].mxu0
    %v730 = vadd.f32 0.0, %v729
    %731 = vmatprep.mubr.bf16.mxu0 0
    %732 = vmatmul.mubr.bf16.gmra.mrb[0].mxu0 %v397
    %v733 = vpop.f32.mrb[0].mxu0
    %v734 = vadd.f32 0.0, %v733
    %v735 = vpop.f32.mrb[0].mxu0
    %v736 = vadd.f32 0.0, %v735
    %v737 = vpop.f32.mrb[0].mxu0
    %v738 = vadd.f32 0.0, %v737
    %v739 = vpop.f32.mrb[0].mxu0
    %v740 = vadd.f32 0.0, %v739
    %741 = vmatprep.mubr.bf16.mxu0 0
    %742 = vmatmul.mubr.bf16.gmra.mrb[0].mxu0 %v400
    %v743 = vpop.f32.mrb[0].mxu0
    %v744 = vadd.f32 0.0, %v743
    %v745 = vpop.f32.mrb[0].mxu0
    %v746 = vadd.f32 0.0, %v745
    %v747 = vpop.f32.mrb[0].mxu0
    %v748 = vadd.f32 0.0, %v747
    %v749 = vpop.f32.mrb[0].mxu0
    %v750 = vadd.f32 0.0, %v749
    %751 = vmatprep.mubr.bf16.mxu0 0
    %752 = vmatmul.mubr.bf16.gmra.mrb[0].mxu0 %v403
    %v753 = vpop.f32.mrb[0].mxu0
    %v754 = vadd.f32 0.0, %v753
    %v755 = vpop.f32.mrb[0].mxu0
    %v756 = vadd.f32 0.0, %v755
    %v757 = vpop.f32.mrb[0].mxu0
    %v758 = vadd.f32 0.0, %v757
    %v759 = vpop.f32.mrb[0].mxu0
    %v760 = vadd.f32 0.0, %v759
    %761 = vmatprep.mubr.bf16.mxu0 0
    %762 = vmatmul.mubr.bf16.gmra.mrb[0].mxu0 %v406
    %v763 = vpop.f32.mrb[0].mxu0
    %v764 = vadd.f32 0.0, %v763
    %v765 = vpop.f32.mrb[0].mxu0
    %v766 = vadd.f32 0.0, %v765
    %v767 = vpop.f32.mrb[0].mxu0
    %v768 = vadd.f32 0.0, %v767
    %v769 = vpop.f32.mrb[0].mxu0
    %v770 = vadd.f32 0.0, %v769
    %771 = vmatprep.mubr.bf16.mxu0 0
    %772 = vmatmul.mubr.bf16.gmra.mrb[0].mxu0 %v409
    %v773 = vpop.f32.mrb[0].mxu0
    %v774 = vadd.f32 0.0, %v773
    %v775 = vpop.f32.mrb[0].mxu0
    %v776 = vadd.f32 0.0, %v775
    %v777 = vpop.f32.mrb[0].mxu0
    %v778 = vadd.f32 0.0, %v777
    %v779 = vpop.f32.mrb[0].mxu0
    %v780 = vadd.f32 0.0, %v779
    %781 = vmatprep.mubr.bf16.mxu0 0
    %782 = vmatmul.mubr.bf16.gmra.mrb[0].mxu0 %v412
    %v783 = vpop.f32.mrb[0].mxu0
    %v784 = vadd.f32 0.0, %v783
    %v785 = vpop.f32.mrb[0].mxu0
    %v786 = vadd.f32 0.0, %v785
    %v787 = vpop.f32.mrb[0].mxu0
    %v788 = vadd.f32 0.0, %v787
    %v789 = vpop.f32.mrb[0].mxu0
    %v790 = vadd.f32 0.0, %v789
    %791 = vdwg.mxu0
    %792 = vmatprep.subr.bf16.mxu0 %v425
    %793 = vmatpush1.bf16.msra.mxu0 %v422
    %794 = vmatprep.subr.bf16.mxu0 0
    %795 = vmatpush1.bf16.msra.mxu0 0
    %796 = vmatprep.subr.bf16.mxu0 0
    %797 = vmatpush1.bf16.msra.mxu0 0
    %798 = vmatprep.subr.bf16.mxu0 0
    %799 = vmatpush1.bf16.msra.mxu0 0
    %800 = vmatprep.subr.bf16.mxu0 0
    %801 = vmatpush1.bf16.msra.mxu0 0
    %802 = vmatprep.subr.bf16.mxu0 0
    %803 = vmatpush1.bf16.msra.mxu0 0
    %804 = vmatprep.subr.bf16.mxu0 0
    %805 = vmatpush1.bf16.msra.mxu0 0
    %806 = vmatprep.subr.bf16.mxu0 0
    %807 = vmatpush1.bf16.msra.mxu0 0
    %808 = vmatprep.subr.bf16.mxu0 0
    %809 = vmatpush1.bf16.msra.mxu0 0
    %810 = vmatprep.subr.bf16.mxu0 0
    %811 = vmatpush1.bf16.msra.mxu0 0
    %812 = vmatprep.subr.bf16.mxu0 0
    %813 = vmatpush1.bf16.msra.mxu0 0
    %814 = vmatprep.subr.bf16.mxu0 0
    %815 = vmatpush1.bf16.msra.mxu0 0
    %816 = vmatprep.subr.bf16.mxu0 0
    %817 = vmatpush1.bf16.msra.mxu0 0
    %818 = vmatprep.subr.bf16.mxu0 0
    %819 = vmatpush1.bf16.msra.mxu0 0
    %820 = vmatprep.subr.bf16.mxu0 0
    %821 = vmatpush1.bf16.msra.mxu0 0
    %822 = vmatprep.subr.bf16.mxu0 0
    %823 = vmatpush1.bf16.msra.mxu0 0
    %824 = vmatprep.mubr.bf16.mxu0 0
    %825 = vmatmul.mubr.bf16.gmra.mrb[0].mxu0 %v319
    %v826 = vpop.f32.mrb[0].mxu0
    %v827 = vadd.f32 0.0, %v826
    %v828 = vpop.f32.mrb[0].mxu0
    %v829 = vadd.f32 0.0, %v828
    %v830 = vpop.f32.mrb[0].mxu0
    %v831 = vadd.f32 0.0, %v830
    %v832 = vpop.f32.mrb[0].mxu0
    %v833 = vadd.f32 0.0, %v832
    %834 = vmatprep.mubr.bf16.mxu0 0
    %835 = vmatmul.mubr.bf16.gmra.mrb[0].mxu0 %v322
    %v836 = vpop.f32.mrb[0].mxu0
    %v837 = vadd.f32 0.0, %v836
    %v838 = vpop.f32.mrb[0].mxu0
    %v839 = vadd.f32 0.0, %v838
    %v840 = vpop.f32.mrb[0].mxu0
    %v841 = vadd.f32 0.0, %v840
    %v842 = vpop.f32.mrb[0].mxu0
    %v843 = vadd.f32 0.0, %v842
    %844 = vmatprep.mubr.bf16.mxu0 0
    %845 = vmatmul.mubr.bf16.gmra.mrb[0].mxu0 %v325
    %v846 = vpop.f32.mrb[0].mxu0
    %v847 = vadd.f32 0.0, %v846
    %v848 = vpop.f32.mrb[0].mxu0
    %v849 = vadd.f32 0.0, %v848
    %v850 = vpop.f32.mrb[0].mxu0
    %v851 = vadd.f32 0.0, %v850
    %v852 = vpop.f32.mrb[0].mxu0
    %v853 = vadd.f32 0.0, %v852
    %854 = vmatprep.mubr.bf16.mxu0 0
    %855 = vmatmul.mubr.bf16.gmra.mrb[0].mxu0 %v328
    %v856 = vpop.f32.mrb[0].mxu0
    %v857 = vadd.f32 0.0, %v856
    %v858 = vpop.f32.mrb[0].mxu0
    %v859 = vadd.f32 0.0, %v858
    %v860 = vpop.f32.mrb[0].mxu0
    %v861 = vadd.f32 0.0, %v860
    %v862 = vpop.f32.mrb[0].mxu0
    %v863 = vadd.f32 0.0, %v862
    %864 = vmatprep.mubr.bf16.mxu0 0
    %865 = vmatmul.mubr.bf16.gmra.mrb[0].mxu0 %v331
    %v866 = vpop.f32.mrb[0].mxu0
    %v867 = vadd.f32 0.0, %v866
    %v868 = vpop.f32.mrb[0].mxu0
    %v869 = vadd.f32 0.0, %v868
    %v870 = vpop.f32.mrb[0].mxu0
    %v871 = vadd.f32 0.0, %v870
    %v872 = vpop.f32.mrb[0].mxu0
    %v873 = vadd.f32 0.0, %v872
    %874 = vmatprep.mubr.bf16.mxu0 0
    %875 = vmatmul.mubr.bf16.gmra.mrb[0].mxu0 %v334
    %v876 = vpop.f32.mrb[0].mxu0
    %v877 = vadd.f32 0.0, %v876
    %v878 = vpop.f32.mrb[0].mxu0
    %v879 = vadd.f32 0.0, %v878
    %v880 = vpop.f32.mrb[0].mxu0
    %v881 = vadd.f32 0.0, %v880
    %v882 = vpop.f32.mrb[0].mxu0
    %v883 = vadd.f32 0.0, %v882
    %884 = vmatprep.mubr.bf16.mxu0 0
    %885 = vmatmul.mubr.bf16.gmra.mrb[0].mxu0 %v337
    %v886 = vpop.f32.mrb[0].mxu0
    %v887 = vadd.f32 0.0, %v886
    %v888 = vpop.f32.mrb[0].mxu0
    %v889 = vadd.f32 0.0, %v888
    %v890 = vpop.f32.mrb[0].mxu0
    %v891 = vadd.f32 0.0, %v890
    %v892 = vpop.f32.mrb[0].mxu0
    %v893 = vadd.f32 0.0, %v892
    %894 = vmatprep.mubr.bf16.mxu0 0
    %895 = vmatmul.mubr.bf16.gmra.mrb[0].mxu0 %v340
    %v896 = vpop.f32.mrb[0].mxu0
    %v897 = vadd.f32 0.0, %v896
    %v898 = vpop.f32.mrb[0].mxu0
    %v899 = vadd.f32 0.0, %v898
    %v900 = vpop.f32.mrb[0].mxu0
    %v901 = vadd.f32 0.0, %v900
    %v902 = vpop.f32.mrb[0].mxu0
    %v903 = vadd.f32 0.0, %v902
    %904 = vmatprep.mubr.bf16.mxu0 0
    %905 = vmatmul.mubr.bf16.gmra.mrb[0].mxu0 %v343
    %v906 = vpop.f32.mrb[0].mxu0
    %v907 = vadd.f32 0.0, %v906
    %v908 = vpop.f32.mrb[0].mxu0
    %v909 = vadd.f32 0.0, %v908
    %v910 = vpop.f32.mrb[0].mxu0
    %v911 = vadd.f32 0.0, %v910
    %v912 = vpop.f32.mrb[0].mxu0
    %v913 = vadd.f32 0.0, %v912
    %914 = vmatprep.mubr.bf16.mxu0 0
    %915 = vmatmul.mubr.bf16.gmra.mrb[0].mxu0 %v346
    %v916 = vpop.f32.mrb[0].mxu0
    %v917 = vadd.f32 0.0, %v916
    %v918 = vpop.f32.mrb[0].mxu0
    %v919 = vadd.f32 0.0, %v918
    %v920 = vpop.f32.mrb[0].mxu0
    %v921 = vadd.f32 0.0, %v920
    %v922 = vpop.f32.mrb[0].mxu0
    %v923 = vadd.f32 0.0, %v922
    %924 = vmatprep.mubr.bf16.mxu0 0
    %925 = vmatmul.mubr.bf16.gmra.mrb[0].mxu0 %v349
    %v926 = vpop.f32.mrb[0].mxu0
    %v927 = vadd.f32 0.0, %v926
    %v928 = vpop.f32.mrb[0].mxu0
    %v929 = vadd.f32 0.0, %v928
    %v930 = vpop.f32.mrb[0].mxu0
    %v931 = vadd.f32 0.0, %v930
    %v932 = vpop.f32.mrb[0].mxu0
    %v933 = vadd.f32 0.0, %v932
    %934 = vmatprep.mubr.bf16.mxu0 0
    %935 = vmatmul.mubr.bf16.gmra.mrb[0].mxu0 %v352
    %v936 = vpop.f32.mrb[0].mxu0
    %v937 = vadd.f32 0.0, %v936
    %v938 = vpop.f32.mrb[0].mxu0
    %v939 = vadd.f32 0.0, %v938
    %v940 = vpop.f32.mrb[0].mxu0
    %v941 = vadd.f32 0.0, %v940
    %v942 = vpop.f32.mrb[0].mxu0
    %v943 = vadd.f32 0.0, %v942
    %944 = vmatprep.mubr.bf16.mxu0 0
    %945 = vmatmul.mubr.bf16.gmra.mrb[0].mxu0 %v355
    %v946 = vpop.f32.mrb[0].mxu0
    %v947 = vadd.f32 0.0, %v946
    %v948 = vpop.f32.mrb[0].mxu0
    %v949 = vadd.f32 0.0, %v948
    %v950 = vpop.f32.mrb[0].mxu0
    %v951 = vadd.f32 0.0, %v950
    %v952 = vpop.f32.mrb[0].mxu0
    %v953 = vadd.f32 0.0, %v952
    %954 = vmatprep.mubr.bf16.mxu0 0
    %955 = vmatmul.mubr.bf16.gmra.mrb[0].mxu0 %v358
    %v956 = vpop.f32.mrb[0].mxu0
    %v957 = vadd.f32 0.0, %v956
    %v958 = vpop.f32.mrb[0].mxu0
    %v959 = vadd.f32 0.0, %v958
    %v960 = vpop.f32.mrb[0].mxu0
    %v961 = vadd.f32 0.0, %v960
    %v962 = vpop.f32.mrb[0].mxu0
    %v963 = vadd.f32 0.0, %v962
    %964 = vmatprep.mubr.bf16.mxu0 0
    %965 = vmatmul.mubr.bf16.gmra.mrb[0].mxu0 %v361
    %v966 = vpop.f32.mrb[0].mxu0
    %v967 = vadd.f32 0.0, %v966
    %v968 = vpop.f32.mrb[0].mxu0
    %v969 = vadd.f32 0.0, %v968
    %v970 = vpop.f32.mrb[0].mxu0
    %v971 = vadd.f32 0.0, %v970
    %v972 = vpop.f32.mrb[0].mxu0
    %v973 = vadd.f32 0.0, %v972
    %974 = vmatprep.mubr.bf16.mxu0 0
    %975 = vmatmul.mubr.bf16.gmra.mrb[0].mxu0 %v364
    %v976 = vpop.f32.mrb[0].mxu0
    %v977 = vadd.f32 0.0, %v976
    %v978 = vpop.f32.mrb[0].mxu0
    %v979 = vadd.f32 0.0, %v978
    %v980 = vpop.f32.mrb[0].mxu0
    %v981 = vadd.f32 0.0, %v980
    %v982 = vpop.f32.mrb[0].mxu0
    %v983 = vadd.f32 0.0, %v982
    %984 = vmatprep.mubr.bf16.mxu0 0
    %985 = vmatmul.mubr.bf16.gmra.mrb[0].mxu0 %v367
    %v986 = vpop.f32.mrb[0].mxu0
    %v987 = vadd.f32 0.0, %v986
    %v988 = vpop.f32.mrb[0].mxu0
    %v989 = vadd.f32 0.0, %v988
    %v990 = vpop.f32.mrb[0].mxu0
    %v991 = vadd.f32 0.0, %v990
    %v992 = vpop.f32.mrb[0].mxu0
    %v993 = vadd.f32 0.0, %v992
    %994 = vmatprep.mubr.bf16.mxu0 0
    %995 = vmatmul.mubr.bf16.gmra.mrb[0].mxu0 %v370
    %v996 = vpop.f32.mrb[0].mxu0
    %v997 = vadd.f32 0.0, %v996
    %v998 = vpop.f32.mrb[0].mxu0
    %v999 = vadd.f32 0.0, %v998
    %v1000 = vpop.f32.mrb[0].mxu0
    %v1001 = vadd.f32 0.0, %v1000
    %v1002 = vpop.f32.mrb[0].mxu0
    %v1003 = vadd.f32 0.0, %v1002
    %1004 = vmatprep.mubr.bf16.mxu0 0
    %1005 = vmatmul.mubr.bf16.gmra.mrb[0].mxu0 %v373
    %v1006 = vpop.f32.mrb[0].mxu0
    %v1007 = vadd.f32 0.0, %v1006
    %v1008 = vpop.f32.mrb[0].mxu0
    %v1009 = vadd.f32 0.0, %v1008
    %v1010 = vpop.f32.mrb[0].mxu0
    %v1011 = vadd.f32 0.0, %v1010
    %v1012 = vpop.f32.mrb[0].mxu0
    %v1013 = vadd.f32 0.0, %v1012
    %1014 = vmatprep.mubr.bf16.mxu0 0
    %1015 = vmatmul.mubr.bf16.gmra.mrb[0].mxu0 %v376
    %v1016 = vpop.f32.mrb[0].mxu0
    %v1017 = vadd.f32 0.0, %v1016
    %v1018 = vpop.f32.mrb[0].mxu0
    %v1019 = vadd.f32 0.0, %v1018
    %v1020 = vpop.f32.mrb[0].mxu0
    %v1021 = vadd.f32 0.0, %v1020
    %v1022 = vpop.f32.mrb[0].mxu0
    %v1023 = vadd.f32 0.0, %v1022
    %1024 = vmatprep.mubr.bf16.mxu0 0
    %1025 = vmatmul.mubr.bf16.gmra.mrb[0].mxu0 %v379
    %v1026 = vpop.f32.mrb[0].mxu0
    %v1027 = vadd.f32 0.0, %v1026
    %v1028 = vpop.f32.mrb[0].mxu0
    %v1029 = vadd.f32 0.0, %v1028
    %v1030 = vpop.f32.mrb[0].mxu0
    %v1031 = vadd.f32 0.0, %v1030
    %v1032 = vpop.f32.mrb[0].mxu0
    %v1033 = vadd.f32 0.0, %v1032
    %1034 = vmatprep.mubr.bf16.mxu0 0
    %1035 = vmatmul.mubr.bf16.gmra.mrb[0].mxu0 %v382
    %v1036 = vpop.f32.mrb[0].mxu0
    %v1037 = vadd.f32 0.0, %v1036
    %v1038 = vpop.f32.mrb[0].mxu0
    %v1039 = vadd.f32 0.0, %v1038
    %v1040 = vpop.f32.mrb[0].mxu0
    %v1041 = vadd.f32 0.0, %v1040
    %v1042 = vpop.f32.mrb[0].mxu0
    %v1043 = vadd.f32 0.0, %v1042
    %1044 = vmatprep.mubr.bf16.mxu0 0
    %1045 = vmatmul.mubr.bf16.gmra.mrb[0].mxu0 %v385
    %v1046 = vpop.f32.mrb[0].mxu0
    %v1047 = vadd.f32 0.0, %v1046
    %v1048 = vpop.f32.mrb[0].mxu0
    %v1049 = vadd.f32 0.0, %v1048
    %v1050 = vpop.f32.mrb[0].mxu0
    %v1051 = vadd.f32 0.0, %v1050
    %v1052 = vpop.f32.mrb[0].mxu0
    %v1053 = vadd.f32 0.0, %v1052
    %1054 = vmatprep.mubr.bf16.mxu0 0
    %1055 = vmatmul.mubr.bf16.gmra.mrb[0].mxu0 %v388
    %v1056 = vpop.f32.mrb[0].mxu0
    %v1057 = vadd.f32 0.0, %v1056
    %v1058 = vpop.f32.mrb[0].mxu0
    %v1059 = vadd.f32 0.0, %v1058
    %v1060 = vpop.f32.mrb[0].mxu0
    %v1061 = vadd.f32 0.0, %v1060
    %v1062 = vpop.f32.mrb[0].mxu0
    %v1063 = vadd.f32 0.0, %v1062
    %1064 = vmatprep.mubr.bf16.mxu0 0
    %1065 = vmatmul.mubr.bf16.gmra.mrb[0].mxu0 %v391
    %v1066 = vpop.f32.mrb[0].mxu0
    %v1067 = vadd.f32 0.0, %v1066
    %v1068 = vpop.f32.mrb[0].mxu0
    %v1069 = vadd.f32 0.0, %v1068
    %v1070 = vpop.f32.mrb[0].mxu0
    %v1071 = vadd.f32 0.0, %v1070
    %v1072 = vpop.f32.mrb[0].mxu0
    %v1073 = vadd.f32 0.0, %v1072
    %1074 = vmatprep.mubr.bf16.mxu0 0
    %1075 = vmatmul.mubr.bf16.gmra.mrb[0].mxu0 %v394
    %v1076 = vpop.f32.mrb[0].mxu0
    %v1077 = vadd.f32 0.0, %v1076
    %v1078 = vpop.f32.mrb[0].mxu0
    %v1079 = vadd.f32 0.0, %v1078
    %v1080 = vpop.f32.mrb[0].mxu0
    %v1081 = vadd.f32 0.0, %v1080
    %v1082 = vpop.f32.mrb[0].mxu0
    %v1083 = vadd.f32 0.0, %v1082
    %1084 = vmatprep.mubr.bf16.mxu0 0
    %1085 = vmatmul.mubr.bf16.gmra.mrb[0].mxu0 %v397
    %v1086 = vpop.f32.mrb[0].mxu0
    %v1087 = vadd.f32 0.0, %v1086
    %v1088 = vpop.f32.mrb[0].mxu0
    %v1089 = vadd.f32 0.0, %v1088
    %v1090 = vpop.f32.mrb[0].mxu0
    %v1091 = vadd.f32 0.0, %v1090
    %v1092 = vpop.f32.mrb[0].mxu0
    %v1093 = vadd.f32 0.0, %v1092
    %1094 = vmatprep.mubr.bf16.mxu0 0
    %1095 = vmatmul.mubr.bf16.gmra.mrb[0].mxu0 %v400
    %v1096 = vpop.f32.mrb[0].mxu0
    %v1097 = vadd.f32 0.0, %v1096
    %v1098 = vpop.f32.mrb[0].mxu0
    %v1099 = vadd.f32 0.0, %v1098
    %v1100 = vpop.f32.mrb[0].mxu0
    %v1101 = vadd.f32 0.0, %v1100
    %v1102 = vpop.f32.mrb[0].mxu0
    %v1103 = vadd.f32 0.0, %v1102
    %1104 = vmatprep.mubr.bf16.mxu0 0
    %1105 = vmatmul.mubr.bf16.gmra.mrb[0].mxu0 %v403
    %v1106 = vpop.f32.mrb[0].mxu0
    %v1107 = vadd.f32 0.0, %v1106
    %v1108 = vpop.f32.mrb[0].mxu0
    %v1109 = vadd.f32 0.0, %v1108
    %v1110 = vpop.f32.mrb[0].mxu0
    %v1111 = vadd.f32 0.0, %v1110
    %v1112 = vpop.f32.mrb[0].mxu0
    %v1113 = vadd.f32 0.0, %v1112
    %1114 = vmatprep.mubr.bf16.mxu0 0
    %1115 = vmatmul.mubr.bf16.gmra.mrb[0].mxu0 %v406
    %v1116 = vpop.f32.mrb[0].mxu0
    %v1117 = vadd.f32 0.0, %v1116
    %v1118 = vpop.f32.mrb[0].mxu0
    %v1119 = vadd.f32 0.0, %v1118
    %v1120 = vpop.f32.mrb[0].mxu0
    %v1121 = vadd.f32 0.0, %v1120
    %v1122 = vpop.f32.mrb[0].mxu0
    %v1123 = vadd.f32 0.0, %v1122
    %1124 = vmatprep.mubr.bf16.mxu0 0
    %1125 = vmatmul.mubr.bf16.gmra.mrb[0].mxu0 %v409
    %v1126 = vpop.f32.mrb[0].mxu0
    %v1127 = vadd.f32 0.0, %v1126
    %v1128 = vpop.f32.mrb[0].mxu0
    %v1129 = vadd.f32 0.0, %v1128
    %v1130 = vpop.f32.mrb[0].mxu0
    %v1131 = vadd.f32 0.0, %v1130
    %v1132 = vpop.f32.mrb[0].mxu0
    %v1133 = vadd.f32 0.0, %v1132
    %1134 = vmatprep.mubr.bf16.mxu0 0
    %1135 = vmatmul.mubr.bf16.gmra.mrb[0].mxu0 %v412
    %v1136 = vpop.f32.mrb[0].mxu0
    %v1137 = vadd.f32 0.0, %v1136
    %v1138 = vpop.f32.mrb[0].mxu0
    %v1139 = vadd.f32 0.0, %v1138
    %v1140 = vpop.f32.mrb[0].mxu0
    %v1141 = vadd.f32 0.0, %v1140
    %v1142 = vpop.f32.mrb[0].mxu0
    %v1143 = vadd.f32 0.0, %v1142
    %1144 = vdwg.mxu0
    %1145 = vmatprep.subr.bf16.mxu0 %v431
    %1146 = vmatpush1.bf16.msra.mxu0 %v428
    %1147 = vmatprep.subr.bf16.mxu0 0
    %1148 = vmatpush1.bf16.msra.mxu0 0
    %1149 = vmatprep.subr.bf16.mxu0 0
    %1150 = vmatpush1.bf16.msra.mxu0 0
    %1151 = vmatprep.subr.bf16.mxu0 0
    %1152 = vmatpush1.bf16.msra.mxu0 0
    %1153 = vmatprep.subr.bf16.mxu0 0
    %1154 = vmatpush1.bf16.msra.mxu0 0
    %1155 = vmatprep.subr.bf16.mxu0 0
    %1156 = vmatpush1.bf16.msra.mxu0 0
    %1157 = vmatprep.subr.bf16.mxu0 0
    %1158 = vmatpush1.bf16.msra.mxu0 0
    %1159 = vmatprep.subr.bf16.mxu0 0
    %1160 = vmatpush1.bf16.msra.mxu0 0
    %1161 = vmatprep.subr.bf16.mxu0 0
    %1162 = vmatpush1.bf16.msra.mxu0 0
    %1163 = vmatprep.subr.bf16.mxu0 0
    %1164 = vmatpush1.bf16.msra.mxu0 0
    %1165 = vmatprep.subr.bf16.mxu0 0
    %1166 = vmatpush1.bf16.msra.mxu0 0
    %1167 = vmatprep.subr.bf16.mxu0 0
    %1168 = vmatpush1.bf16.msra.mxu0 0
    %1169 = vmatprep.subr.bf16.mxu0 0
    %1170 = vmatpush1.bf16.msra.mxu0 0
    %1171 = vmatprep.subr.bf16.mxu0 0
    %1172 = vmatpush1.bf16.msra.mxu0 0
    %1173 = vmatprep.subr.bf16.mxu0 0
    %1174 = vmatpush1.bf16.msra.mxu0 0
    %1175 = vmatprep.subr.bf16.mxu0 0
    %1176 = vmatpush1.bf16.msra.mxu0 0
    %1177 = vmatprep.mubr.bf16.mxu0 0
    %1178 = vmatmul.mubr.bf16.gmra.mrb[0].mxu0 %v319
    %v1179 = vpop.f32.mrb[0].mxu0
    %v1180 = vadd.f32 0.0, %v1179
    %v1181 = vpop.f32.mrb[0].mxu0
    %v1182 = vadd.f32 0.0, %v1181
    %v1183 = vpop.f32.mrb[0].mxu0
    %v1184 = vadd.f32 0.0, %v1183
    %v1185 = vpop.f32.mrb[0].mxu0
    %v1186 = vadd.f32 0.0, %v1185
    %1187 = vmatprep.mubr.bf16.mxu0 0
    %1188 = vmatmul.mubr.bf16.gmra.mrb[0].mxu0 %v322
    %v1189 = vpop.f32.mrb[0].mxu0
    %v1190 = vadd.f32 0.0, %v1189
    %v1191 = vpop.f32.mrb[0].mxu0
    %v1192 = vadd.f32 0.0, %v1191
    %v1193 = vpop.f32.mrb[0].mxu0
    %v1194 = vadd.f32 0.0, %v1193
    %v1195 = vpop.f32.mrb[0].mxu0
    %v1196 = vadd.f32 0.0, %v1195
    %1197 = vmatprep.mubr.bf16.mxu0 0
    %1198 = vmatmul.mubr.bf16.gmra.mrb[0].mxu0 %v325
    %v1199 = vpop.f32.mrb[0].mxu0
    %v1200 = vadd.f32 0.0, %v1199
    %v1201 = vpop.f32.mrb[0].mxu0
    %v1202 = vadd.f32 0.0, %v1201
    %v1203 = vpop.f32.mrb[0].mxu0
    %v1204 = vadd.f32 0.0, %v1203
    %v1205 = vpop.f32.mrb[0].mxu0
    %v1206 = vadd.f32 0.0, %v1205
    %1207 = vmatprep.mubr.bf16.mxu0 0
    %1208 = vmatmul.mubr.bf16.gmra.mrb[0].mxu0 %v328
    %v1209 = vpop.f32.mrb[0].mxu0
    %v1210 = vadd.f32 0.0, %v1209
    %v1211 = vpop.f32.mrb[0].mxu0
    %v1212 = vadd.f32 0.0, %v1211
    %v1213 = vpop.f32.mrb[0].mxu0
    %v1214 = vadd.f32 0.0, %v1213
    %v1215 = vpop.f32.mrb[0].mxu0
    %v1216 = vadd.f32 0.0, %v1215
    %1217 = vmatprep.mubr.bf16.mxu0 0
    %1218 = vmatmul.mubr.bf16.gmra.mrb[0].mxu0 %v331
    %v1219 = vpop.f32.mrb[0].mxu0
    %v1220 = vadd.f32 0.0, %v1219
    %v1221 = vpop.f32.mrb[0].mxu0
    %v1222 = vadd.f32 0.0, %v1221
    %v1223 = vpop.f32.mrb[0].mxu0
    %v1224 = vadd.f32 0.0, %v1223
    %v1225 = vpop.f32.mrb[0].mxu0
    %v1226 = vadd.f32 0.0, %v1225
    %1227 = vmatprep.mubr.bf16.mxu0 0
    %1228 = vmatmul.mubr.bf16.gmra.mrb[0].mxu0 %v334
    %v1229 = vpop.f32.mrb[0].mxu0
    %v1230 = vadd.f32 0.0, %v1229
    %v1231 = vpop.f32.mrb[0].mxu0
    %v1232 = vadd.f32 0.0, %v1231
    %v1233 = vpop.f32.mrb[0].mxu0
    %v1234 = vadd.f32 0.0, %v1233
    %v1235 = vpop.f32.mrb[0].mxu0
    %v1236 = vadd.f32 0.0, %v1235
    %1237 = vmatprep.mubr.bf16.mxu0 0
    %1238 = vmatmul.mubr.bf16.gmra.mrb[0].mxu0 %v337
    %v1239 = vpop.f32.mrb[0].mxu0
    %v1240 = vadd.f32 0.0, %v1239
    %v1241 = vpop.f32.mrb[0].mxu0
    %v1242 = vadd.f32 0.0, %v1241
    %v1243 = vpop.f32.mrb[0].mxu0
    %v1244 = vadd.f32 0.0, %v1243
    %v1245 = vpop.f32.mrb[0].mxu0
    %v1246 = vadd.f32 0.0, %v1245
    %1247 = vmatprep.mubr.bf16.mxu0 0
    %1248 = vmatmul.mubr.bf16.gmra.mrb[0].mxu0 %v340
    %v1249 = vpop.f32.mrb[0].mxu0
    %v1250 = vadd.f32 0.0, %v1249
    %v1251 = vpop.f32.mrb[0].mxu0
    %v1252 = vadd.f32 0.0, %v1251
    %v1253 = vpop.f32.mrb[0].mxu0
    %v1254 = vadd.f32 0.0, %v1253
    %v1255 = vpop.f32.mrb[0].mxu0
    %v1256 = vadd.f32 0.0, %v1255
    %1257 = vmatprep.mubr.bf16.mxu0 0
    %1258 = vmatmul.mubr.bf16.gmra.mrb[0].mxu0 %v343
    %v1259 = vpop.f32.mrb[0].mxu0
    %v1260 = vadd.f32 0.0, %v1259
    %v1261 = vpop.f32.mrb[0].mxu0
    %v1262 = vadd.f32 0.0, %v1261
    %v1263 = vpop.f32.mrb[0].mxu0
    %v1264 = vadd.f32 0.0, %v1263
    %v1265 = vpop.f32.mrb[0].mxu0
    %v1266 = vadd.f32 0.0, %v1265
    %1267 = vmatprep.mubr.bf16.mxu0 0
    %1268 = vmatmul.mubr.bf16.gmra.mrb[0].mxu0 %v346
    %v1269 = vpop.f32.mrb[0].mxu0
    %v1270 = vadd.f32 0.0, %v1269
    %v1271 = vpop.f32.mrb[0].mxu0
    %v1272 = vadd.f32 0.0, %v1271
    %v1273 = vpop.f32.mrb[0].mxu0
    %v1274 = vadd.f32 0.0, %v1273
    %v1275 = vpop.f32.mrb[0].mxu0
    %v1276 = vadd.f32 0.0, %v1275
    %1277 = vmatprep.mubr.bf16.mxu0 0
    %1278 = vmatmul.mubr.bf16.gmra.mrb[0].mxu0 %v349
    %v1279 = vpop.f32.mrb[0].mxu0
    %v1280 = vadd.f32 0.0, %v1279
    %v1281 = vpop.f32.mrb[0].mxu0
    %v1282 = vadd.f32 0.0, %v1281
    %v1283 = vpop.f32.mrb[0].mxu0
    %v1284 = vadd.f32 0.0, %v1283
    %v1285 = vpop.f32.mrb[0].mxu0
    %v1286 = vadd.f32 0.0, %v1285
    %1287 = vmatprep.mubr.bf16.mxu0 0
    %1288 = vmatmul.mubr.bf16.gmra.mrb[0].mxu0 %v352
    %v1289 = vpop.f32.mrb[0].mxu0
    %v1290 = vadd.f32 0.0, %v1289
    %v1291 = vpop.f32.mrb[0].mxu0
    %v1292 = vadd.f32 0.0, %v1291
    %v1293 = vpop.f32.mrb[0].mxu0
    %v1294 = vadd.f32 0.0, %v1293
    %v1295 = vpop.f32.mrb[0].mxu0
    %v1296 = vadd.f32 0.0, %v1295
    %1297 = vmatprep.mubr.bf16.mxu0 0
    %1298 = vmatmul.mubr.bf16.gmra.mrb[0].mxu0 %v355
    %v1299 = vpop.f32.mrb[0].mxu0
    %v1300 = vadd.f32 0.0, %v1299
    %v1301 = vpop.f32.mrb[0].mxu0
    %v1302 = vadd.f32 0.0, %v1301
    %v1303 = vpop.f32.mrb[0].mxu0
    %v1304 = vadd.f32 0.0, %v1303
    %v1305 = vpop.f32.mrb[0].mxu0
    %v1306 = vadd.f32 0.0, %v1305
    %1307 = vmatprep.mubr.bf16.mxu0 0
    %1308 = vmatmul.mubr.bf16.gmra.mrb[0].mxu0 %v358
    %v1309 = vpop.f32.mrb[0].mxu0
    %v1310 = vadd.f32 0.0, %v1309
    %v1311 = vpop.f32.mrb[0].mxu0
    %v1312 = vadd.f32 0.0, %v1311
    %v1313 = vpop.f32.mrb[0].mxu0
    %v1314 = vadd.f32 0.0, %v1313
    %v1315 = vpop.f32.mrb[0].mxu0
    %v1316 = vadd.f32 0.0, %v1315
    %1317 = vmatprep.mubr.bf16.mxu0 0
    %1318 = vmatmul.mubr.bf16.gmra.mrb[0].mxu0 %v361
    %v1319 = vpop.f32.mrb[0].mxu0
    %v1320 = vadd.f32 0.0, %v1319
    %v1321 = vpop.f32.mrb[0].mxu0
    %v1322 = vadd.f32 0.0, %v1321
    %v1323 = vpop.f32.mrb[0].mxu0
    %v1324 = vadd.f32 0.0, %v1323
    %v1325 = vpop.f32.mrb[0].mxu0
    %v1326 = vadd.f32 0.0, %v1325
    %1327 = vmatprep.mubr.bf16.mxu0 0
    %1328 = vmatmul.mubr.bf16.gmra.mrb[0].mxu0 %v364
    %v1329 = vpop.f32.mrb[0].mxu0
    %v1330 = vadd.f32 0.0, %v1329
    %v1331 = vpop.f32.mrb[0].mxu0
    %v1332 = vadd.f32 0.0, %v1331
    %v1333 = vpop.f32.mrb[0].mxu0
    %v1334 = vadd.f32 0.0, %v1333
    %v1335 = vpop.f32.mrb[0].mxu0
    %v1336 = vadd.f32 0.0, %v1335
    %1337 = vmatprep.mubr.bf16.mxu0 0
    %1338 = vmatmul.mubr.bf16.gmra.mrb[0].mxu0 %v367
    %v1339 = vpop.f32.mrb[0].mxu0
    %v1340 = vadd.f32 0.0, %v1339
    %v1341 = vpop.f32.mrb[0].mxu0
    %v1342 = vadd.f32 0.0, %v1341
    %v1343 = vpop.f32.mrb[0].mxu0
    %v1344 = vadd.f32 0.0, %v1343
    %v1345 = vpop.f32.mrb[0].mxu0
    %v1346 = vadd.f32 0.0, %v1345
    %1347 = vmatprep.mubr.bf16.mxu0 0
    %1348 = vmatmul.mubr.bf16.gmra.mrb[0].mxu0 %v370
    %v1349 = vpop.f32.mrb[0].mxu0
    %v1350 = vadd.f32 0.0, %v1349
    %v1351 = vpop.f32.mrb[0].mxu0
    %v1352 = vadd.f32 0.0, %v1351
    %v1353 = vpop.f32.mrb[0].mxu0
    %v1354 = vadd.f32 0.0, %v1353
    %v1355 = vpop.f32.mrb[0].mxu0
    %v1356 = vadd.f32 0.0, %v1355
    %1357 = vmatprep.mubr.bf16.mxu0 0
    %1358 = vmatmul.mubr.bf16.gmra.mrb[0].mxu0 %v373
    %v1359 = vpop.f32.mrb[0].mxu0
    %v1360 = vadd.f32 0.0, %v1359
    %v1361 = vpop.f32.mrb[0].mxu0
    %v1362 = vadd.f32 0.0, %v1361
    %v1363 = vpop.f32.mrb[0].mxu0
    %v1364 = vadd.f32 0.0, %v1363
    %v1365 = vpop.f32.mrb[0].mxu0
    %v1366 = vadd.f32 0.0, %v1365
    %1367 = vmatprep.mubr.bf16.mxu0 0
    %1368 = vmatmul.mubr.bf16.gmra.mrb[0].mxu0 %v376
    %v1369 = vpop.f32.mrb[0].mxu0
    %v1370 = vadd.f32 0.0, %v1369
    %v1371 = vpop.f32.mrb[0].mxu0
    %v1372 = vadd.f32 0.0, %v1371
    %v1373 = vpop.f32.mrb[0].mxu0
    %v1374 = vadd.f32 0.0, %v1373
    %v1375 = vpop.f32.mrb[0].mxu0
    %v1376 = vadd.f32 0.0, %v1375
    %1377 = vmatprep.mubr.bf16.mxu0 0
    %1378 = vmatmul.mubr.bf16.gmra.mrb[0].mxu0 %v379
    %v1379 = vpop.f32.mrb[0].mxu0
    %v1380 = vadd.f32 0.0, %v1379
    %v1381 = vpop.f32.mrb[0].mxu0
    %v1382 = vadd.f32 0.0, %v1381
    %v1383 = vpop.f32.mrb[0].mxu0
    %v1384 = vadd.f32 0.0, %v1383
    %v1385 = vpop.f32.mrb[0].mxu0
    %v1386 = vadd.f32 0.0, %v1385
    %1387 = vmatprep.mubr.bf16.mxu0 0
    %1388 = vmatmul.mubr.bf16.gmra.mrb[0].mxu0 %v382
    %v1389 = vpop.f32.mrb[0].mxu0
    %v1390 = vadd.f32 0.0, %v1389
    %v1391 = vpop.f32.mrb[0].mxu0
    %v1392 = vadd.f32 0.0, %v1391
    %v1393 = vpop.f32.mrb[0].mxu0
    %v1394 = vadd.f32 0.0, %v1393
    %v1395 = vpop.f32.mrb[0].mxu0
    %v1396 = vadd.f32 0.0, %v1395
    %1397 = vmatprep.mubr.bf16.mxu0 0
    %1398 = vmatmul.mubr.bf16.gmra.mrb[0].mxu0 %v385
    %v1399 = vpop.f32.mrb[0].mxu0
    %v1400 = vadd.f32 0.0, %v1399
    %v1401 = vpop.f32.mrb[0].mxu0
    %v1402 = vadd.f32 0.0, %v1401
    %v1403 = vpop.f32.mrb[0].mxu0
    %v1404 = vadd.f32 0.0, %v1403
    %v1405 = vpop.f32.mrb[0].mxu0
    %v1406 = vadd.f32 0.0, %v1405
    %1407 = vmatprep.mubr.bf16.mxu0 0
    %1408 = vmatmul.mubr.bf16.gmra.mrb[0].mxu0 %v388
    %v1409 = vpop.f32.mrb[0].mxu0
    %v1410 = vadd.f32 0.0, %v1409
    %v1411 = vpop.f32.mrb[0].mxu0
    %v1412 = vadd.f32 0.0, %v1411
    %v1413 = vpop.f32.mrb[0].mxu0
    %v1414 = vadd.f32 0.0, %v1413
    %v1415 = vpop.f32.mrb[0].mxu0
    %v1416 = vadd.f32 0.0, %v1415
    %1417 = vmatprep.mubr.bf16.mxu0 0
    %1418 = vmatmul.mubr.bf16.gmra.mrb[0].mxu0 %v391
    %v1419 = vpop.f32.mrb[0].mxu0
    %v1420 = vadd.f32 0.0, %v1419
    %v1421 = vpop.f32.mrb[0].mxu0
    %v1422 = vadd.f32 0.0, %v1421
    %v1423 = vpop.f32.mrb[0].mxu0
    %v1424 = vadd.f32 0.0, %v1423
    %v1425 = vpop.f32.mrb[0].mxu0
    %v1426 = vadd.f32 0.0, %v1425
    %1427 = vmatprep.mubr.bf16.mxu0 0
    %1428 = vmatmul.mubr.bf16.gmra.mrb[0].mxu0 %v394
    %v1429 = vpop.f32.mrb[0].mxu0
    %v1430 = vadd.f32 0.0, %v1429
    %v1431 = vpop.f32.mrb[0].mxu0
    %v1432 = vadd.f32 0.0, %v1431
    %v1433 = vpop.f32.mrb[0].mxu0
    %v1434 = vadd.f32 0.0, %v1433
    %v1435 = vpop.f32.mrb[0].mxu0
    %v1436 = vadd.f32 0.0, %v1435
    %1437 = vmatprep.mubr.bf16.mxu0 0
    %1438 = vmatmul.mubr.bf16.gmra.mrb[0].mxu0 %v397
    %v1439 = vpop.f32.mrb[0].mxu0
    %v1440 = vadd.f32 0.0, %v1439
    %v1441 = vpop.f32.mrb[0].mxu0
    %v1442 = vadd.f32 0.0, %v1441
    %v1443 = vpop.f32.mrb[0].mxu0
    %v1444 = vadd.f32 0.0, %v1443
    %v1445 = vpop.f32.mrb[0].mxu0
    %v1446 = vadd.f32 0.0, %v1445
    %1447 = vmatprep.mubr.bf16.mxu0 0
    %1448 = vmatmul.mubr.bf16.gmra.mrb[0].mxu0 %v400
    %v1449 = vpop.f32.mrb[0].mxu0
    %v1450 = vadd.f32 0.0, %v1449
    %v1451 = vpop.f32.mrb[0].mxu0
    %v1452 = vadd.f32 0.0, %v1451
    %v1453 = vpop.f32.mrb[0].mxu0
    %v1454 = vadd.f32 0.0, %v1453
    %v1455 = vpop.f32.mrb[0].mxu0
    %v1456 = vadd.f32 0.0, %v1455
    %1457 = vmatprep.mubr.bf16.mxu0 0
    %1458 = vmatmul.mubr.bf16.gmra.mrb[0].mxu0 %v403
    %v1459 = vpop.f32.mrb[0].mxu0
    %v1460 = vadd.f32 0.0, %v1459
    %v1461 = vpop.f32.mrb[0].mxu0
    %v1462 = vadd.f32 0.0, %v1461
    %v1463 = vpop.f32.mrb[0].mxu0
    %v1464 = vadd.f32 0.0, %v1463
    %v1465 = vpop.f32.mrb[0].mxu0
    %v1466 = vadd.f32 0.0, %v1465
    %1467 = vmatprep.mubr.bf16.mxu0 0
    %1468 = vmatmul.mubr.bf16.gmra.mrb[0].mxu0 %v406
    %v1469 = vpop.f32.mrb[0].mxu0
    %v1470 = vadd.f32 0.0, %v1469
    %v1471 = vpop.f32.mrb[0].mxu0
    %v1472 = vadd.f32 0.0, %v1471
    %v1473 = vpop.f32.mrb[0].mxu0
    %v1474 = vadd.f32 0.0, %v1473
    %v1475 = vpop.f32.mrb[0].mxu0
    %v1476 = vadd.f32 0.0, %v1475
    %1477 = vmatprep.mubr.bf16.mxu0 0
    %1478 = vmatmul.mubr.bf16.gmra.mrb[0].mxu0 %v409
    %v1479 = vpop.f32.mrb[0].mxu0
    %v1480 = vadd.f32 0.0, %v1479
    %v1481 = vpop.f32.mrb[0].mxu0
    %v1482 = vadd.f32 0.0, %v1481
    %v1483 = vpop.f32.mrb[0].mxu0
    %v1484 = vadd.f32 0.0, %v1483
    %v1485 = vpop.f32.mrb[0].mxu0
    %v1486 = vadd.f32 0.0, %v1485
    %1487 = vmatprep.mubr.bf16.mxu0 0
    %1488 = vmatmul.mubr.bf16.gmra.mrb[0].mxu0 %v412
    %v1489 = vpop.f32.mrb[0].mxu0
    %v1490 = vadd.f32 0.0, %v1489
    %v1491 = vpop.f32.mrb[0].mxu0
    %v1492 = vadd.f32 0.0, %v1491
    %v1493 = vpop.f32.mrb[0].mxu0
    %v1494 = vadd.f32 0.0, %v1493
    %v1495 = vpop.f32.mrb[0].mxu0
    %v1496 = vadd.f32 0.0, %v1495
    %1497 = vdwg.mxu0
    %1498 = vmatprep.subr.bf16.mxu0 %v437
    %1499 = vmatpush1.bf16.msra.mxu0 %v434
    %1500 = vmatprep.subr.bf16.mxu0 0
    %1501 = vmatpush1.bf16.msra.mxu0 0
    %1502 = vmatprep.subr.bf16.mxu0 0
    %1503 = vmatpush1.bf16.msra.mxu0 0
    %1504 = vmatprep.subr.bf16.mxu0 0
    %1505 = vmatpush1.bf16.msra.mxu0 0
    %1506 = vmatprep.subr.bf16.mxu0 0
    %1507 = vmatpush1.bf16.msra.mxu0 0
    %1508 = vmatprep.subr.bf16.mxu0 0
    %1509 = vmatpush1.bf16.msra.mxu0 0
    %1510 = vmatprep.subr.bf16.mxu0 0
    %1511 = vmatpush1.bf16.msra.mxu0 0
    %1512 = vmatprep.subr.bf16.mxu0 0
    %1513 = vmatpush1.bf16.msra.mxu0 0
    %1514 = vmatprep.subr.bf16.mxu0 0
    %1515 = vmatpush1.bf16.msra.mxu0 0
    %1516 = vmatprep.subr.bf16.mxu0 0
    %1517 = vmatpush1.bf16.msra.mxu0 0
    %1518 = vmatprep.subr.bf16.mxu0 0
    %1519 = vmatpush1.bf16.msra.mxu0 0
    %1520 = vmatprep.subr.bf16.mxu0 0
    %1521 = vmatpush1.bf16.msra.mxu0 0
    %1522 = vmatprep.subr.bf16.mxu0 0
    %1523 = vmatpush1.bf16.msra.mxu0 0
    %1524 = vmatprep.subr.bf16.mxu0 0
    %1525 = vmatpush1.bf16.msra.mxu0 0
    %1526 = vmatprep.subr.bf16.mxu0 0
    %1527 = vmatpush1.bf16.msra.mxu0 0
    %1528 = vmatprep.subr.bf16.mxu0 0
    %1529 = vmatpush1.bf16.msra.mxu0 0
    %1530 = vmatprep.mubr.bf16.mxu0 0
    %1531 = vmatmul.mubr.bf16.gmra.mrb[0].mxu0 %v319
    %v1532 = vpop.f32.mrb[0].mxu0
    %v1533 = vadd.f32 0.0, %v1532
    %v1534 = vpop.f32.mrb[0].mxu0
    %v1535 = vadd.f32 0.0, %v1534
    %v1536 = vpop.f32.mrb[0].mxu0
    %v1537 = vadd.f32 0.0, %v1536
    %v1538 = vpop.f32.mrb[0].mxu0
    %v1539 = vadd.f32 0.0, %v1538
    %1540 = vmatprep.mubr.bf16.mxu0 0
    %1541 = vmatmul.mubr.bf16.gmra.mrb[0].mxu0 %v322
    %v1542 = vpop.f32.mrb[0].mxu0
    %v1543 = vadd.f32 0.0, %v1542
    %v1544 = vpop.f32.mrb[0].mxu0
    %v1545 = vadd.f32 0.0, %v1544
    %v1546 = vpop.f32.mrb[0].mxu0
    %v1547 = vadd.f32 0.0, %v1546
    %v1548 = vpop.f32.mrb[0].mxu0
    %v1549 = vadd.f32 0.0, %v1548
    %1550 = vmatprep.mubr.bf16.mxu0 0
    %1551 = vmatmul.mubr.bf16.gmra.mrb[0].mxu0 %v325
    %v1552 = vpop.f32.mrb[0].mxu0
    %v1553 = vadd.f32 0.0, %v1552
    %v1554 = vpop.f32.mrb[0].mxu0
    %v1555 = vadd.f32 0.0, %v1554
    %v1556 = vpop.f32.mrb[0].mxu0
    %v1557 = vadd.f32 0.0, %v1556
    %v1558 = vpop.f32.mrb[0].mxu0
    %v1559 = vadd.f32 0.0, %v1558
    %1560 = vmatprep.mubr.bf16.mxu0 0
    %1561 = vmatmul.mubr.bf16.gmra.mrb[0].mxu0 %v328
    %v1562 = vpop.f32.mrb[0].mxu0
    %v1563 = vadd.f32 0.0, %v1562
    %v1564 = vpop.f32.mrb[0].mxu0
    %v1565 = vadd.f32 0.0, %v1564
    %v1566 = vpop.f32.mrb[0].mxu0
    %v1567 = vadd.f32 0.0, %v1566
    %v1568 = vpop.f32.mrb[0].mxu0
    %v1569 = vadd.f32 0.0, %v1568
    %1570 = vmatprep.mubr.bf16.mxu0 0
    %1571 = vmatmul.mubr.bf16.gmra.mrb[0].mxu0 %v331
    %v1572 = vpop.f32.mrb[0].mxu0
    %v1573 = vadd.f32 0.0, %v1572
    %v1574 = vpop.f32.mrb[0].mxu0
    %v1575 = vadd.f32 0.0, %v1574
    %v1576 = vpop.f32.mrb[0].mxu0
    %v1577 = vadd.f32 0.0, %v1576
    %v1578 = vpop.f32.mrb[0].mxu0
    %v1579 = vadd.f32 0.0, %v1578
    %1580 = vmatprep.mubr.bf16.mxu0 0
    %1581 = vmatmul.mubr.bf16.gmra.mrb[0].mxu0 %v334
    %v1582 = vpop.f32.mrb[0].mxu0
    %v1583 = vadd.f32 0.0, %v1582
    %v1584 = vpop.f32.mrb[0].mxu0
    %v1585 = vadd.f32 0.0, %v1584
    %v1586 = vpop.f32.mrb[0].mxu0
    %v1587 = vadd.f32 0.0, %v1586
    %v1588 = vpop.f32.mrb[0].mxu0
    %v1589 = vadd.f32 0.0, %v1588
    %1590 = vmatprep.mubr.bf16.mxu0 0
    %1591 = vmatmul.mubr.bf16.gmra.mrb[0].mxu0 %v337
    %v1592 = vpop.f32.mrb[0].mxu0
    %v1593 = vadd.f32 0.0, %v1592
    %v1594 = vpop.f32.mrb[0].mxu0
    %v1595 = vadd.f32 0.0, %v1594
    %v1596 = vpop.f32.mrb[0].mxu0
    %v1597 = vadd.f32 0.0, %v1596
    %v1598 = vpop.f32.mrb[0].mxu0
    %v1599 = vadd.f32 0.0, %v1598
    %1600 = vmatprep.mubr.bf16.mxu0 0
    %1601 = vmatmul.mubr.bf16.gmra.mrb[0].mxu0 %v340
    %v1602 = vpop.f32.mrb[0].mxu0
    %v1603 = vadd.f32 0.0, %v1602
    %v1604 = vpop.f32.mrb[0].mxu0
    %v1605 = vadd.f32 0.0, %v1604
    %v1606 = vpop.f32.mrb[0].mxu0
    %v1607 = vadd.f32 0.0, %v1606
    %v1608 = vpop.f32.mrb[0].mxu0
    %v1609 = vadd.f32 0.0, %v1608
    %1610 = vmatprep.mubr.bf16.mxu0 0
    %1611 = vmatmul.mubr.bf16.gmra.mrb[0].mxu0 %v343
    %v1612 = vpop.f32.mrb[0].mxu0
    %v1613 = vadd.f32 0.0, %v1612
    %v1614 = vpop.f32.mrb[0].mxu0
    %v1615 = vadd.f32 0.0, %v1614
    %v1616 = vpop.f32.mrb[0].mxu0
    %v1617 = vadd.f32 0.0, %v1616
    %v1618 = vpop.f32.mrb[0].mxu0
    %v1619 = vadd.f32 0.0, %v1618
    %1620 = vmatprep.mubr.bf16.mxu0 0
    %1621 = vmatmul.mubr.bf16.gmra.mrb[0].mxu0 %v346
    %v1622 = vpop.f32.mrb[0].mxu0
    %v1623 = vadd.f32 0.0, %v1622
    %v1624 = vpop.f32.mrb[0].mxu0
    %v1625 = vadd.f32 0.0, %v1624
    %v1626 = vpop.f32.mrb[0].mxu0
    %v1627 = vadd.f32 0.0, %v1626
    %v1628 = vpop.f32.mrb[0].mxu0
    %v1629 = vadd.f32 0.0, %v1628
    %1630 = vmatprep.mubr.bf16.mxu0 0
    %1631 = vmatmul.mubr.bf16.gmra.mrb[0].mxu0 %v349
    %v1632 = vpop.f32.mrb[0].mxu0
    %v1633 = vadd.f32 0.0, %v1632
    %v1634 = vpop.f32.mrb[0].mxu0
    %v1635 = vadd.f32 0.0, %v1634
    %v1636 = vpop.f32.mrb[0].mxu0
    %v1637 = vadd.f32 0.0, %v1636
    %v1638 = vpop.f32.mrb[0].mxu0
    %v1639 = vadd.f32 0.0, %v1638
    %1640 = vmatprep.mubr.bf16.mxu0 0
    %1641 = vmatmul.mubr.bf16.gmra.mrb[0].mxu0 %v352
    %v1642 = vpop.f32.mrb[0].mxu0
    %v1643 = vadd.f32 0.0, %v1642
    %v1644 = vpop.f32.mrb[0].mxu0
    %v1645 = vadd.f32 0.0, %v1644
    %v1646 = vpop.f32.mrb[0].mxu0
    %v1647 = vadd.f32 0.0, %v1646
    %v1648 = vpop.f32.mrb[0].mxu0
    %v1649 = vadd.f32 0.0, %v1648
    %1650 = vmatprep.mubr.bf16.mxu0 0
    %1651 = vmatmul.mubr.bf16.gmra.mrb[0].mxu0 %v355
    %v1652 = vpop.f32.mrb[0].mxu0
    %v1653 = vadd.f32 0.0, %v1652
    %v1654 = vpop.f32.mrb[0].mxu0
    %v1655 = vadd.f32 0.0, %v1654
    %v1656 = vpop.f32.mrb[0].mxu0
    %v1657 = vadd.f32 0.0, %v1656
    %v1658 = vpop.f32.mrb[0].mxu0
    %v1659 = vadd.f32 0.0, %v1658
    %1660 = vmatprep.mubr.bf16.mxu0 0
    %1661 = vmatmul.mubr.bf16.gmra.mrb[0].mxu0 %v358
    %v1662 = vpop.f32.mrb[0].mxu0
    %v1663 = vadd.f32 0.0, %v1662
    %v1664 = vpop.f32.mrb[0].mxu0
    %v1665 = vadd.f32 0.0, %v1664
    %v1666 = vpop.f32.mrb[0].mxu0
    %v1667 = vadd.f32 0.0, %v1666
    %v1668 = vpop.f32.mrb[0].mxu0
    %v1669 = vadd.f32 0.0, %v1668
    %1670 = vmatprep.mubr.bf16.mxu0 0
    %1671 = vmatmul.mubr.bf16.gmra.mrb[0].mxu0 %v361
    %v1672 = vpop.f32.mrb[0].mxu0
    %v1673 = vadd.f32 0.0, %v1672
    %v1674 = vpop.f32.mrb[0].mxu0
    %v1675 = vadd.f32 0.0, %v1674
    %v1676 = vpop.f32.mrb[0].mxu0
    %v1677 = vadd.f32 0.0, %v1676
    %v1678 = vpop.f32.mrb[0].mxu0
    %v1679 = vadd.f32 0.0, %v1678
    %1680 = vmatprep.mubr.bf16.mxu0 0
    %1681 = vmatmul.mubr.bf16.gmra.mrb[0].mxu0 %v364
    %v1682 = vpop.f32.mrb[0].mxu0
    %v1683 = vadd.f32 0.0, %v1682
    %v1684 = vpop.f32.mrb[0].mxu0
    %v1685 = vadd.f32 0.0, %v1684
    %v1686 = vpop.f32.mrb[0].mxu0
    %v1687 = vadd.f32 0.0, %v1686
    %v1688 = vpop.f32.mrb[0].mxu0
    %v1689 = vadd.f32 0.0, %v1688
    %1690 = vmatprep.mubr.bf16.mxu0 0
    %1691 = vmatmul.mubr.bf16.gmra.mrb[0].mxu0 %v367
    %v1692 = vpop.f32.mrb[0].mxu0
    %v1693 = vadd.f32 0.0, %v1692
    %v1694 = vpop.f32.mrb[0].mxu0
    %v1695 = vadd.f32 0.0, %v1694
    %v1696 = vpop.f32.mrb[0].mxu0
    %v1697 = vadd.f32 0.0, %v1696
    %v1698 = vpop.f32.mrb[0].mxu0
    %v1699 = vadd.f32 0.0, %v1698
    %1700 = vmatprep.mubr.bf16.mxu0 0
    %1701 = vmatmul.mubr.bf16.gmra.mrb[0].mxu0 %v370
    %v1702 = vpop.f32.mrb[0].mxu0
    %v1703 = vadd.f32 0.0, %v1702
    %v1704 = vpop.f32.mrb[0].mxu0
    %v1705 = vadd.f32 0.0, %v1704
    %v1706 = vpop.f32.mrb[0].mxu0
    %v1707 = vadd.f32 0.0, %v1706
    %v1708 = vpop.f32.mrb[0].mxu0
    %v1709 = vadd.f32 0.0, %v1708
    %1710 = vmatprep.mubr.bf16.mxu0 0
    %1711 = vmatmul.mubr.bf16.gmra.mrb[0].mxu0 %v373
    %v1712 = vpop.f32.mrb[0].mxu0
    %v1713 = vadd.f32 0.0, %v1712
    %v1714 = vpop.f32.mrb[0].mxu0
    %v1715 = vadd.f32 0.0, %v1714
    %v1716 = vpop.f32.mrb[0].mxu0
    %v1717 = vadd.f32 0.0, %v1716
    %v1718 = vpop.f32.mrb[0].mxu0
    %v1719 = vadd.f32 0.0, %v1718
    %1720 = vmatprep.mubr.bf16.mxu0 0
    %1721 = vmatmul.mubr.bf16.gmra.mrb[0].mxu0 %v376
    %v1722 = vpop.f32.mrb[0].mxu0
    %v1723 = vadd.f32 0.0, %v1722
    %v1724 = vpop.f32.mrb[0].mxu0
    %v1725 = vadd.f32 0.0, %v1724
    %v1726 = vpop.f32.mrb[0].mxu0
    %v1727 = vadd.f32 0.0, %v1726
    %v1728 = vpop.f32.mrb[0].mxu0
    %v1729 = vadd.f32 0.0, %v1728
    %1730 = vmatprep.mubr.bf16.mxu0 0
    %1731 = vmatmul.mubr.bf16.gmra.mrb[0].mxu0 %v379
    %v1732 = vpop.f32.mrb[0].mxu0
    %v1733 = vadd.f32 0.0, %v1732
    %v1734 = vpop.f32.mrb[0].mxu0
    %v1735 = vadd.f32 0.0, %v1734
    %v1736 = vpop.f32.mrb[0].mxu0
    %v1737 = vadd.f32 0.0, %v1736
    %v1738 = vpop.f32.mrb[0].mxu0
    %v1739 = vadd.f32 0.0, %v1738
    %1740 = vmatprep.mubr.bf16.mxu0 0
    %1741 = vmatmul.mubr.bf16.gmra.mrb[0].mxu0 %v382
    %v1742 = vpop.f32.mrb[0].mxu0
    %v1743 = vadd.f32 0.0, %v1742
    %v1744 = vpop.f32.mrb[0].mxu0
    %v1745 = vadd.f32 0.0, %v1744
    %v1746 = vpop.f32.mrb[0].mxu0
    %v1747 = vadd.f32 0.0, %v1746
    %v1748 = vpop.f32.mrb[0].mxu0
    %v1749 = vadd.f32 0.0, %v1748
    %1750 = vmatprep.mubr.bf16.mxu0 0
    %1751 = vmatmul.mubr.bf16.gmra.mrb[0].mxu0 %v385
    %v1752 = vpop.f32.mrb[0].mxu0
    %v1753 = vadd.f32 0.0, %v1752
    %v1754 = vpop.f32.mrb[0].mxu0
    %v1755 = vadd.f32 0.0, %v1754
    %v1756 = vpop.f32.mrb[0].mxu0
    %v1757 = vadd.f32 0.0, %v1756
    %v1758 = vpop.f32.mrb[0].mxu0
    %v1759 = vadd.f32 0.0, %v1758
    %1760 = vmatprep.mubr.bf16.mxu0 0
    %1761 = vmatmul.mubr.bf16.gmra.mrb[0].mxu0 %v388
    %v1762 = vpop.f32.mrb[0].mxu0
    %v1763 = vadd.f32 0.0, %v1762
    %v1764 = vpop.f32.mrb[0].mxu0
    %v1765 = vadd.f32 0.0, %v1764
    %v1766 = vpop.f32.mrb[0].mxu0
    %v1767 = vadd.f32 0.0, %v1766
    %v1768 = vpop.f32.mrb[0].mxu0
    %v1769 = vadd.f32 0.0, %v1768
    %1770 = vmatprep.mubr.bf16.mxu0 0
    %1771 = vmatmul.mubr.bf16.gmra.mrb[0].mxu0 %v391
    %v1772 = vpop.f32.mrb[0].mxu0
    %v1773 = vadd.f32 0.0, %v1772
    %v1774 = vpop.f32.mrb[0].mxu0
    %v1775 = vadd.f32 0.0, %v1774
    %v1776 = vpop.f32.mrb[0].mxu0
    %v1777 = vadd.f32 0.0, %v1776
    %v1778 = vpop.f32.mrb[0].mxu0
    %v1779 = vadd.f32 0.0, %v1778
    %1780 = vmatprep.mubr.bf16.mxu0 0
    %1781 = vmatmul.mubr.bf16.gmra.mrb[0].mxu0 %v394
    %v1782 = vpop.f32.mrb[0].mxu0
    %v1783 = vadd.f32 0.0, %v1782
    %v1784 = vpop.f32.mrb[0].mxu0
    %v1785 = vadd.f32 0.0, %v1784
    %v1786 = vpop.f32.mrb[0].mxu0
    %v1787 = vadd.f32 0.0, %v1786
    %v1788 = vpop.f32.mrb[0].mxu0
    %v1789 = vadd.f32 0.0, %v1788
    %1790 = vmatprep.mubr.bf16.mxu0 0
    %1791 = vmatmul.mubr.bf16.gmra.mrb[0].mxu0 %v397
    %v1792 = vpop.f32.mrb[0].mxu0
    %v1793 = vadd.f32 0.0, %v1792
    %v1794 = vpop.f32.mrb[0].mxu0
    %v1795 = vadd.f32 0.0, %v1794
    %v1796 = vpop.f32.mrb[0].mxu0
    %v1797 = vadd.f32 0.0, %v1796
    %v1798 = vpop.f32.mrb[0].mxu0
    %v1799 = vadd.f32 0.0, %v1798
    %1800 = vmatprep.mubr.bf16.mxu0 0
    %1801 = vmatmul.mubr.bf16.gmra.mrb[0].mxu0 %v400
    %v1802 = vpop.f32.mrb[0].mxu0
    %v1803 = vadd.f32 0.0, %v1802
    %v1804 = vpop.f32.mrb[0].mxu0
    %v1805 = vadd.f32 0.0, %v1804
    %v1806 = vpop.f32.mrb[0].mxu0
    %v1807 = vadd.f32 0.0, %v1806
    %v1808 = vpop.f32.mrb[0].mxu0
    %v1809 = vadd.f32 0.0, %v1808
    %1810 = vmatprep.mubr.bf16.mxu0 0
    %1811 = vmatmul.mubr.bf16.gmra.mrb[0].mxu0 %v403
    %v1812 = vpop.f32.mrb[0].mxu0
    %v1813 = vadd.f32 0.0, %v1812
    %v1814 = vpop.f32.mrb[0].mxu0
    %v1815 = vadd.f32 0.0, %v1814
    %v1816 = vpop.f32.mrb[0].mxu0
    %v1817 = vadd.f32 0.0, %v1816
    %v1818 = vpop.f32.mrb[0].mxu0
    %v1819 = vadd.f32 0.0, %v1818
    %1820 = vmatprep.mubr.bf16.mxu0 0
    %1821 = vmatmul.mubr.bf16.gmra.mrb[0].mxu0 %v406
    %v1822 = vpop.f32.mrb[0].mxu0
    %v1823 = vadd.f32 0.0, %v1822
    %v1824 = vpop.f32.mrb[0].mxu0
    %v1825 = vadd.f32 0.0, %v1824
    %v1826 = vpop.f32.mrb[0].mxu0
    %v1827 = vadd.f32 0.0, %v1826
    %v1828 = vpop.f32.mrb[0].mxu0
    %v1829 = vadd.f32 0.0, %v1828
    %1830 = vmatprep.mubr.bf16.mxu0 0
    %1831 = vmatmul.mubr.bf16.gmra.mrb[0].mxu0 %v409
    %v1832 = vpop.f32.mrb[0].mxu0
    %v1833 = vadd.f32 0.0, %v1832
    %v1834 = vpop.f32.mrb[0].mxu0
    %v1835 = vadd.f32 0.0, %v1834
    %v1836 = vpop.f32.mrb[0].mxu0
    %v1837 = vadd.f32 0.0, %v1836
    %v1838 = vpop.f32.mrb[0].mxu0
    %v1839 = vadd.f32 0.0, %v1838
    %1840 = vmatprep.mubr.bf16.mxu0 0
    %1841 = vmatmul.mubr.bf16.gmra.mrb[0].mxu0 %v412
    %v1842 = vpop.f32.mrb[0].mxu0
    %v1843 = vadd.f32 0.0, %v1842
    %v1844 = vpop.f32.mrb[0].mxu0
    %v1845 = vadd.f32 0.0, %v1844
    %v1846 = vpop.f32.mrb[0].mxu0
    %v1847 = vadd.f32 0.0, %v1846
    %v1848 = vpop.f32.mrb[0].mxu0
    %v1849 = vadd.f32 0.0, %v1848
    %1850 = vdwg.mxu0
    %v1851 = vmax.f32 %v474, 0.0
    %v1852 = vmax.f32 %v476, 0.0
    %v1853 = vmax.f32 %v827, 0.0
    %v1854 = vmax.f32 %v829, 0.0
    %v1855 = vmax.f32 %v1180, 0.0
    %v1856 = vmax.f32 %v1182, 0.0
    %v1857 = vmax.f32 %v1533, 0.0
    %v1858 = vmax.f32 %v1535, 0.0
    %v1859 = vmax.f32 %v478, 0.0
    %v1860 = vmax.f32 %v480, 0.0
    %v1861 = vmax.f32 %v831, 0.0
    %v1862 = vmax.f32 %v833, 0.0
    %v1863 = vmax.f32 %v1184, 0.0
    %v1864 = vmax.f32 %v1186, 0.0
    %v1865 = vmax.f32 %v1537, 0.0
    %v1866 = vmax.f32 %v1539, 0.0
    %v1867 = vmax.f32 %v484, 0.0
    %v1868 = vmax.f32 %v486, 0.0
    %v1869 = vmax.f32 %v837, 0.0
    %v1870 = vmax.f32 %v839, 0.0
    %v1871 = vmax.f32 %v1190, 0.0
    %v1872 = vmax.f32 %v1192, 0.0
    %v1873 = vmax.f32 %v1543, 0.0
    %v1874 = vmax.f32 %v1545, 0.0
    %v1875 = vmax.f32 %v488, 0.0
    %v1876 = vmax.f32 %v490, 0.0
    %v1877 = vmax.f32 %v841, 0.0
    %v1878 = vmax.f32 %v843, 0.0
    %v1879 = vmax.f32 %v1194, 0.0
    %v1880 = vmax.f32 %v1196, 0.0
    %v1881 = vmax.f32 %v1547, 0.0
    %v1882 = vmax.f32 %v1549, 0.0
    %v1883 = vmax.f32 %v494, 0.0
    %v1884 = vmax.f32 %v496, 0.0
    %v1885 = vmax.f32 %v847, 0.0
    %v1886 = vmax.f32 %v849, 0.0
    %v1887 = vmax.f32 %v1200, 0.0
    %v1888 = vmax.f32 %v1202, 0.0
    %v1889 = vmax.f32 %v1553, 0.0
    %v1890 = vmax.f32 %v1555, 0.0
    %v1891 = vmax.f32 %v498, 0.0
    %v1892 = vmax.f32 %v500, 0.0
    %v1893 = vmax.f32 %v851, 0.0
    %v1894 = vmax.f32 %v853, 0.0
    %v1895 = vmax.f32 %v1204, 0.0
    %v1896 = vmax.f32 %v1206, 0.0
    %v1897 = vmax.f32 %v1557, 0.0
    %v1898 = vmax.f32 %v1559, 0.0
    %v1899 = vmax.f32 %v504, 0.0
    %v1900 = vmax.f32 %v506, 0.0
    %v1901 = vmax.f32 %v857, 0.0
    %v1902 = vmax.f32 %v859, 0.0
    %v1903 = vmax.f32 %v1210, 0.0
    %v1904 = vmax.f32 %v1212, 0.0
    %v1905 = vmax.f32 %v1563, 0.0
    %v1906 = vmax.f32 %v1565, 0.0
    %v1907 = vmax.f32 %v508, 0.0
    %v1908 = vmax.f32 %v510, 0.0
    %v1909 = vmax.f32 %v861, 0.0
    %v1910 = vmax.f32 %v863, 0.0
    %v1911 = vmax.f32 %v1214, 0.0
    %v1912 = vmax.f32 %v1216, 0.0
    %v1913 = vmax.f32 %v1567, 0.0
    %v1914 = vmax.f32 %v1569, 0.0
    %v1915 = vmax.f32 %v514, 0.0
    %v1916 = vmax.f32 %v516, 0.0
    %v1917 = vmax.f32 %v867, 0.0
    %v1918 = vmax.f32 %v869, 0.0
    %v1919 = vmax.f32 %v1220, 0.0
    %v1920 = vmax.f32 %v1222, 0.0
    %v1921 = vmax.f32 %v1573, 0.0
    %v1922 = vmax.f32 %v1575, 0.0
    %v1923 = vmax.f32 %v518, 0.0
    %v1924 = vmax.f32 %v520, 0.0
    %v1925 = vmax.f32 %v871, 0.0
    %v1926 = vmax.f32 %v873, 0.0
    %v1927 = vmax.f32 %v1224, 0.0
    %v1928 = vmax.f32 %v1226, 0.0
    %v1929 = vmax.f32 %v1577, 0.0
    %v1930 = vmax.f32 %v1579, 0.0
    %v1931 = vmax.f32 %v524, 0.0
    %v1932 = vmax.f32 %v526, 0.0
    %v1933 = vmax.f32 %v877, 0.0
    %v1934 = vmax.f32 %v879, 0.0
    %v1935 = vmax.f32 %v1230, 0.0
    %v1936 = vmax.f32 %v1232, 0.0
    %v1937 = vmax.f32 %v1583, 0.0
    %v1938 = vmax.f32 %v1585, 0.0
    %v1939 = vmax.f32 %v528, 0.0
    %v1940 = vmax.f32 %v530, 0.0
    %v1941 = vmax.f32 %v881, 0.0
    %v1942 = vmax.f32 %v883, 0.0
    %v1943 = vmax.f32 %v1234, 0.0
    %v1944 = vmax.f32 %v1236, 0.0
    %v1945 = vmax.f32 %v1587, 0.0
    %v1946 = vmax.f32 %v1589, 0.0
    %v1947 = vmax.f32 %v534, 0.0
    %v1948 = vmax.f32 %v536, 0.0
    %v1949 = vmax.f32 %v887, 0.0
    %v1950 = vmax.f32 %v889, 0.0
    %v1951 = vmax.f32 %v1240, 0.0
    %v1952 = vmax.f32 %v1242, 0.0
    %v1953 = vmax.f32 %v1593, 0.0
    %v1954 = vmax.f32 %v1595, 0.0
    %v1955 = vmax.f32 %v538, 0.0
    %v1956 = vmax.f32 %v540, 0.0
    %v1957 = vmax.f32 %v891, 0.0
    %v1958 = vmax.f32 %v893, 0.0
    %v1959 = vmax.f32 %v1244, 0.0
    %v1960 = vmax.f32 %v1246, 0.0
    %v1961 = vmax.f32 %v1597, 0.0
    %v1962 = vmax.f32 %v1599, 0.0
    %v1963 = vmax.f32 %v544, 0.0
    %v1964 = vmax.f32 %v546, 0.0
    %v1965 = vmax.f32 %v897, 0.0
    %v1966 = vmax.f32 %v899, 0.0
    %v1967 = vmax.f32 %v1250, 0.0
    %v1968 = vmax.f32 %v1252, 0.0
    %v1969 = vmax.f32 %v1603, 0.0
    %v1970 = vmax.f32 %v1605, 0.0
    %v1971 = vmax.f32 %v548, 0.0
    %v1972 = vmax.f32 %v550, 0.0
    %v1973 = vmax.f32 %v901, 0.0
    %v1974 = vmax.f32 %v903, 0.0
    %v1975 = vmax.f32 %v1254, 0.0
    %v1976 = vmax.f32 %v1256, 0.0
    %v1977 = vmax.f32 %v1607, 0.0
    %v1978 = vmax.f32 %v1609, 0.0
    %v1979 = vmax.f32 %v554, 0.0
    %v1980 = vmax.f32 %v556, 0.0
    %v1981 = vmax.f32 %v907, 0.0
    %v1982 = vmax.f32 %v909, 0.0
    %v1983 = vmax.f32 %v1260, 0.0
    %v1984 = vmax.f32 %v1262, 0.0
    %v1985 = vmax.f32 %v1613, 0.0
    %v1986 = vmax.f32 %v1615, 0.0
    %v1987 = vmax.f32 %v558, 0.0
    %v1988 = vmax.f32 %v560, 0.0
    %v1989 = vmax.f32 %v911, 0.0
    %v1990 = vmax.f32 %v913, 0.0
    %v1991 = vmax.f32 %v1264, 0.0
    %v1992 = vmax.f32 %v1266, 0.0
    %v1993 = vmax.f32 %v1617, 0.0
    %v1994 = vmax.f32 %v1619, 0.0
    %v1995 = vmax.f32 %v564, 0.0
    %v1996 = vmax.f32 %v566, 0.0
    %v1997 = vmax.f32 %v917, 0.0
    %v1998 = vmax.f32 %v919, 0.0
    %v1999 = vmax.f32 %v1270, 0.0
    %v2000 = vmax.f32 %v1272, 0.0
    %v2001 = vmax.f32 %v1623, 0.0
    %v2002 = vmax.f32 %v1625, 0.0
    %v2003 = vmax.f32 %v568, 0.0
    %v2004 = vmax.f32 %v570, 0.0
    %v2005 = vmax.f32 %v921, 0.0
    %v2006 = vmax.f32 %v923, 0.0
    %v2007 = vmax.f32 %v1274, 0.0
    %v2008 = vmax.f32 %v1276, 0.0
    %v2009 = vmax.f32 %v1627, 0.0
    %v2010 = vmax.f32 %v1629, 0.0
    %v2011 = vmax.f32 %v574, 0.0
    %v2012 = vmax.f32 %v576, 0.0
    %v2013 = vmax.f32 %v927, 0.0
    %v2014 = vmax.f32 %v929, 0.0
    %v2015 = vmax.f32 %v1280, 0.0
    %v2016 = vmax.f32 %v1282, 0.0
    %v2017 = vmax.f32 %v1633, 0.0
    %v2018 = vmax.f32 %v1635, 0.0
    %v2019 = vmax.f32 %v578, 0.0
    %v2020 = vmax.f32 %v580, 0.0
    %v2021 = vmax.f32 %v931, 0.0
    %v2022 = vmax.f32 %v933, 0.0
    %v2023 = vmax.f32 %v1284, 0.0
    %v2024 = vmax.f32 %v1286, 0.0
    %v2025 = vmax.f32 %v1637, 0.0
    %v2026 = vmax.f32 %v1639, 0.0
    %v2027 = vmax.f32 %v584, 0.0
    %v2028 = vmax.f32 %v586, 0.0
    %v2029 = vmax.f32 %v937, 0.0
    %v2030 = vmax.f32 %v939, 0.0
    %v2031 = vmax.f32 %v1290, 0.0
    %v2032 = vmax.f32 %v1292, 0.0
    %v2033 = vmax.f32 %v1643, 0.0
    %v2034 = vmax.f32 %v1645, 0.0
    %v2035 = vmax.f32 %v588, 0.0
    %v2036 = vmax.f32 %v590, 0.0
    %v2037 = vmax.f32 %v941, 0.0
    %v2038 = vmax.f32 %v943, 0.0
    %v2039 = vmax.f32 %v1294, 0.0
    %v2040 = vmax.f32 %v1296, 0.0
    %v2041 = vmax.f32 %v1647, 0.0
    %v2042 = vmax.f32 %v1649, 0.0
    %v2043 = vmax.f32 %v594, 0.0
    %v2044 = vmax.f32 %v596, 0.0
    %v2045 = vmax.f32 %v947, 0.0
    %v2046 = vmax.f32 %v949, 0.0
    %v2047 = vmax.f32 %v1300, 0.0
    %v2048 = vmax.f32 %v1302, 0.0
    %v2049 = vmax.f32 %v1653, 0.0
    %v2050 = vmax.f32 %v1655, 0.0
    %v2051 = vmax.f32 %v598, 0.0
    %v2052 = vmax.f32 %v600, 0.0
    %v2053 = vmax.f32 %v951, 0.0
    %v2054 = vmax.f32 %v953, 0.0
    %v2055 = vmax.f32 %v1304, 0.0
    %v2056 = vmax.f32 %v1306, 0.0
    %v2057 = vmax.f32 %v1657, 0.0
    %v2058 = vmax.f32 %v1659, 0.0
    %v2059 = vmax.f32 %v604, 0.0
    %v2060 = vmax.f32 %v606, 0.0
    %v2061 = vmax.f32 %v957, 0.0
    %v2062 = vmax.f32 %v959, 0.0
    %v2063 = vmax.f32 %v1310, 0.0
    %v2064 = vmax.f32 %v1312, 0.0
    %v2065 = vmax.f32 %v1663, 0.0
    %v2066 = vmax.f32 %v1665, 0.0
    %v2067 = vmax.f32 %v608, 0.0
    %v2068 = vmax.f32 %v610, 0.0
    %v2069 = vmax.f32 %v961, 0.0
    %v2070 = vmax.f32 %v963, 0.0
    %v2071 = vmax.f32 %v1314, 0.0
    %v2072 = vmax.f32 %v1316, 0.0
    %v2073 = vmax.f32 %v1667, 0.0
    %v2074 = vmax.f32 %v1669, 0.0
    %v2075 = vmax.f32 %v614, 0.0
    %v2076 = vmax.f32 %v616, 0.0
    %v2077 = vmax.f32 %v967, 0.0
    %v2078 = vmax.f32 %v969, 0.0
    %v2079 = vmax.f32 %v1320, 0.0
    %v2080 = vmax.f32 %v1322, 0.0
    %v2081 = vmax.f32 %v1673, 0.0
    %v2082 = vmax.f32 %v1675, 0.0
    %v2083 = vmax.f32 %v618, 0.0
    %v2084 = vmax.f32 %v620, 0.0
    %v2085 = vmax.f32 %v971, 0.0
    %v2086 = vmax.f32 %v973, 0.0
    %v2087 = vmax.f32 %v1324, 0.0
    %v2088 = vmax.f32 %v1326, 0.0
    %v2089 = vmax.f32 %v1677, 0.0
    %v2090 = vmax.f32 %v1679, 0.0
    %v2091 = vmax.f32 %v624, 0.0
    %v2092 = vmax.f32 %v626, 0.0
    %v2093 = vmax.f32 %v977, 0.0
    %v2094 = vmax.f32 %v979, 0.0
    %v2095 = vmax.f32 %v1330, 0.0
    %v2096 = vmax.f32 %v1332, 0.0
    %v2097 = vmax.f32 %v1683, 0.0
    %v2098 = vmax.f32 %v1685, 0.0
    %v2099 = vmax.f32 %v628, 0.0
    %v2100 = vmax.f32 %v630, 0.0
    %v2101 = vmax.f32 %v981, 0.0
    %v2102 = vmax.f32 %v983, 0.0
    %v2103 = vmax.f32 %v1334, 0.0
    %v2104 = vmax.f32 %v1336, 0.0
    %v2105 = vmax.f32 %v1687, 0.0
    %v2106 = vmax.f32 %v1689, 0.0
    %v2107 = vmax.f32 %v634, 0.0
    %v2108 = vmax.f32 %v636, 0.0
    %v2109 = vmax.f32 %v987, 0.0
    %v2110 = vmax.f32 %v989, 0.0
    %v2111 = vmax.f32 %v1340, 0.0
    %v2112 = vmax.f32 %v1342, 0.0
    %v2113 = vmax.f32 %v1693, 0.0
    %v2114 = vmax.f32 %v1695, 0.0
    %v2115 = vmax.f32 %v638, 0.0
    %v2116 = vmax.f32 %v640, 0.0
    %v2117 = vmax.f32 %v991, 0.0
    %v2118 = vmax.f32 %v993, 0.0
    %v2119 = vmax.f32 %v1344, 0.0
    %v2120 = vmax.f32 %v1346, 0.0
    %v2121 = vmax.f32 %v1697, 0.0
    %v2122 = vmax.f32 %v1699, 0.0
    %v2123 = vmax.f32 %v644, 0.0
    %v2124 = vmax.f32 %v646, 0.0
    %v2125 = vmax.f32 %v997, 0.0
    %v2126 = vmax.f32 %v999, 0.0
    %v2127 = vmax.f32 %v1350, 0.0
    %v2128 = vmax.f32 %v1352, 0.0
    %v2129 = vmax.f32 %v1703, 0.0
    %v2130 = vmax.f32 %v1705, 0.0
    %v2131 = vmax.f32 %v648, 0.0
    %v2132 = vmax.f32 %v650, 0.0
    %v2133 = vmax.f32 %v1001, 0.0
    %v2134 = vmax.f32 %v1003, 0.0
    %v2135 = vmax.f32 %v1354, 0.0
    %v2136 = vmax.f32 %v1356, 0.0
    %v2137 = vmax.f32 %v1707, 0.0
    %v2138 = vmax.f32 %v1709, 0.0
    %v2139 = vmax.f32 %v654, 0.0
    %v2140 = vmax.f32 %v656, 0.0
    %v2141 = vmax.f32 %v1007, 0.0
    %v2142 = vmax.f32 %v1009, 0.0
    %v2143 = vmax.f32 %v1360, 0.0
    %v2144 = vmax.f32 %v1362, 0.0
    %v2145 = vmax.f32 %v1713, 0.0
    %v2146 = vmax.f32 %v1715, 0.0
    %v2147 = vmax.f32 %v658, 0.0
    %v2148 = vmax.f32 %v660, 0.0
    %v2149 = vmax.f32 %v1011, 0.0
    %v2150 = vmax.f32 %v1013, 0.0
    %v2151 = vmax.f32 %v1364, 0.0
    %v2152 = vmax.f32 %v1366, 0.0
    %v2153 = vmax.f32 %v1717, 0.0
    %v2154 = vmax.f32 %v1719, 0.0
    %v2155 = vmax.f32 %v664, 0.0
    %v2156 = vmax.f32 %v666, 0.0
    %v2157 = vmax.f32 %v1017, 0.0
    %v2158 = vmax.f32 %v1019, 0.0
    %v2159 = vmax.f32 %v1370, 0.0
    %v2160 = vmax.f32 %v1372, 0.0
    %v2161 = vmax.f32 %v1723, 0.0
    %v2162 = vmax.f32 %v1725, 0.0
    %v2163 = vmax.f32 %v668, 0.0
    %v2164 = vmax.f32 %v670, 0.0
    %v2165 = vmax.f32 %v1021, 0.0
    %v2166 = vmax.f32 %v1023, 0.0
    %v2167 = vmax.f32 %v1374, 0.0
    %v2168 = vmax.f32 %v1376, 0.0
    %v2169 = vmax.f32 %v1727, 0.0
    %v2170 = vmax.f32 %v1729, 0.0
    %v2171 = vmax.f32 %v674, 0.0
    %v2172 = vmax.f32 %v676, 0.0
    %v2173 = vmax.f32 %v1027, 0.0
    %v2174 = vmax.f32 %v1029, 0.0
    %v2175 = vmax.f32 %v1380, 0.0
    %v2176 = vmax.f32 %v1382, 0.0
    %v2177 = vmax.f32 %v1733, 0.0
    %v2178 = vmax.f32 %v1735, 0.0
    %v2179 = vmax.f32 %v678, 0.0
    %v2180 = vmax.f32 %v680, 0.0
    %v2181 = vmax.f32 %v1031, 0.0
    %v2182 = vmax.f32 %v1033, 0.0
    %v2183 = vmax.f32 %v1384, 0.0
    %v2184 = vmax.f32 %v1386, 0.0
    %v2185 = vmax.f32 %v1737, 0.0
    %v2186 = vmax.f32 %v1739, 0.0
    %v2187 = vmax.f32 %v684, 0.0
    %v2188 = vmax.f32 %v686, 0.0
    %v2189 = vmax.f32 %v1037, 0.0
    %v2190 = vmax.f32 %v1039, 0.0
    %v2191 = vmax.f32 %v1390, 0.0
    %v2192 = vmax.f32 %v1392, 0.0
    %v2193 = vmax.f32 %v1743, 0.0
    %v2194 = vmax.f32 %v1745, 0.0
    %v2195 = vmax.f32 %v688, 0.0
    %v2196 = vmax.f32 %v690, 0.0
    %v2197 = vmax.f32 %v1041, 0.0
    %v2198 = vmax.f32 %v1043, 0.0
    %v2199 = vmax.f32 %v1394, 0.0
    %v2200 = vmax.f32 %v1396, 0.0
    %v2201 = vmax.f32 %v1747, 0.0
    %v2202 = vmax.f32 %v1749, 0.0
    %v2203 = vmax.f32 %v694, 0.0
    %v2204 = vmax.f32 %v696, 0.0
    %v2205 = vmax.f32 %v1047, 0.0
    %v2206 = vmax.f32 %v1049, 0.0
    %v2207 = vmax.f32 %v1400, 0.0
    %v2208 = vmax.f32 %v1402, 0.0
    %v2209 = vmax.f32 %v1753, 0.0
    %v2210 = vmax.f32 %v1755, 0.0
    %v2211 = vmax.f32 %v698, 0.0
    %v2212 = vmax.f32 %v700, 0.0
    %v2213 = vmax.f32 %v1051, 0.0
    %v2214 = vmax.f32 %v1053, 0.0
    %v2215 = vmax.f32 %v1404, 0.0
    %v2216 = vmax.f32 %v1406, 0.0
    %v2217 = vmax.f32 %v1757, 0.0
    %v2218 = vmax.f32 %v1759, 0.0
    %v2219 = vmax.f32 %v704, 0.0
    %v2220 = vmax.f32 %v706, 0.0
    %v2221 = vmax.f32 %v1057, 0.0
    %v2222 = vmax.f32 %v1059, 0.0
    %v2223 = vmax.f32 %v1410, 0.0
    %v2224 = vmax.f32 %v1412, 0.0
    %v2225 = vmax.f32 %v1763, 0.0
    %v2226 = vmax.f32 %v1765, 0.0
    %v2227 = vmax.f32 %v708, 0.0
    %v2228 = vmax.f32 %v710, 0.0
    %v2229 = vmax.f32 %v1061, 0.0
    %v2230 = vmax.f32 %v1063, 0.0
    %v2231 = vmax.f32 %v1414, 0.0
    %v2232 = vmax.f32 %v1416, 0.0
    %v2233 = vmax.f32 %v1767, 0.0
    %v2234 = vmax.f32 %v1769, 0.0
    %v2235 = vmax.f32 %v714, 0.0
    %v2236 = vmax.f32 %v716, 0.0
    %v2237 = vmax.f32 %v1067, 0.0
    %v2238 = vmax.f32 %v1069, 0.0
    %v2239 = vmax.f32 %v1420, 0.0
    %v2240 = vmax.f32 %v1422, 0.0
    %v2241 = vmax.f32 %v1773, 0.0
    %v2242 = vmax.f32 %v1775, 0.0
    %v2243 = vmax.f32 %v718, 0.0
    %v2244 = vmax.f32 %v720, 0.0
    %v2245 = vmax.f32 %v1071, 0.0
    %v2246 = vmax.f32 %v1073, 0.0
    %v2247 = vmax.f32 %v1424, 0.0
    %v2248 = vmax.f32 %v1426, 0.0
    %v2249 = vmax.f32 %v1777, 0.0
    %v2250 = vmax.f32 %v1779, 0.0
    %v2251 = vmax.f32 %v724, 0.0
    %v2252 = vmax.f32 %v726, 0.0
    %v2253 = vmax.f32 %v1077, 0.0
    %v2254 = vmax.f32 %v1079, 0.0
    %v2255 = vmax.f32 %v1430, 0.0
    %v2256 = vmax.f32 %v1432, 0.0
    %v2257 = vmax.f32 %v1783, 0.0
    %v2258 = vmax.f32 %v1785, 0.0
    %v2259 = vmax.f32 %v728, 0.0
    %v2260 = vmax.f32 %v730, 0.0
    %v2261 = vmax.f32 %v1081, 0.0
    %v2262 = vmax.f32 %v1083, 0.0
    %v2263 = vmax.f32 %v1434, 0.0
    %v2264 = vmax.f32 %v1436, 0.0
    %v2265 = vmax.f32 %v1787, 0.0
    %v2266 = vmax.f32 %v1789, 0.0
    %v2267 = vmax.f32 %v734, 0.0
    %v2268 = vmax.f32 %v736, 0.0
    %v2269 = vmax.f32 %v1087, 0.0
    %v2270 = vmax.f32 %v1089, 0.0
    %v2271 = vmax.f32 %v1440, 0.0
    %v2272 = vmax.f32 %v1442, 0.0
    %v2273 = vmax.f32 %v1793, 0.0
    %v2274 = vmax.f32 %v1795, 0.0
    %v2275 = vmax.f32 %v738, 0.0
    %v2276 = vmax.f32 %v740, 0.0
    %v2277 = vmax.f32 %v1091, 0.0
    %v2278 = vmax.f32 %v1093, 0.0
    %v2279 = vmax.f32 %v1444, 0.0
    %v2280 = vmax.f32 %v1446, 0.0
    %v2281 = vmax.f32 %v1797, 0.0
    %v2282 = vmax.f32 %v1799, 0.0
    %v2283 = vmax.f32 %v744, 0.0
    %v2284 = vmax.f32 %v746, 0.0
    %v2285 = vmax.f32 %v1097, 0.0
    %v2286 = vmax.f32 %v1099, 0.0
    %v2287 = vmax.f32 %v1450, 0.0
    %v2288 = vmax.f32 %v1452, 0.0
    %v2289 = vmax.f32 %v1803, 0.0
    %v2290 = vmax.f32 %v1805, 0.0
    %v2291 = vmax.f32 %v748, 0.0
    %v2292 = vmax.f32 %v750, 0.0
    %v2293 = vmax.f32 %v1101, 0.0
    %v2294 = vmax.f32 %v1103, 0.0
    %v2295 = vmax.f32 %v1454, 0.0
    %v2296 = vmax.f32 %v1456, 0.0
    %v2297 = vmax.f32 %v1807, 0.0
    %v2298 = vmax.f32 %v1809, 0.0
    %v2299 = vmax.f32 %v754, 0.0
    %v2300 = vmax.f32 %v756, 0.0
    %v2301 = vmax.f32 %v1107, 0.0
    %v2302 = vmax.f32 %v1109, 0.0
    %v2303 = vmax.f32 %v1460, 0.0
    %v2304 = vmax.f32 %v1462, 0.0
    %v2305 = vmax.f32 %v1813, 0.0
    %v2306 = vmax.f32 %v1815, 0.0
    %v2307 = vmax.f32 %v758, 0.0
    %v2308 = vmax.f32 %v760, 0.0
    %v2309 = vmax.f32 %v1111, 0.0
    %v2310 = vmax.f32 %v1113, 0.0
    %v2311 = vmax.f32 %v1464, 0.0
    %v2312 = vmax.f32 %v1466, 0.0
    %v2313 = vmax.f32 %v1817, 0.0
    %v2314 = vmax.f32 %v1819, 0.0
    %v2315 = vmax.f32 %v764, 0.0
    %v2316 = vmax.f32 %v766, 0.0
    %v2317 = vmax.f32 %v1117, 0.0
    %v2318 = vmax.f32 %v1119, 0.0
    %v2319 = vmax.f32 %v1470, 0.0
    %v2320 = vmax.f32 %v1472, 0.0
    %v2321 = vmax.f32 %v1823, 0.0
    %v2322 = vmax.f32 %v1825, 0.0
    %v2323 = vmax.f32 %v768, 0.0
    %v2324 = vmax.f32 %v770, 0.0
    %v2325 = vmax.f32 %v1121, 0.0
    %v2326 = vmax.f32 %v1123, 0.0
    %v2327 = vmax.f32 %v1474, 0.0
    %v2328 = vmax.f32 %v1476, 0.0
    %v2329 = vmax.f32 %v1827, 0.0
    %v2330 = vmax.f32 %v1829, 0.0
    %v2331 = vmax.f32 %v774, 0.0
    %v2332 = vmax.f32 %v776, 0.0
    %v2333 = vmax.f32 %v1127, 0.0
    %v2334 = vmax.f32 %v1129, 0.0
    %v2335 = vmax.f32 %v1480, 0.0
    %v2336 = vmax.f32 %v1482, 0.0
    %v2337 = vmax.f32 %v1833, 0.0
    %v2338 = vmax.f32 %v1835, 0.0
    %v2339 = vmax.f32 %v778, 0.0
    %v2340 = vmax.f32 %v780, 0.0
    %v2341 = vmax.f32 %v1131, 0.0
    %v2342 = vmax.f32 %v1133, 0.0
    %v2343 = vmax.f32 %v1484, 0.0
    %v2344 = vmax.f32 %v1486, 0.0
    %v2345 = vmax.f32 %v1837, 0.0
    %v2346 = vmax.f32 %v1839, 0.0
    %v2347 = vmax.f32 %v784, 0.0
    %v2348 = vmax.f32 %v786, 0.0
    %v2349 = vmax.f32 %v1137, 0.0
    %v2350 = vmax.f32 %v1139, 0.0
    %v2351 = vmax.f32 %v1490, 0.0
    %v2352 = vmax.f32 %v1492, 0.0
    %v2353 = vmax.f32 %v1843, 0.0
    %v2354 = vmax.f32 %v1845, 0.0
    %v2355 = vmax.f32 %v788, 0.0
    %v2356 = vmax.f32 %v790, 0.0
    %v2357 = vmax.f32 %v1141, 0.0
    %v2358 = vmax.f32 %v1143, 0.0
    %v2359 = vmax.f32 %v1494, 0.0
    %v2360 = vmax.f32 %v1496, 0.0
    %v2361 = vmax.f32 %v1847, 0.0
    %v2362 = vmax.f32 %v1849, 0.0
    %v2363 = vld [vmem:[#allocation2] sm:$0xff]
    %v2364 = vld [vmem:[#allocation2 + $0x8] sm:$0xff]
    %v2365 = vld [vmem:[#allocation2 + $0x10] sm:$0xff]
    %v2366 = vld [vmem:[#allocation2 + $0x18] sm:$0xff]
    %v2367 = vld [vmem:[#allocation2 + $0x20] sm:$0xff]
    %v2368 = vld [vmem:[#allocation2 + $0x28] sm:$0xff]
    %v2369 = vld [vmem:[#allocation2 + $0x30] sm:$0xff]
    %v2370 = vld [vmem:[#allocation2 + $0x38] sm:$0xff]
    %v2371 = vld [vmem:[#allocation2 + $0x40] sm:$0xff]
    %v2372 = vld [vmem:[#allocation2 + $0x48] sm:$0xff]
    %v2373 = vld [vmem:[#allocation2 + $0x50] sm:$0xff]
    %v2374 = vld [vmem:[#allocation2 + $0x58] sm:$0xff]
    %v2375 = vld [vmem:[#allocation2 + $0x60] sm:$0xff]
    %v2376 = vld [vmem:[#allocation2 + $0x68] sm:$0xff]
    %v2377 = vld [vmem:[#allocation2 + $0x70] sm:$0xff]
    %v2378 = vld [vmem:[#allocation2 + $0x78] sm:$0xff]
    %v2379 = vadd.f32 %v1851, %v1859
    %v2380 = vadd.f32 %v2379, %v1867
    %v2381 = vadd.f32 %v2380, %v1875
    %v2382 = vadd.f32 %v2381, %v1883
    %v2383 = vadd.f32 %v2382, %v1891
    %v2384 = vadd.f32 %v2383, %v1899
    %v2385 = vadd.f32 %v2384, %v1907
    %v2386 = vadd.f32 %v2385, %v1915
    %v2387 = vadd.f32 %v2386, %v1923
    %v2388 = vadd.f32 %v2387, %v1931
    %v2389 = vadd.f32 %v2388, %v1939
    %v2390 = vadd.f32 %v2389, %v1947
    %v2391 = vadd.f32 %v2390, %v1955
    %v2392 = vadd.f32 %v2391, %v1963
    %v2393 = vadd.f32 %v2392, %v1971
    %v2394 = vadd.f32 %v2393, %v1979
    %v2395 = vadd.f32 %v2394, %v1987
    %v2396 = vadd.f32 %v2395, %v1995
    %v2397 = vadd.f32 %v2396, %v2003
    %v2398 = vadd.f32 %v2397, %v2011
    %v2399 = vadd.f32 %v2398, %v2019
    %v2400 = vadd.f32 %v2399, %v2027
    %v2401 = vadd.f32 %v2400, %v2035
    %v2402 = vadd.f32 %v2401, %v2043
    %v2403 = vadd.f32 %v2402, %v2051
    %v2404 = vadd.f32 %v2403, %v2059
    %v2405 = vadd.f32 %v2404, %v2067
    %v2406 = vadd.f32 %v2405, %v2075
    %v2407 = vadd.f32 %v2406, %v2083
    %v2408 = vadd.f32 %v2407, %v2091
    %v2409 = vadd.f32 %v2408, %v2099
    %v2410 = vadd.f32 %v1852, %v1860
    %v2411 = vadd.f32 %v2410, %v1868
    %v2412 = vadd.f32 %v2411, %v1876
    %v2413 = vadd.f32 %v2412, %v1884
    %v2414 = vadd.f32 %v2413, %v1892
    %v2415 = vadd.f32 %v2414, %v1900
    %v2416 = vadd.f32 %v2415, %v1908
    %v2417 = vadd.f32 %v2416, %v1916
    %v2418 = vadd.f32 %v2417, %v1924
    %v2419 = vadd.f32 %v2418, %v1932
    %v2420 = vadd.f32 %v2419, %v1940
    %v2421 = vadd.f32 %v2420, %v1948
    %v2422 = vadd.f32 %v2421, %v1956
    %v2423 = vadd.f32 %v2422, %v1964
    %v2424 = vadd.f32 %v2423, %v1972
    %v2425 = vadd.f32 %v2424, %v1980
    %v2426 = vadd.f32 %v2425, %v1988
    %v2427 = vadd.f32 %v2426, %v1996
    %v2428 = vadd.f32 %v2427, %v2004
    %v2429 = vadd.f32 %v2428, %v2012
    %v2430 = vadd.f32 %v2429, %v2020
    %v2431 = vadd.f32 %v2430, %v2028
    %v2432 = vadd.f32 %v2431, %v2036
    %v2433 = vadd.f32 %v2432, %v2044
    %v2434 = vadd.f32 %v2433, %v2052
    %v2435 = vadd.f32 %v2434, %v2060
    %v2436 = vadd.f32 %v2435, %v2068
    %v2437 = vadd.f32 %v2436, %v2076
    %v2438 = vadd.f32 %v2437, %v2084
    %v2439 = vadd.f32 %v2438, %v2092
    %v2440 = vadd.f32 %v2439, %v2100
    %v2441 = vadd.f32 %v1853, %v1861
    %v2442 = vadd.f32 %v2441, %v1869
    %v2443 = vadd.f32 %v2442, %v1877
    %v2444 = vadd.f32 %v2443, %v1885
    %v2445 = vadd.f32 %v2444, %v1893
    %v2446 = vadd.f32 %v2445, %v1901
    %v2447 = vadd.f32 %v2446, %v1909
    %v2448 = vadd.f32 %v2447, %v1917
    %v2449 = vadd.f32 %v2448, %v1925
    %v2450 = vadd.f32 %v2449, %v1933
    %v2451 = vadd.f32 %v2450, %v1941
    %v2452 = vadd.f32 %v2451, %v1949
    %v2453 = vadd.f32 %v2452, %v1957
    %v2454 = vadd.f32 %v2453, %v1965
    %v2455 = vadd.f32 %v2454, %v1973
    %v2456 = vadd.f32 %v2455, %v1981
    %v2457 = vadd.f32 %v2456, %v1989
    %v2458 = vadd.f32 %v2457, %v1997
    %v2459 = vadd.f32 %v2458, %v2005
    %v2460 = vadd.f32 %v2459, %v2013
    %v2461 = vadd.f32 %v2460, %v2021
    %v2462 = vadd.f32 %v2461, %v2029
    %v2463 = vadd.f32 %v2462, %v2037
    %v2464 = vadd.f32 %v2463, %v2045
    %v2465 = vadd.f32 %v2464, %v2053
    %v2466 = vadd.f32 %v2465, %v2061
    %v2467 = vadd.f32 %v2466, %v2069
    %v2468 = vadd.f32 %v2467, %v2077
    %v2469 = vadd.f32 %v2468, %v2085
    %v2470 = vadd.f32 %v2469, %v2093
    %v2471 = vadd.f32 %v2470, %v2101
    %v2472 = vadd.f32 %v1854, %v1862
    %v2473 = vadd.f32 %v2472, %v1870
    %v2474 = vadd.f32 %v2473, %v1878
    %v2475 = vadd.f32 %v2474, %v1886
    %v2476 = vadd.f32 %v2475, %v1894
    %v2477 = vadd.f32 %v2476, %v1902
    %v2478 = vadd.f32 %v2477, %v1910
    %v2479 = vadd.f32 %v2478, %v1918
    %v2480 = vadd.f32 %v2479, %v1926
    %v2481 = vadd.f32 %v2480, %v1934
    %v2482 = vadd.f32 %v2481, %v1942
    %v2483 = vadd.f32 %v2482, %v1950
    %v2484 = vadd.f32 %v2483, %v1958
    %v2485 = vadd.f32 %v2484, %v1966
    %v2486 = vadd.f32 %v2485, %v1974
    %v2487 = vadd.f32 %v2486, %v1982
    %v2488 = vadd.f32 %v2487, %v1990
    %v2489 = vadd.f32 %v2488, %v1998
    %v2490 = vadd.f32 %v2489, %v2006
    %v2491 = vadd.f32 %v2490, %v2014
    %v2492 = vadd.f32 %v2491, %v2022
    %v2493 = vadd.f32 %v2492, %v2030
    %v2494 = vadd.f32 %v2493, %v2038
    %v2495 = vadd.f32 %v2494, %v2046
    %v2496 = vadd.f32 %v2495, %v2054
    %v2497 = vadd.f32 %v2496, %v2062
    %v2498 = vadd.f32 %v2497, %v2070
    %v2499 = vadd.f32 %v2498, %v2078
    %v2500 = vadd.f32 %v2499, %v2086
    %v2501 = vadd.f32 %v2500, %v2094
    %v2502 = vadd.f32 %v2501, %v2102
    %v2503 = vadd.f32 %v1855, %v1863
    %v2504 = vadd.f32 %v2503, %v1871
    %v2505 = vadd.f32 %v2504, %v1879
    %v2506 = vadd.f32 %v2505, %v1887
    %v2507 = vadd.f32 %v2506, %v1895
    %v2508 = vadd.f32 %v2507, %v1903
    %v2509 = vadd.f32 %v2508, %v1911
    %v2510 = vadd.f32 %v2509, %v1919
    %v2511 = vadd.f32 %v2510, %v1927
    %v2512 = vadd.f32 %v2511, %v1935
    %v2513 = vadd.f32 %v2512, %v1943
    %v2514 = vadd.f32 %v2513, %v1951
    %v2515 = vadd.f32 %v2514, %v1959
    %v2516 = vadd.f32 %v2515, %v1967
    %v2517 = vadd.f32 %v2516, %v1975
    %v2518 = vadd.f32 %v2517, %v1983
    %v2519 = vadd.f32 %v2518, %v1991
    %v2520 = vadd.f32 %v2519, %v1999
    %v2521 = vadd.f32 %v2520, %v2007
    %v2522 = vadd.f32 %v2521, %v2015
    %v2523 = vadd.f32 %v2522, %v2023
    %v2524 = vadd.f32 %v2523, %v2031
    %v2525 = vadd.f32 %v2524, %v2039
    %v2526 = vadd.f32 %v2525, %v2047
    %v2527 = vadd.f32 %v2526, %v2055
    %v2528 = vadd.f32 %v2527, %v2063
    %v2529 = vadd.f32 %v2528, %v2071
    %v2530 = vadd.f32 %v2529, %v2079
    %v2531 = vadd.f32 %v2530, %v2087
    %v2532 = vadd.f32 %v2531, %v2095
    %v2533 = vadd.f32 %v2532, %v2103
    %v2534 = vadd.f32 %v1856, %v1864
    %v2535 = vadd.f32 %v2534, %v1872
    %v2536 = vadd.f32 %v2535, %v1880
    %v2537 = vadd.f32 %v2536, %v1888
    %v2538 = vadd.f32 %v2537, %v1896
    %v2539 = vadd.f32 %v2538, %v1904
    %v2540 = vadd.f32 %v2539, %v1912
    %v2541 = vadd.f32 %v2540, %v1920
    %v2542 = vadd.f32 %v2541, %v1928
    %v2543 = vadd.f32 %v2542, %v1936
    %v2544 = vadd.f32 %v2543, %v1944
    %v2545 = vadd.f32 %v2544, %v1952
    %v2546 = vadd.f32 %v2545, %v1960
    %v2547 = vadd.f32 %v2546, %v1968
    %v2548 = vadd.f32 %v2547, %v1976
    %v2549 = vadd.f32 %v2548, %v1984
    %v2550 = vadd.f32 %v2549, %v1992
    %v2551 = vadd.f32 %v2550, %v2000
    %v2552 = vadd.f32 %v2551, %v2008
    %v2553 = vadd.f32 %v2552, %v2016
    %v2554 = vadd.f32 %v2553, %v2024
    %v2555 = vadd.f32 %v2554, %v2032
    %v2556 = vadd.f32 %v2555, %v2040
    %v2557 = vadd.f32 %v2556, %v2048
    %v2558 = vadd.f32 %v2557, %v2056
    %v2559 = vadd.f32 %v2558, %v2064
    %v2560 = vadd.f32 %v2559, %v2072
    %v2561 = vadd.f32 %v2560, %v2080
    %v2562 = vadd.f32 %v2561, %v2088
    %v2563 = vadd.f32 %v2562, %v2096
    %v2564 = vadd.f32 %v2563, %v2104
    %v2565 = vadd.f32 %v1857, %v1865
    %v2566 = vadd.f32 %v2565, %v1873
    %v2567 = vadd.f32 %v2566, %v1881
    %v2568 = vadd.f32 %v2567, %v1889
    %v2569 = vadd.f32 %v2568, %v1897
    %v2570 = vadd.f32 %v2569, %v1905
    %v2571 = vadd.f32 %v2570, %v1913
    %v2572 = vadd.f32 %v2571, %v1921
    %v2573 = vadd.f32 %v2572, %v1929
    %v2574 = vadd.f32 %v2573, %v1937
    %v2575 = vadd.f32 %v2574, %v1945
    %v2576 = vadd.f32 %v2575, %v1953
    %v2577 = vadd.f32 %v2576, %v1961
    %v2578 = vadd.f32 %v2577, %v1969
    %v2579 = vadd.f32 %v2578, %v1977
    %v2580 = vadd.f32 %v2579, %v1985
    %v2581 = vadd.f32 %v2580, %v1993
    %v2582 = vadd.f32 %v2581, %v2001
    %v2583 = vadd.f32 %v2582, %v2009
    %v2584 = vadd.f32 %v2583, %v2017
    %v2585 = vadd.f32 %v2584, %v2025
    %v2586 = vadd.f32 %v2585, %v2033
    %v2587 = vadd.f32 %v2586, %v2041
    %v2588 = vadd.f32 %v2587, %v2049
    %v2589 = vadd.f32 %v2588, %v2057
    %v2590 = vadd.f32 %v2589, %v2065
    %v2591 = vadd.f32 %v2590, %v2073
    %v2592 = vadd.f32 %v2591, %v2081
    %v2593 = vadd.f32 %v2592, %v2089
    %v2594 = vadd.f32 %v2593, %v2097
    %v2595 = vadd.f32 %v2594, %v2105
    %v2596 = vadd.f32 %v1858, %v1866
    %v2597 = vadd.f32 %v2596, %v1874
    %v2598 = vadd.f32 %v2597, %v1882
    %v2599 = vadd.f32 %v2598, %v1890
    %v2600 = vadd.f32 %v2599, %v1898
    %v2601 = vadd.f32 %v2600, %v1906
    %v2602 = vadd.f32 %v2601, %v1914
    %v2603 = vadd.f32 %v2602, %v1922
    %v2604 = vadd.f32 %v2603, %v1930
    %v2605 = vadd.f32 %v2604, %v1938
    %v2606 = vadd.f32 %v2605, %v1946
    %v2607 = vadd.f32 %v2606, %v1954
    %v2608 = vadd.f32 %v2607, %v1962
    %v2609 = vadd.f32 %v2608, %v1970
    %v2610 = vadd.f32 %v2609, %v1978
    %v2611 = vadd.f32 %v2610, %v1986
    %v2612 = vadd.f32 %v2611, %v1994
    %v2613 = vadd.f32 %v2612, %v2002
    %v2614 = vadd.f32 %v2613, %v2010
    %v2615 = vadd.f32 %v2614, %v2018
    %v2616 = vadd.f32 %v2615, %v2026
    %v2617 = vadd.f32 %v2616, %v2034
    %v2618 = vadd.f32 %v2617, %v2042
    %v2619 = vadd.f32 %v2618, %v2050
    %v2620 = vadd.f32 %v2619, %v2058
    %v2621 = vadd.f32 %v2620, %v2066
    %v2622 = vadd.f32 %v2621, %v2074
    %v2623 = vadd.f32 %v2622, %v2082
    %v2624 = vadd.f32 %v2623, %v2090
    %v2625 = vadd.f32 %v2624, %v2098
    %v2626 = vadd.f32 %v2625, %v2106
    %v2627 = vadd.f32 %v2107, %v2115
    %v2628 = vadd.f32 %v2627, %v2123
    %v2629 = vadd.f32 %v2628, %v2131
    %v2630 = vadd.f32 %v2629, %v2139
    %v2631 = vadd.f32 %v2630, %v2147
    %v2632 = vadd.f32 %v2631, %v2155
    %v2633 = vadd.f32 %v2632, %v2163
    %v2634 = vadd.f32 %v2633, %v2171
    %v2635 = vadd.f32 %v2634, %v2179
    %v2636 = vadd.f32 %v2635, %v2187
    %v2637 = vadd.f32 %v2636, %v2195
    %v2638 = vadd.f32 %v2637, %v2203
    %v2639 = vadd.f32 %v2638, %v2211
    %v2640 = vadd.f32 %v2639, %v2219
    %v2641 = vadd.f32 %v2640, %v2227
    %v2642 = vadd.f32 %v2641, %v2235
    %v2643 = vadd.f32 %v2642, %v2243
    %v2644 = vadd.f32 %v2643, %v2251
    %v2645 = vadd.f32 %v2644, %v2259
    %v2646 = vadd.f32 %v2645, %v2267
    %v2647 = vadd.f32 %v2646, %v2275
    %v2648 = vadd.f32 %v2647, %v2283
    %v2649 = vadd.f32 %v2648, %v2291
    %v2650 = vadd.f32 %v2649, %v2299
    %v2651 = vadd.f32 %v2650, %v2307
    %v2652 = vadd.f32 %v2651, %v2315
    %v2653 = vadd.f32 %v2652, %v2323
    %v2654 = vadd.f32 %v2653, %v2331
    %v2655 = vadd.f32 %v2654, %v2339
    %v2656 = vadd.f32 %v2655, %v2347
    %v2657 = vadd.f32 %v2656, %v2355
    %v2658 = vadd.f32 %v2108, %v2116
    %v2659 = vadd.f32 %v2658, %v2124
    %v2660 = vadd.f32 %v2659, %v2132
    %v2661 = vadd.f32 %v2660, %v2140
    %v2662 = vadd.f32 %v2661, %v2148
    %v2663 = vadd.f32 %v2662, %v2156
    %v2664 = vadd.f32 %v2663, %v2164
    %v2665 = vadd.f32 %v2664, %v2172
    %v2666 = vadd.f32 %v2665, %v2180
    %v2667 = vadd.f32 %v2666, %v2188
    %v2668 = vadd.f32 %v2667, %v2196
    %v2669 = vadd.f32 %v2668, %v2204
    %v2670 = vadd.f32 %v2669, %v2212
    %v2671 = vadd.f32 %v2670, %v2220
    %v2672 = vadd.f32 %v2671, %v2228
    %v2673 = vadd.f32 %v2672, %v2236
    %v2674 = vadd.f32 %v2673, %v2244
    %v2675 = vadd.f32 %v2674, %v2252
    %v2676 = vadd.f32 %v2675, %v2260
    %v2677 = vadd.f32 %v2676, %v2268
    %v2678 = vadd.f32 %v2677, %v2276
    %v2679 = vadd.f32 %v2678, %v2284
    %v2680 = vadd.f32 %v2679, %v2292
    %v2681 = vadd.f32 %v2680, %v2300
    %v2682 = vadd.f32 %v2681, %v2308
    %v2683 = vadd.f32 %v2682, %v2316
    %v2684 = vadd.f32 %v2683, %v2324
    %v2685 = vadd.f32 %v2684, %v2332
    %v2686 = vadd.f32 %v2685, %v2340
    %v2687 = vadd.f32 %v2686, %v2348
    %v2688 = vadd.f32 %v2687, %v2356
    %v2689 = vadd.f32 %v2109, %v2117
    %v2690 = vadd.f32 %v2689, %v2125
    %v2691 = vadd.f32 %v2690, %v2133
    %v2692 = vadd.f32 %v2691, %v2141
    %v2693 = vadd.f32 %v2692, %v2149
    %v2694 = vadd.f32 %v2693, %v2157
    %v2695 = vadd.f32 %v2694, %v2165
    %v2696 = vadd.f32 %v2695, %v2173
    %v2697 = vadd.f32 %v2696, %v2181
    %v2698 = vadd.f32 %v2697, %v2189
    %v2699 = vadd.f32 %v2698, %v2197
    %v2700 = vadd.f32 %v2699, %v2205
    %v2701 = vadd.f32 %v2700, %v2213
    %v2702 = vadd.f32 %v2701, %v2221
    %v2703 = vadd.f32 %v2702, %v2229
    %v2704 = vadd.f32 %v2703, %v2237
    %v2705 = vadd.f32 %v2704, %v2245
    %v2706 = vadd.f32 %v2705, %v2253
    %v2707 = vadd.f32 %v2706, %v2261
    %v2708 = vadd.f32 %v2707, %v2269
    %v2709 = vadd.f32 %v2708, %v2277
    %v2710 = vadd.f32 %v2709, %v2285
    %v2711 = vadd.f32 %v2710, %v2293
    %v2712 = vadd.f32 %v2711, %v2301
    %v2713 = vadd.f32 %v2712, %v2309
    %v2714 = vadd.f32 %v2713, %v2317
    %v2715 = vadd.f32 %v2714, %v2325
    %v2716 = vadd.f32 %v2715, %v2333
    %v2717 = vadd.f32 %v2716, %v2341
    %v2718 = vadd.f32 %v2717, %v2349
    %v2719 = vadd.f32 %v2718, %v2357
    %v2720 = vadd.f32 %v2110, %v2118
    %v2721 = vadd.f32 %v2720, %v2126
    %v2722 = vadd.f32 %v2721, %v2134
    %v2723 = vadd.f32 %v2722, %v2142
    %v2724 = vadd.f32 %v2723, %v2150
    %v2725 = vadd.f32 %v2724, %v2158
    %v2726 = vadd.f32 %v2725, %v2166
    %v2727 = vadd.f32 %v2726, %v2174
    %v2728 = vadd.f32 %v2727, %v2182
    %v2729 = vadd.f32 %v2728, %v2190
    %v2730 = vadd.f32 %v2729, %v2198
    %v2731 = vadd.f32 %v2730, %v2206
    %v2732 = vadd.f32 %v2731, %v2214
    %v2733 = vadd.f32 %v2732, %v2222
    %v2734 = vadd.f32 %v2733, %v2230
    %v2735 = vadd.f32 %v2734, %v2238
    %v2736 = vadd.f32 %v2735, %v2246
    %v2737 = vadd.f32 %v2736, %v2254
    %v2738 = vadd.f32 %v2737, %v2262
    %v2739 = vadd.f32 %v2738, %v2270
    %v2740 = vadd.f32 %v2739, %v2278
    %v2741 = vadd.f32 %v2740, %v2286
    %v2742 = vadd.f32 %v2741, %v2294
    %v2743 = vadd.f32 %v2742, %v2302
    %v2744 = vadd.f32 %v2743, %v2310
    %v2745 = vadd.f32 %v2744, %v2318
    %v2746 = vadd.f32 %v2745, %v2326
    %v2747 = vadd.f32 %v2746, %v2334
    %v2748 = vadd.f32 %v2747, %v2342
    %v2749 = vadd.f32 %v2748, %v2350
    %v2750 = vadd.f32 %v2749, %v2358
    %v2751 = vadd.f32 %v2111, %v2119
    %v2752 = vadd.f32 %v2751, %v2127
    %v2753 = vadd.f32 %v2752, %v2135
    %v2754 = vadd.f32 %v2753, %v2143
    %v2755 = vadd.f32 %v2754, %v2151
    %v2756 = vadd.f32 %v2755, %v2159
    %v2757 = vadd.f32 %v2756, %v2167
    %v2758 = vadd.f32 %v2757, %v2175
    %v2759 = vadd.f32 %v2758, %v2183
    %v2760 = vadd.f32 %v2759, %v2191
    %v2761 = vadd.f32 %v2760, %v2199
    %v2762 = vadd.f32 %v2761, %v2207
    %v2763 = vadd.f32 %v2762, %v2215
    %v2764 = vadd.f32 %v2763, %v2223
    %v2765 = vadd.f32 %v2764, %v2231
    %v2766 = vadd.f32 %v2765, %v2239
    %v2767 = vadd.f32 %v2766, %v2247
    %v2768 = vadd.f32 %v2767, %v2255
    %v2769 = vadd.f32 %v2768, %v2263
    %v2770 = vadd.f32 %v2769, %v2271
    %v2771 = vadd.f32 %v2770, %v2279
    %v2772 = vadd.f32 %v2771, %v2287
    %v2773 = vadd.f32 %v2772, %v2295
    %v2774 = vadd.f32 %v2773, %v2303
    %v2775 = vadd.f32 %v2774, %v2311
    %v2776 = vadd.f32 %v2775, %v2319
    %v2777 = vadd.f32 %v2776, %v2327
    %v2778 = vadd.f32 %v2777, %v2335
    %v2779 = vadd.f32 %v2778, %v2343
    %v2780 = vadd.f32 %v2779, %v2351
    %v2781 = vadd.f32 %v2780, %v2359
    %v2782 = vadd.f32 %v2112, %v2120
    %v2783 = vadd.f32 %v2782, %v2128
    %v2784 = vadd.f32 %v2783, %v2136
    %v2785 = vadd.f32 %v2784, %v2144
    %v2786 = vadd.f32 %v2785, %v2152
    %v2787 = vadd.f32 %v2786, %v2160
    %v2788 = vadd.f32 %v2787, %v2168
    %v2789 = vadd.f32 %v2788, %v2176
    %v2790 = vadd.f32 %v2789, %v2184
    %v2791 = vadd.f32 %v2790, %v2192
    %v2792 = vadd.f32 %v2791, %v2200
    %v2793 = vadd.f32 %v2792, %v2208
    %v2794 = vadd.f32 %v2793, %v2216
    %v2795 = vadd.f32 %v2794, %v2224
    %v2796 = vadd.f32 %v2795, %v2232
    %v2797 = vadd.f32 %v2796, %v2240
    %v2798 = vadd.f32 %v2797, %v2248
    %v2799 = vadd.f32 %v2798, %v2256
    %v2800 = vadd.f32 %v2799, %v2264
    %v2801 = vadd.f32 %v2800, %v2272
    %v2802 = vadd.f32 %v2801, %v2280
    %v2803 = vadd.f32 %v2802, %v2288
    %v2804 = vadd.f32 %v2803, %v2296
    %v2805 = vadd.f32 %v2804, %v2304
    %v2806 = vadd.f32 %v2805, %v2312
    %v2807 = vadd.f32 %v2806, %v2320
    %v2808 = vadd.f32 %v2807, %v2328
    %v2809 = vadd.f32 %v2808, %v2336
    %v2810 = vadd.f32 %v2809, %v2344
    %v2811 = vadd.f32 %v2810, %v2352
    %v2812 = vadd.f32 %v2811, %v2360
    %v2813 = vadd.f32 %v2113, %v2121
    %v2814 = vadd.f32 %v2813, %v2129
    %v2815 = vadd.f32 %v2814, %v2137
    %v2816 = vadd.f32 %v2815, %v2145
    %v2817 = vadd.f32 %v2816, %v2153
    %v2818 = vadd.f32 %v2817, %v2161
    %v2819 = vadd.f32 %v2818, %v2169
    %v2820 = vadd.f32 %v2819, %v2177
    %v2821 = vadd.f32 %v2820, %v2185
    %v2822 = vadd.f32 %v2821, %v2193
    %v2823 = vadd.f32 %v2822, %v2201
    %v2824 = vadd.f32 %v2823, %v2209
    %v2825 = vadd.f32 %v2824, %v2217
    %v2826 = vadd.f32 %v2825, %v2225
    %v2827 = vadd.f32 %v2826, %v2233
    %v2828 = vadd.f32 %v2827, %v2241
    %v2829 = vadd.f32 %v2828, %v2249
    %v2830 = vadd.f32 %v2829, %v2257
    %v2831 = vadd.f32 %v2830, %v2265
    %v2832 = vadd.f32 %v2831, %v2273
    %v2833 = vadd.f32 %v2832, %v2281
    %v2834 = vadd.f32 %v2833, %v2289
    %v2835 = vadd.f32 %v2834, %v2297
    %v2836 = vadd.f32 %v2835, %v2305
    %v2837 = vadd.f32 %v2836, %v2313
    %v2838 = vadd.f32 %v2837, %v2321
    %v2839 = vadd.f32 %v2838, %v2329
    %v2840 = vadd.f32 %v2839, %v2337
    %v2841 = vadd.f32 %v2840, %v2345
    %v2842 = vadd.f32 %v2841, %v2353
    %v2843 = vadd.f32 %v2842, %v2361
    %v2844 = vadd.f32 %v2114, %v2122
    %v2845 = vadd.f32 %v2844, %v2130
    %v2846 = vadd.f32 %v2845, %v2138
    %v2847 = vadd.f32 %v2846, %v2146
    %v2848 = vadd.f32 %v2847, %v2154
    %v2849 = vadd.f32 %v2848, %v2162
    %v2850 = vadd.f32 %v2849, %v2170
    %v2851 = vadd.f32 %v2850, %v2178
    %v2852 = vadd.f32 %v2851, %v2186
    %v2853 = vadd.f32 %v2852, %v2194
    %v2854 = vadd.f32 %v2853, %v2202
    %v2855 = vadd.f32 %v2854, %v2210
    %v2856 = vadd.f32 %v2855, %v2218
    %v2857 = vadd.f32 %v2856, %v2226
    %v2858 = vadd.f32 %v2857, %v2234
    %v2859 = vadd.f32 %v2858, %v2242
    %v2860 = vadd.f32 %v2859, %v2250
    %v2861 = vadd.f32 %v2860, %v2258
    %v2862 = vadd.f32 %v2861, %v2266
    %v2863 = vadd.f32 %v2862, %v2274
    %v2864 = vadd.f32 %v2863, %v2282
    %v2865 = vadd.f32 %v2864, %v2290
    %v2866 = vadd.f32 %v2865, %v2298
    %v2867 = vadd.f32 %v2866, %v2306
    %v2868 = vadd.f32 %v2867, %v2314
    %v2869 = vadd.f32 %v2868, %v2322
    %v2870 = vadd.f32 %v2869, %v2330
    %v2871 = vadd.f32 %v2870, %v2338
    %v2872 = vadd.f32 %v2871, %v2346
    %v2873 = vadd.f32 %v2872, %v2354
    %v2874 = vadd.f32 %v2873, %v2362
    %v2875 = vadd.f32 %v2363, %v2409
    %v2876 = vadd.f32 %v2364, %v2440
    %v2877 = vadd.f32 %v2365, %v2471
    %v2878 = vadd.f32 %v2366, %v2502
    %v2879 = vadd.f32 %v2367, %v2533
    %v2880 = vadd.f32 %v2368, %v2564
    %v2881 = vadd.f32 %v2369, %v2595
    %v2882 = vadd.f32 %v2370, %v2626
    %v2883 = vadd.f32 %v2371, %v2657
    %v2884 = vadd.f32 %v2372, %v2688
    %v2885 = vadd.f32 %v2373, %v2719
    %v2886 = vadd.f32 %v2374, %v2750
    %v2887 = vadd.f32 %v2375, %v2781
    %v2888 = vadd.f32 %v2376, %v2812
    %v2889 = vadd.f32 %v2377, %v2843
    %v2890 = vadd.f32 %v2378, %v2874
    %2891 = vst [vmem:[#allocation2] sm:$0xff] %v2875
    %2892 = vst [vmem:[#allocation2 + $0x8] sm:$0xff] %v2876
    %2893 = vst [vmem:[#allocation2 + $0x10] sm:$0xff] %v2877
    %2894 = vst [vmem:[#allocation2 + $0x18] sm:$0xff] %v2878
    %2895 = vst [vmem:[#allocation2 + $0x20] sm:$0xff] %v2879
    %2896 = vst [vmem:[#allocation2 + $0x28] sm:$0xff] %v2880
    %2897 = vst [vmem:[#allocation2 + $0x30] sm:$0xff] %v2881
    %2898 = vst [vmem:[#allocation2 + $0x38] sm:$0xff] %v2882
    %2899 = vst [vmem:[#allocation2 + $0x40] sm:$0xff] %v2883
    %2900 = vst [vmem:[#allocation2 + $0x48] sm:$0xff] %v2884
    %2901 = vst [vmem:[#allocation2 + $0x50] sm:$0xff] %v2885
    %2902 = vst [vmem:[#allocation2 + $0x58] sm:$0xff] %v2886
    %2903 = vst [vmem:[#allocation2 + $0x60] sm:$0xff] %v2887
    %2904 = vst [vmem:[#allocation2 + $0x68] sm:$0xff] %v2888
    %2905 = vst [vmem:[#allocation2 + $0x70] sm:$0xff] %v2889
    %2906 = vst [vmem:[#allocation2 + $0x78] sm:$0xff] %v2890
    %v2907 = vld [vmem:[#allocation3] sm:$0xff]
    %v2908 = vld [vmem:[#allocation3 + $0x8] sm:$0xff]
    %v2909 = vld [vmem:[#allocation3 + $0x10] sm:$0xff]
    %v2910 = vld [vmem:[#allocation3 + $0x18] sm:$0xff]
    %v2911 = vld [vmem:[#allocation3 + $0x20] sm:$0xff]
    %v2912 = vld [vmem:[#allocation3 + $0x28] sm:$0xff]
    %v2913 = vld [vmem:[#allocation3 + $0x30] sm:$0xff]
    %v2914 = vld [vmem:[#allocation3 + $0x38] sm:$0xff]
    %v2915 = vld [vmem:[#allocation3 + $0x40] sm:$0xff]
    %v2916 = vld [vmem:[#allocation3 + $0x48] sm:$0xff]
    %v2917 = vld [vmem:[#allocation3 + $0x50] sm:$0xff]
    %v2918 = vld [vmem:[#allocation3 + $0x58] sm:$0xff]
    %v2919 = vld [vmem:[#allocation3 + $0x60] sm:$0xff]
    %v2920 = vld [vmem:[#allocation3 + $0x68] sm:$0xff]
    %v2921 = vld [vmem:[#allocation3 + $0x70] sm:$0xff]
    %v2922 = vld [vmem:[#allocation3 + $0x78] sm:$0xff]
    %v2923 = vmax.f32 %v1851, %v1859
    %v2924 = vmax.f32 %v2923, %v1867
    %v2925 = vmax.f32 %v2924, %v1875
    %v2926 = vmax.f32 %v2925, %v1883
    %v2927 = vmax.f32 %v2926, %v1891
    %v2928 = vmax.f32 %v2927, %v1899
    %v2929 = vmax.f32 %v2928, %v1907
    %v2930 = vmax.f32 %v2929, %v1915
    %v2931 = vmax.f32 %v2930, %v1923
    %v2932 = vmax.f32 %v2931, %v1931
    %v2933 = vmax.f32 %v2932, %v1939
    %v2934 = vmax.f32 %v2933, %v1947
    %v2935 = vmax.f32 %v2934, %v1955
    %v2936 = vmax.f32 %v2935, %v1963
    %v2937 = vmax.f32 %v2936, %v1971
    %v2938 = vmax.f32 %v2937, %v1979
    %v2939 = vmax.f32 %v2938, %v1987
    %v2940 = vmax.f32 %v2939, %v1995
    %v2941 = vmax.f32 %v2940, %v2003
    %v2942 = vmax.f32 %v2941, %v2011
    %v2943 = vmax.f32 %v2942, %v2019
    %v2944 = vmax.f32 %v2943, %v2027
    %v2945 = vmax.f32 %v2944, %v2035
    %v2946 = vmax.f32 %v2945, %v2043
    %v2947 = vmax.f32 %v2946, %v2051
    %v2948 = vmax.f32 %v2947, %v2059
    %v2949 = vmax.f32 %v2948, %v2067
    %v2950 = vmax.f32 %v2949, %v2075
    %v2951 = vmax.f32 %v2950, %v2083
    %v2952 = vmax.f32 %v2951, %v2091
    %v2953 = vmax.f32 %v2952, %v2099
    %v2954 = vmax.f32 %v1852, %v1860
    %v2955 = vmax.f32 %v2954, %v1868
    %v2956 = vmax.f32 %v2955, %v1876
    %v2957 = vmax.f32 %v2956, %v1884
    %v2958 = vmax.f32 %v2957, %v1892
    %v2959 = vmax.f32 %v2958, %v1900
    %v2960 = vmax.f32 %v2959, %v1908
    %v2961 = vmax.f32 %v2960, %v1916
    %v2962 = vmax.f32 %v2961, %v1924
    %v2963 = vmax.f32 %v2962, %v1932
    %v2964 = vmax.f32 %v2963, %v1940
    %v2965 = vmax.f32 %v2964, %v1948
    %v2966 = vmax.f32 %v2965, %v1956
    %v2967 = vmax.f32 %v2966, %v1964
    %v2968 = vmax.f32 %v2967, %v1972
    %v2969 = vmax.f32 %v2968, %v1980
    %v2970 = vmax.f32 %v2969, %v1988
    %v2971 = vmax.f32 %v2970, %v1996
    %v2972 = vmax.f32 %v2971, %v2004
    %v2973 = vmax.f32 %v2972, %v2012
    %v2974 = vmax.f32 %v2973, %v2020
    %v2975 = vmax.f32 %v2974, %v2028
    %v2976 = vmax.f32 %v2975, %v2036
    %v2977 = vmax.f32 %v2976, %v2044
    %v2978 = vmax.f32 %v2977, %v2052
    %v2979 = vmax.f32 %v2978, %v2060
    %v2980 = vmax.f32 %v2979, %v2068
    %v2981 = vmax.f32 %v2980, %v2076
    %v2982 = vmax.f32 %v2981, %v2084
    %v2983 = vmax.f32 %v2982, %v2092
    %v2984 = vmax.f32 %v2983, %v2100
    %v2985 = vmax.f32 %v1853, %v1861
    %v2986 = vmax.f32 %v2985, %v1869
    %v2987 = vmax.f32 %v2986, %v1877
    %v2988 = vmax.f32 %v2987, %v1885
    %v2989 = vmax.f32 %v2988, %v1893
    %v2990 = vmax.f32 %v2989, %v1901
    %v2991 = vmax.f32 %v2990, %v1909
    %v2992 = vmax.f32 %v2991, %v1917
    %v2993 = vmax.f32 %v2992, %v1925
    %v2994 = vmax.f32 %v2993, %v1933
    %v2995 = vmax.f32 %v2994, %v1941
    %v2996 = vmax.f32 %v2995, %v1949
    %v2997 = vmax.f32 %v2996, %v1957
    %v2998 = vmax.f32 %v2997, %v1965
    %v2999 = vmax.f32 %v2998, %v1973
    %v3000 = vmax.f32 %v2999, %v1981
    %v3001 = vmax.f32 %v3000, %v1989
    %v3002 = vmax.f32 %v3001, %v1997
    %v3003 = vmax.f32 %v3002, %v2005
    %v3004 = vmax.f32 %v3003, %v2013
    %v3005 = vmax.f32 %v3004, %v2021
    %v3006 = vmax.f32 %v3005, %v2029
    %v3007 = vmax.f32 %v3006, %v2037
    %v3008 = vmax.f32 %v3007, %v2045
    %v3009 = vmax.f32 %v3008, %v2053
    %v3010 = vmax.f32 %v3009, %v2061
    %v3011 = vmax.f32 %v3010, %v2069
    %v3012 = vmax.f32 %v3011, %v2077
    %v3013 = vmax.f32 %v3012, %v2085
    %v3014 = vmax.f32 %v3013, %v2093
    %v3015 = vmax.f32 %v3014, %v2101
    %v3016 = vmax.f32 %v1854, %v1862
    %v3017 = vmax.f32 %v3016, %v1870
    %v3018 = vmax.f32 %v3017, %v1878
    %v3019 = vmax.f32 %v3018, %v1886
    %v3020 = vmax.f32 %v3019, %v1894
    %v3021 = vmax.f32 %v3020, %v1902
    %v3022 = vmax.f32 %v3021, %v1910
    %v3023 = vmax.f32 %v3022, %v1918
    %v3024 = vmax.f32 %v3023, %v1926
    %v3025 = vmax.f32 %v3024, %v1934
    %v3026 = vmax.f32 %v3025, %v1942
    %v3027 = vmax.f32 %v3026, %v1950
    %v3028 = vmax.f32 %v3027, %v1958
    %v3029 = vmax.f32 %v3028, %v1966
    %v3030 = vmax.f32 %v3029, %v1974
    %v3031 = vmax.f32 %v3030, %v1982
    %v3032 = vmax.f32 %v3031, %v1990
    %v3033 = vmax.f32 %v3032, %v1998
    %v3034 = vmax.f32 %v3033, %v2006
    %v3035 = vmax.f32 %v3034, %v2014
    %v3036 = vmax.f32 %v3035, %v2022
    %v3037 = vmax.f32 %v3036, %v2030
    %v3038 = vmax.f32 %v3037, %v2038
    %v3039 = vmax.f32 %v3038, %v2046
    %v3040 = vmax.f32 %v3039, %v2054
    %v3041 = vmax.f32 %v3040, %v2062
    %v3042 = vmax.f32 %v3041, %v2070
    %v3043 = vmax.f32 %v3042, %v2078
    %v3044 = vmax.f32 %v3043, %v2086
    %v3045 = vmax.f32 %v3044, %v2094
    %v3046 = vmax.f32 %v3045, %v2102
    %v3047 = vmax.f32 %v1855, %v1863
    %v3048 = vmax.f32 %v3047, %v1871
    %v3049 = vmax.f32 %v3048, %v1879
    %v3050 = vmax.f32 %v3049, %v1887
    %v3051 = vmax.f32 %v3050, %v1895
    %v3052 = vmax.f32 %v3051, %v1903
    %v3053 = vmax.f32 %v3052, %v1911
    %v3054 = vmax.f32 %v3053, %v1919
    %v3055 = vmax.f32 %v3054, %v1927
    %v3056 = vmax.f32 %v3055, %v1935
    %v3057 = vmax.f32 %v3056, %v1943
    %v3058 = vmax.f32 %v3057, %v1951
    %v3059 = vmax.f32 %v3058, %v1959
    %v3060 = vmax.f32 %v3059, %v1967
    %v3061 = vmax.f32 %v3060, %v1975
    %v3062 = vmax.f32 %v3061, %v1983
    %v3063 = vmax.f32 %v3062, %v1991
    %v3064 = vmax.f32 %v3063, %v1999
    %v3065 = vmax.f32 %v3064, %v2007
    %v3066 = vmax.f32 %v3065, %v2015
    %v3067 = vmax.f32 %v3066, %v2023
    %v3068 = vmax.f32 %v3067, %v2031
    %v3069 = vmax.f32 %v3068, %v2039
    %v3070 = vmax.f32 %v3069, %v2047
    %v3071 = vmax.f32 %v3070, %v2055
    %v3072 = vmax.f32 %v3071, %v2063
    %v3073 = vmax.f32 %v3072, %v2071
    %v3074 = vmax.f32 %v3073, %v2079
    %v3075 = vmax.f32 %v3074, %v2087
    %v3076 = vmax.f32 %v3075, %v2095
    %v3077 = vmax.f32 %v3076, %v2103
    %v3078 = vmax.f32 %v1856, %v1864
    %v3079 = vmax.f32 %v3078, %v1872
    %v3080 = vmax.f32 %v3079, %v1880
    %v3081 = vmax.f32 %v3080, %v1888
    %v3082 = vmax.f32 %v3081, %v1896
    %v3083 = vmax.f32 %v3082, %v1904
    %v3084 = vmax.f32 %v3083, %v1912
    %v3085 = vmax.f32 %v3084, %v1920
    %v3086 = vmax.f32 %v3085, %v1928
    %v3087 = vmax.f32 %v3086, %v1936
    %v3088 = vmax.f32 %v3087, %v1944
    %v3089 = vmax.f32 %v3088, %v1952
    %v3090 = vmax.f32 %v3089, %v1960
    %v3091 = vmax.f32 %v3090, %v1968
    %v3092 = vmax.f32 %v3091, %v1976
    %v3093 = vmax.f32 %v3092, %v1984
    %v3094 = vmax.f32 %v3093, %v1992
    %v3095 = vmax.f32 %v3094, %v2000
    %v3096 = vmax.f32 %v3095, %v2008
    %v3097 = vmax.f32 %v3096, %v2016
    %v3098 = vmax.f32 %v3097, %v2024
    %v3099 = vmax.f32 %v3098, %v2032
    %v3100 = vmax.f32 %v3099, %v2040
    %v3101 = vmax.f32 %v3100, %v2048
    %v3102 = vmax.f32 %v3101, %v2056
    %v3103 = vmax.f32 %v3102, %v2064
    %v3104 = vmax.f32 %v3103, %v2072
    %v3105 = vmax.f32 %v3104, %v2080
    %v3106 = vmax.f32 %v3105, %v2088
    %v3107 = vmax.f32 %v3106, %v2096
    %v3108 = vmax.f32 %v3107, %v2104
    %v3109 = vmax.f32 %v1857, %v1865
    %v3110 = vmax.f32 %v3109, %v1873
    %v3111 = vmax.f32 %v3110, %v1881
    %v3112 = vmax.f32 %v3111, %v1889
    %v3113 = vmax.f32 %v3112, %v1897
    %v3114 = vmax.f32 %v3113, %v1905
    %v3115 = vmax.f32 %v3114, %v1913
    %v3116 = vmax.f32 %v3115, %v1921
    %v3117 = vmax.f32 %v3116, %v1929
    %v3118 = vmax.f32 %v3117, %v1937
    %v3119 = vmax.f32 %v3118, %v1945
    %v3120 = vmax.f32 %v3119, %v1953
    %v3121 = vmax.f32 %v3120, %v1961
    %v3122 = vmax.f32 %v3121, %v1969
    %v3123 = vmax.f32 %v3122, %v1977
    %v3124 = vmax.f32 %v3123, %v1985
    %v3125 = vmax.f32 %v3124, %v1993
    %v3126 = vmax.f32 %v3125, %v2001
    %v3127 = vmax.f32 %v3126, %v2009
    %v3128 = vmax.f32 %v3127, %v2017
    %v3129 = vmax.f32 %v3128, %v2025
    %v3130 = vmax.f32 %v3129, %v2033
    %v3131 = vmax.f32 %v3130, %v2041
    %v3132 = vmax.f32 %v3131, %v2049
    %v3133 = vmax.f32 %v3132, %v2057
    %v3134 = vmax.f32 %v3133, %v2065
    %v3135 = vmax.f32 %v3134, %v2073
    %v3136 = vmax.f32 %v3135, %v2081
    %v3137 = vmax.f32 %v3136, %v2089
    %v3138 = vmax.f32 %v3137, %v2097
    %v3139 = vmax.f32 %v3138, %v2105
    %v3140 = vmax.f32 %v1858, %v1866
    %v3141 = vmax.f32 %v3140, %v1874
    %v3142 = vmax.f32 %v3141, %v1882
    %v3143 = vmax.f32 %v3142, %v1890
    %v3144 = vmax.f32 %v3143, %v1898
    %v3145 = vmax.f32 %v3144, %v1906
    %v3146 = vmax.f32 %v3145, %v1914
    %v3147 = vmax.f32 %v3146, %v1922
    %v3148 = vmax.f32 %v3147, %v1930
    %v3149 = vmax.f32 %v3148, %v1938
    %v3150 = vmax.f32 %v3149, %v1946
    %v3151 = vmax.f32 %v3150, %v1954
    %v3152 = vmax.f32 %v3151, %v1962
    %v3153 = vmax.f32 %v3152, %v1970
    %v3154 = vmax.f32 %v3153, %v1978
    %v3155 = vmax.f32 %v3154, %v1986
    %v3156 = vmax.f32 %v3155, %v1994
    %v3157 = vmax.f32 %v3156, %v2002
    %v3158 = vmax.f32 %v3157, %v2010
    %v3159 = vmax.f32 %v3158, %v2018
    %v3160 = vmax.f32 %v3159, %v2026
    %v3161 = vmax.f32 %v3160, %v2034
    %v3162 = vmax.f32 %v3161, %v2042
    %v3163 = vmax.f32 %v3162, %v2050
    %v3164 = vmax.f32 %v3163, %v2058
    %v3165 = vmax.f32 %v3164, %v2066
    %v3166 = vmax.f32 %v3165, %v2074
    %v3167 = vmax.f32 %v3166, %v2082
    %v3168 = vmax.f32 %v3167, %v2090
    %v3169 = vmax.f32 %v3168, %v2098
    %v3170 = vmax.f32 %v3169, %v2106
    %v3171 = vmax.f32 %v2107, %v2115
    %v3172 = vmax.f32 %v3171, %v2123
    %v3173 = vmax.f32 %v3172, %v2131
    %v3174 = vmax.f32 %v3173, %v2139
    %v3175 = vmax.f32 %v3174, %v2147
    %v3176 = vmax.f32 %v3175, %v2155
    %v3177 = vmax.f32 %v3176, %v2163
    %v3178 = vmax.f32 %v3177, %v2171
    %v3179 = vmax.f32 %v3178, %v2179
    %v3180 = vmax.f32 %v3179, %v2187
    %v3181 = vmax.f32 %v3180, %v2195
    %v3182 = vmax.f32 %v3181, %v2203
    %v3183 = vmax.f32 %v3182, %v2211
    %v3184 = vmax.f32 %v3183, %v2219
    %v3185 = vmax.f32 %v3184, %v2227
    %v3186 = vmax.f32 %v3185, %v2235
    %v3187 = vmax.f32 %v3186, %v2243
    %v3188 = vmax.f32 %v3187, %v2251
    %v3189 = vmax.f32 %v3188, %v2259
    %v3190 = vmax.f32 %v3189, %v2267
    %v3191 = vmax.f32 %v3190, %v2275
    %v3192 = vmax.f32 %v3191, %v2283
    %v3193 = vmax.f32 %v3192, %v2291
    %v3194 = vmax.f32 %v3193, %v2299
    %v3195 = vmax.f32 %v3194, %v2307
    %v3196 = vmax.f32 %v3195, %v2315
    %v3197 = vmax.f32 %v3196, %v2323
    %v3198 = vmax.f32 %v3197, %v2331
    %v3199 = vmax.f32 %v3198, %v2339
    %v3200 = vmax.f32 %v3199, %v2347
    %v3201 = vmax.f32 %v3200, %v2355
    %v3202 = vmax.f32 %v2108, %v2116
    %v3203 = vmax.f32 %v3202, %v2124
    %v3204 = vmax.f32 %v3203, %v2132
    %v3205 = vmax.f32 %v3204, %v2140
    %v3206 = vmax.f32 %v3205, %v2148
    %v3207 = vmax.f32 %v3206, %v2156
    %v3208 = vmax.f32 %v3207, %v2164
    %v3209 = vmax.f32 %v3208, %v2172
    %v3210 = vmax.f32 %v3209, %v2180
    %v3211 = vmax.f32 %v3210, %v2188
    %v3212 = vmax.f32 %v3211, %v2196
    %v3213 = vmax.f32 %v3212, %v2204
    %v3214 = vmax.f32 %v3213, %v2212
    %v3215 = vmax.f32 %v3214, %v2220
    %v3216 = vmax.f32 %v3215, %v2228
    %v3217 = vmax.f32 %v3216, %v2236
    %v3218 = vmax.f32 %v3217, %v2244
    %v3219 = vmax.f32 %v3218, %v2252
    %v3220 = vmax.f32 %v3219, %v2260
    %v3221 = vmax.f32 %v3220, %v2268
    %v3222 = vmax.f32 %v3221, %v2276
    %v3223 = vmax.f32 %v3222, %v2284
    %v3224 = vmax.f32 %v3223, %v2292
    %v3225 = vmax.f32 %v3224, %v2300
    %v3226 = vmax.f32 %v3225, %v2308
    %v3227 = vmax.f32 %v3226, %v2316
    %v3228 = vmax.f32 %v3227, %v2324
    %v3229 = vmax.f32 %v3228, %v2332
    %v3230 = vmax.f32 %v3229, %v2340
    %v3231 = vmax.f32 %v3230, %v2348
    %v3232 = vmax.f32 %v3231, %v2356
    %v3233 = vmax.f32 %v2109, %v2117
    %v3234 = vmax.f32 %v3233, %v2125
    %v3235 = vmax.f32 %v3234, %v2133
    %v3236 = vmax.f32 %v3235, %v2141
    %v3237 = vmax.f32 %v3236, %v2149
    %v3238 = vmax.f32 %v3237, %v2157
    %v3239 = vmax.f32 %v3238, %v2165
    %v3240 = vmax.f32 %v3239, %v2173
    %v3241 = vmax.f32 %v3240, %v2181
    %v3242 = vmax.f32 %v3241, %v2189
    %v3243 = vmax.f32 %v3242, %v2197
    %v3244 = vmax.f32 %v3243, %v2205
    %v3245 = vmax.f32 %v3244, %v2213
    %v3246 = vmax.f32 %v3245, %v2221
    %v3247 = vmax.f32 %v3246, %v2229
    %v3248 = vmax.f32 %v3247, %v2237
    %v3249 = vmax.f32 %v3248, %v2245
    %v3250 = vmax.f32 %v3249, %v2253
    %v3251 = vmax.f32 %v3250, %v2261
    %v3252 = vmax.f32 %v3251, %v2269
    %v3253 = vmax.f32 %v3252, %v2277
    %v3254 = vmax.f32 %v3253, %v2285
    %v3255 = vmax.f32 %v3254, %v2293
    %v3256 = vmax.f32 %v3255, %v2301
    %v3257 = vmax.f32 %v3256, %v2309
    %v3258 = vmax.f32 %v3257, %v2317
    %v3259 = vmax.f32 %v3258, %v2325
    %v3260 = vmax.f32 %v3259, %v2333
    %v3261 = vmax.f32 %v3260, %v2341
    %v3262 = vmax.f32 %v3261, %v2349
    %v3263 = vmax.f32 %v3262, %v2357
    %v3264 = vmax.f32 %v2110, %v2118
    %v3265 = vmax.f32 %v3264, %v2126
    %v3266 = vmax.f32 %v3265, %v2134
    %v3267 = vmax.f32 %v3266, %v2142
    %v3268 = vmax.f32 %v3267, %v2150
    %v3269 = vmax.f32 %v3268, %v2158
    %v3270 = vmax.f32 %v3269, %v2166
    %v3271 = vmax.f32 %v3270, %v2174
    %v3272 = vmax.f32 %v3271, %v2182
    %v3273 = vmax.f32 %v3272, %v2190
    %v3274 = vmax.f32 %v3273, %v2198
    %v3275 = vmax.f32 %v3274, %v2206
    %v3276 = vmax.f32 %v3275, %v2214
    %v3277 = vmax.f32 %v3276, %v2222
    %v3278 = vmax.f32 %v3277, %v2230
    %v3279 = vmax.f32 %v3278, %v2238
    %v3280 = vmax.f32 %v3279, %v2246
    %v3281 = vmax.f32 %v3280, %v2254
    %v3282 = vmax.f32 %v3281, %v2262
    %v3283 = vmax.f32 %v3282, %v2270
    %v3284 = vmax.f32 %v3283, %v2278
    %v3285 = vmax.f32 %v3284, %v2286
    %v3286 = vmax.f32 %v3285, %v2294
    %v3287 = vmax.f32 %v3286, %v2302
    %v3288 = vmax.f32 %v3287, %v2310
    %v3289 = vmax.f32 %v3288, %v2318
    %v3290 = vmax.f32 %v3289, %v2326
    %v3291 = vmax.f32 %v3290, %v2334
    %v3292 = vmax.f32 %v3291, %v2342
    %v3293 = vmax.f32 %v3292, %v2350
    %v3294 = vmax.f32 %v3293, %v2358
    %v3295 = vmax.f32 %v2111, %v2119
    %v3296 = vmax.f32 %v3295, %v2127
    %v3297 = vmax.f32 %v3296, %v2135
    %v3298 = vmax.f32 %v3297, %v2143
    %v3299 = vmax.f32 %v3298, %v2151
    %v3300 = vmax.f32 %v3299, %v2159
    %v3301 = vmax.f32 %v3300, %v2167
    %v3302 = vmax.f32 %v3301, %v2175
    %v3303 = vmax.f32 %v3302, %v2183
    %v3304 = vmax.f32 %v3303, %v2191
    %v3305 = vmax.f32 %v3304, %v2199
    %v3306 = vmax.f32 %v3305, %v2207
    %v3307 = vmax.f32 %v3306, %v2215
    %v3308 = vmax.f32 %v3307, %v2223
    %v3309 = vmax.f32 %v3308, %v2231
    %v3310 = vmax.f32 %v3309, %v2239
    %v3311 = vmax.f32 %v3310, %v2247
    %v3312 = vmax.f32 %v3311, %v2255
    %v3313 = vmax.f32 %v3312, %v2263
    %v3314 = vmax.f32 %v3313, %v2271
    %v3315 = vmax.f32 %v3314, %v2279
    %v3316 = vmax.f32 %v3315, %v2287
    %v3317 = vmax.f32 %v3316, %v2295
    %v3318 = vmax.f32 %v3317, %v2303
    %v3319 = vmax.f32 %v3318, %v2311
    %v3320 = vmax.f32 %v3319, %v2319
    %v3321 = vmax.f32 %v3320, %v2327
    %v3322 = vmax.f32 %v3321, %v2335
    %v3323 = vmax.f32 %v3322, %v2343
    %v3324 = vmax.f32 %v3323, %v2351
    %v3325 = vmax.f32 %v3324, %v2359
    %v3326 = vmax.f32 %v2112, %v2120
    %v3327 = vmax.f32 %v3326, %v2128
    %v3328 = vmax.f32 %v3327, %v2136
    %v3329 = vmax.f32 %v3328, %v2144
    %v3330 = vmax.f32 %v3329, %v2152
    %v3331 = vmax.f32 %v3330, %v2160
    %v3332 = vmax.f32 %v3331, %v2168
    %v3333 = vmax.f32 %v3332, %v2176
    %v3334 = vmax.f32 %v3333, %v2184
    %v3335 = vmax.f32 %v3334, %v2192
    %v3336 = vmax.f32 %v3335, %v2200
    %v3337 = vmax.f32 %v3336, %v2208
    %v3338 = vmax.f32 %v3337, %v2216
    %v3339 = vmax.f32 %v3338, %v2224
    %v3340 = vmax.f32 %v3339, %v2232
    %v3341 = vmax.f32 %v3340, %v2240
    %v3342 = vmax.f32 %v3341, %v2248
    %v3343 = vmax.f32 %v3342, %v2256
    %v3344 = vmax.f32 %v3343, %v2264
    %v3345 = vmax.f32 %v3344, %v2272
    %v3346 = vmax.f32 %v3345, %v2280
    %v3347 = vmax.f32 %v3346, %v2288
    %v3348 = vmax.f32 %v3347, %v2296
    %v3349 = vmax.f32 %v3348, %v2304
    %v3350 = vmax.f32 %v3349, %v2312
    %v3351 = vmax.f32 %v3350, %v2320
    %v3352 = vmax.f32 %v3351, %v2328
    %v3353 = vmax.f32 %v3352, %v2336
    %v3354 = vmax.f32 %v3353, %v2344
    %v3355 = vmax.f32 %v3354, %v2352
    %v3356 = vmax.f32 %v3355, %v2360
    %v3357 = vmax.f32 %v2113, %v2121
    %v3358 = vmax.f32 %v3357, %v2129
    %v3359 = vmax.f32 %v3358, %v2137
    %v3360 = vmax.f32 %v3359, %v2145
    %v3361 = vmax.f32 %v3360, %v2153
    %v3362 = vmax.f32 %v3361, %v2161
    %v3363 = vmax.f32 %v3362, %v2169
    %v3364 = vmax.f32 %v3363, %v2177
    %v3365 = vmax.f32 %v3364, %v2185
    %v3366 = vmax.f32 %v3365, %v2193
    %v3367 = vmax.f32 %v3366, %v2201
    %v3368 = vmax.f32 %v3367, %v2209
    %v3369 = vmax.f32 %v3368, %v2217
    %v3370 = vmax.f32 %v3369, %v2225
    %v3371 = vmax.f32 %v3370, %v2233
    %v3372 = vmax.f32 %v3371, %v2241
    %v3373 = vmax.f32 %v3372, %v2249
    %v3374 = vmax.f32 %v3373, %v2257
    %v3375 = vmax.f32 %v3374, %v2265
    %v3376 = vmax.f32 %v3375, %v2273
    %v3377 = vmax.f32 %v3376, %v2281
    %v3378 = vmax.f32 %v3377, %v2289
    %v3379 = vmax.f32 %v3378, %v2297
    %v3380 = vmax.f32 %v3379, %v2305
    %v3381 = vmax.f32 %v3380, %v2313
    %v3382 = vmax.f32 %v3381, %v2321
    %v3383 = vmax.f32 %v3382, %v2329
    %v3384 = vmax.f32 %v3383, %v2337
    %v3385 = vmax.f32 %v3384, %v2345
    %v3386 = vmax.f32 %v3385, %v2353
    %v3387 = vmax.f32 %v3386, %v2361
    %v3388 = vmax.f32 %v2114, %v2122
    %v3389 = vmax.f32 %v3388, %v2130
    %v3390 = vmax.f32 %v3389, %v2138
    %v3391 = vmax.f32 %v3390, %v2146
    %v3392 = vmax.f32 %v3391, %v2154
    %v3393 = vmax.f32 %v3392, %v2162
    %v3394 = vmax.f32 %v3393, %v2170
    %v3395 = vmax.f32 %v3394, %v2178
    %v3396 = vmax.f32 %v3395, %v2186
    %v3397 = vmax.f32 %v3396, %v2194
    %v3398 = vmax.f32 %v3397, %v2202
    %v3399 = vmax.f32 %v3398, %v2210
    %v3400 = vmax.f32 %v3399, %v2218
    %v3401 = vmax.f32 %v3400, %v2226
    %v3402 = vmax.f32 %v3401, %v2234
    %v3403 = vmax.f32 %v3402, %v2242
    %v3404 = vmax.f32 %v3403, %v2250
    %v3405 = vmax.f32 %v3404, %v2258
    %v3406 = vmax.f32 %v3405, %v2266
    %v3407 = vmax.f32 %v3406, %v2274
    %v3408 = vmax.f32 %v3407, %v2282
    %v3409 = vmax.f32 %v3408, %v2290
    %v3410 = vmax.f32 %v3409, %v2298
    %v3411 = vmax.f32 %v3410, %v2306
    %v3412 = vmax.f32 %v3411, %v2314
    %v3413 = vmax.f32 %v3412, %v2322
    %v3414 = vmax.f32 %v3413, %v2330
    %v3415 = vmax.f32 %v3414, %v2338
    %v3416 = vmax.f32 %v3415, %v2346
    %v3417 = vmax.f32 %v3416, %v2354
    %v3418 = vmax.f32 %v3417, %v2362
    %v3419 = vmax.f32 %v2907, %v2953
    %v3420 = vmax.f32 %v2908, %v2984
    %v3421 = vmax.f32 %v2909, %v3015
    %v3422 = vmax.f32 %v2910, %v3046
    %v3423 = vmax.f32 %v2911, %v3077
    %v3424 = vmax.f32 %v2912, %v3108
    %v3425 = vmax.f32 %v2913, %v3139
    %v3426 = vmax.f32 %v2914, %v3170
    %v3427 = vmax.f32 %v2915, %v3201
    %v3428 = vmax.f32 %v2916, %v3232
    %v3429 = vmax.f32 %v2917, %v3263
    %v3430 = vmax.f32 %v2918, %v3294
    %v3431 = vmax.f32 %v2919, %v3325
    %v3432 = vmax.f32 %v2920, %v3356
    %v3433 = vmax.f32 %v2921, %v3387
    %v3434 = vmax.f32 %v2922, %v3418
    %3435 = vst [vmem:[#allocation3] sm:$0xff] %v3419
    %3436 = vst [vmem:[#allocation3 + $0x8] sm:$0xff] %v3420
    %3437 = vst [vmem:[#allocation3 + $0x10] sm:$0xff] %v3421
    %3438 = vst [vmem:[#allocation3 + $0x18] sm:$0xff] %v3422
    %3439 = vst [vmem:[#allocation3 + $0x20] sm:$0xff] %v3423
    %3440 = vst [vmem:[#allocation3 + $0x28] sm:$0xff] %v3424
    %3441 = vst [vmem:[#allocation3 + $0x30] sm:$0xff] %v3425
    %3442 = vst [vmem:[#allocation3 + $0x38] sm:$0xff] %v3426
    %3443 = vst [vmem:[#allocation3 + $0x40] sm:$0xff] %v3427
    %3444 = vst [vmem:[#allocation3 + $0x48] sm:$0xff] %v3428
    %3445 = vst [vmem:[#allocation3 + $0x50] sm:$0xff] %v3429
    %3446 = vst [vmem:[#allocation3 + $0x58] sm:$0xff] %v3430
    %3447 = vst [vmem:[#allocation3 + $0x60] sm:$0xff] %v3431
    %3448 = vst [vmem:[#allocation3 + $0x68] sm:$0xff] %v3432
    %3449 = vst [vmem:[#allocation3 + $0x70] sm:$0xff] %v3433
    %3450 = vst [vmem:[#allocation3 + $0x78] sm:$0xff] %v3434
    // Predicated region
    $region22: #{densenet121_reid_forward.1} parent=1 // pred_check
      %p3451 = pneg %p19
    $region23: #{densenet121_reid_forward.1} parent=1 // pred_check_branch
      %3453 = sbr.rel (%p3451) target = $region25
    $region24: #{densenet121_reid_forward.1} parent=1 // pred_region
      %v3454 = vld [vmem:[#allocation2] sm:$0xff]
      %v3455 = vld [vmem:[#allocation2 + $0x8] sm:$0xff]
      %v3456 = vld [vmem:[#allocation2 + $0x10] sm:$0xff]
      %v3457 = vld [vmem:[#allocation2 + $0x18] sm:$0xff]
      %v3458 = vld [vmem:[#allocation2 + $0x20] sm:$0xff]
      %v3459 = vld [vmem:[#allocation2 + $0x28] sm:$0xff]
      %v3460 = vld [vmem:[#allocation2 + $0x30] sm:$0xff]
      %v3461 = vld [vmem:[#allocation2 + $0x38] sm:$0xff]
      %v3462 = vld [vmem:[#allocation2 + $0x40] sm:$0xff]
      %v3463 = vld [vmem:[#allocation2 + $0x48] sm:$0xff]
      %v3464 = vld [vmem:[#allocation2 + $0x50] sm:$0xff]
      %v3465 = vld [vmem:[#allocation2 + $0x58] sm:$0xff]
      %v3466 = vld [vmem:[#allocation2 + $0x60] sm:$0xff]
      %v3467 = vld [vmem:[#allocation2 + $0x68] sm:$0xff]
      %v3468 = vld [vmem:[#allocation2 + $0x70] sm:$0xff]
      %v3469 = vld [vmem:[#allocation2 + $0x78] sm:$0xff]
      %v3470 = vrot.slane %v3454, 4
      %v3471 = vadd.f32 %v3454, %v3470
      %v3472 = vrot.slane %v3471, 2
      %v3473 = vadd.f32 %v3471, %v3472
      %v3474 = vrot.slane %v3473, 1
      %v3475 = vadd.f32 %v3473, %v3474
      %v3476 = vrot.slane %v3455, 4
      %v3477 = vadd.f32 %v3455, %v3476
      %v3478 = vrot.slane %v3477, 2
      %v3479 = vadd.f32 %v3477, %v3478
      %v3480 = vrot.slane %v3479, 1
      %v3481 = vadd.f32 %v3479, %v3480
      %v3482 = vrot.slane %v3456, 4
      %v3483 = vadd.f32 %v3456, %v3482
      %v3484 = vrot.slane %v3483, 2
      %v3485 = vadd.f32 %v3483, %v3484
      %v3486 = vrot.slane %v3485, 1
      %v3487 = vadd.f32 %v3485, %v3486
      %v3488 = vrot.slane %v3457, 4
      %v3489 = vadd.f32 %v3457, %v3488
      %v3490 = vrot.slane %v3489, 2
      %v3491 = vadd.f32 %v3489, %v3490
      %v3492 = vrot.slane %v3491, 1
      %v3493 = vadd.f32 %v3491, %v3492
      %v3494 = vrot.slane %v3458, 4
      %v3495 = vadd.f32 %v3458, %v3494
      %v3496 = vrot.slane %v3495, 2
      %v3497 = vadd.f32 %v3495, %v3496
      %v3498 = vrot.slane %v3497, 1
      %v3499 = vadd.f32 %v3497, %v3498
      %v3500 = vrot.slane %v3459, 4
      %v3501 = vadd.f32 %v3459, %v3500
      %v3502 = vrot.slane %v3501, 2
      %v3503 = vadd.f32 %v3501, %v3502
      %v3504 = vrot.slane %v3503, 1
      %v3505 = vadd.f32 %v3503, %v3504
      %v3506 = vrot.slane %v3460, 4
      %v3507 = vadd.f32 %v3460, %v3506
      %v3508 = vrot.slane %v3507, 2
      %v3509 = vadd.f32 %v3507, %v3508
      %v3510 = vrot.slane %v3509, 1
      %v3511 = vadd.f32 %v3509, %v3510
      %v3512 = vrot.slane %v3461, 4
      %v3513 = vadd.f32 %v3461, %v3512
      %v3514 = vrot.slane %v3513, 2
      %v3515 = vadd.f32 %v3513, %v3514
      %v3516 = vrot.slane %v3515, 1
      %v3517 = vadd.f32 %v3515, %v3516
      %v3518 = vrot.slane %v3462, 4
      %v3519 = vadd.f32 %v3462, %v3518
      %v3520 = vrot.slane %v3519, 2
      %v3521 = vadd.f32 %v3519, %v3520
      %v3522 = vrot.slane %v3521, 1
      %v3523 = vadd.f32 %v3521, %v3522
      %v3524 = vrot.slane %v3463, 4
      %v3525 = vadd.f32 %v3463, %v3524
      %v3526 = vrot.slane %v3525, 2
      %v3527 = vadd.f32 %v3525, %v3526
      %v3528 = vrot.slane %v3527, 1
      %v3529 = vadd.f32 %v3527, %v3528
      %v3530 = vrot.slane %v3464, 4
      %v3531 = vadd.f32 %v3464, %v3530
      %v3532 = vrot.slane %v3531, 2
      %v3533 = vadd.f32 %v3531, %v3532
      %v3534 = vrot.slane %v3533, 1
      %v3535 = vadd.f32 %v3533, %v3534
      %v3536 = vrot.slane %v3465, 4
      %v3537 = vadd.f32 %v3465, %v3536
      %v3538 = vrot.slane %v3537, 2
      %v3539 = vadd.f32 %v3537, %v3538
      %v3540 = vrot.slane %v3539, 1
      %v3541 = vadd.f32 %v3539, %v3540
      %v3542 = vrot.slane %v3466, 4
      %v3543 = vadd.f32 %v3466, %v3542
      %v3544 = vrot.slane %v3543, 2
      %v3545 = vadd.f32 %v3543, %v3544
      %v3546 = vrot.slane %v3545, 1
      %v3547 = vadd.f32 %v3545, %v3546
      %v3548 = vrot.slane %v3467, 4
      %v3549 = vadd.f32 %v3467, %v3548
      %v3550 = vrot.slane %v3549, 2
      %v3551 = vadd.f32 %v3549, %v3550
      %v3552 = vrot.slane %v3551, 1
      %v3553 = vadd.f32 %v3551, %v3552
      %v3554 = vrot.slane %v3468, 4
      %v3555 = vadd.f32 %v3468, %v3554
      %v3556 = vrot.slane %v3555, 2
      %v3557 = vadd.f32 %v3555, %v3556
      %v3558 = vrot.slane %v3557, 1
      %v3559 = vadd.f32 %v3557, %v3558
      %v3560 = vrot.slane %v3469, 4
      %v3561 = vadd.f32 %v3469, %v3560
      %v3562 = vrot.slane %v3561, 2
      %v3563 = vadd.f32 %v3561, %v3562
      %v3564 = vrot.slane %v3563, 1
      %v3565 = vadd.f32 %v3563, %v3564
      %v3566 = vmul.f32 %v3475, 0.00390625
      %v3567 = vmul.f32 %v3481, 0.00390625
      %v3568 = vmul.f32 %v3487, 0.00390625
      %v3569 = vmul.f32 %v3493, 0.00390625
      %v3570 = vmul.f32 %v3499, 0.00390625
      %v3571 = vmul.f32 %v3505, 0.00390625
      %v3572 = vmul.f32 %v3511, 0.00390625
      %v3573 = vmul.f32 %v3517, 0.00390625
      %v3574 = vmul.f32 %v3523, 0.00390625
      %v3575 = vmul.f32 %v3529, 0.00390625
      %v3576 = vmul.f32 %v3535, 0.00390625
      %v3577 = vmul.f32 %v3541, 0.00390625
      %v3578 = vmul.f32 %v3547, 0.00390625
      %v3579 = vmul.f32 %v3553, 0.00390625
      %v3580 = vmul.f32 %v3559, 0.00390625
      %v3581 = vmul.f32 %v3565, 0.00390625
      %v3582 = vld [vmem:[#allocation3] sm:$0xff]
      %v3583 = vld [vmem:[#allocation3 + $0x8] sm:$0xff]
      %v3584 = vld [vmem:[#allocation3 + $0x10] sm:$0xff]
      %v3585 = vld [vmem:[#allocation3 + $0x18] sm:$0xff]
      %v3586 = vld [vmem:[#allocation3 + $0x20] sm:$0xff]
      %v3587 = vld [vmem:[#allocation3 + $0x28] sm:$0xff]
      %v3588 = vld [vmem:[#allocation3 + $0x30] sm:$0xff]
      %v3589 = vld [vmem:[#allocation3 + $0x38] sm:$0xff]
      %v3590 = vld [vmem:[#allocation3 + $0x40] sm:$0xff]
      %v3591 = vld [vmem:[#allocation3 + $0x48] sm:$0xff]
      %v3592 = vld [vmem:[#allocation3 + $0x50] sm:$0xff]
      %v3593 = vld [vmem:[#allocation3 + $0x58] sm:$0xff]
      %v3594 = vld [vmem:[#allocation3 + $0x60] sm:$0xff]
      %v3595 = vld [vmem:[#allocation3 + $0x68] sm:$0xff]
      %v3596 = vld [vmem:[#allocation3 + $0x70] sm:$0xff]
      %v3597 = vld [vmem:[#allocation3 + $0x78] sm:$0xff]
      %v3598 = vrot.slane %v3582, 4
      %v3599 = vmax.f32 %v3582, %v3598
      %v3600 = vrot.slane %v3599, 2
      %v3601 = vmax.f32 %v3599, %v3600
      %v3602 = vrot.slane %v3601, 1
      %v3603 = vmax.f32 %v3601, %v3602
      %v3604 = vrot.slane %v3583, 4
      %v3605 = vmax.f32 %v3583, %v3604
      %v3606 = vrot.slane %v3605, 2
      %v3607 = vmax.f32 %v3605, %v3606
      %v3608 = vrot.slane %v3607, 1
      %v3609 = vmax.f32 %v3607, %v3608
      %v3610 = vrot.slane %v3584, 4
      %v3611 = vmax.f32 %v3584, %v3610
      %v3612 = vrot.slane %v3611, 2
      %v3613 = vmax.f32 %v3611, %v3612
      %v3614 = vrot.slane %v3613, 1
      %v3615 = vmax.f32 %v3613, %v3614
      %v3616 = vrot.slane %v3585, 4
      %v3617 = vmax.f32 %v3585, %v3616
      %v3618 = vrot.slane %v3617, 2
      %v3619 = vmax.f32 %v3617, %v3618
      %v3620 = vrot.slane %v3619, 1
      %v3621 = vmax.f32 %v3619, %v3620
      %v3622 = vrot.slane %v3586, 4
      %v3623 = vmax.f32 %v3586, %v3622
      %v3624 = vrot.slane %v3623, 2
      %v3625 = vmax.f32 %v3623, %v3624
      %v3626 = vrot.slane %v3625, 1
      %v3627 = vmax.f32 %v3625, %v3626
      %v3628 = vrot.slane %v3587, 4
      %v3629 = vmax.f32 %v3587, %v3628
      %v3630 = vrot.slane %v3629, 2
      %v3631 = vmax.f32 %v3629, %v3630
      %v3632 = vrot.slane %v3631, 1
      %v3633 = vmax.f32 %v3631, %v3632
      %v3634 = vrot.slane %v3588, 4
      %v3635 = vmax.f32 %v3588, %v3634
      %v3636 = vrot.slane %v3635, 2
      %v3637 = vmax.f32 %v3635, %v3636
      %v3638 = vrot.slane %v3637, 1
      %v3639 = vmax.f32 %v3637, %v3638
      %v3640 = vrot.slane %v3589, 4
      %v3641 = vmax.f32 %v3589, %v3640
      %v3642 = vrot.slane %v3641, 2
      %v3643 = vmax.f32 %v3641, %v3642
      %v3644 = vrot.slane %v3643, 1
      %v3645 = vmax.f32 %v3643, %v3644
      %v3646 = vrot.slane %v3590, 4
      %v3647 = vmax.f32 %v3590, %v3646
      %v3648 = vrot.slane %v3647, 2
      %v3649 = vmax.f32 %v3647, %v3648
      %v3650 = vrot.slane %v3649, 1
      %v3651 = vmax.f32 %v3649, %v3650
      %v3652 = vrot.slane %v3591, 4
      %v3653 = vmax.f32 %v3591, %v3652
      %v3654 = vrot.slane %v3653, 2
      %v3655 = vmax.f32 %v3653, %v3654
      %v3656 = vrot.slane %v3655, 1
      %v3657 = vmax.f32 %v3655, %v3656
      %v3658 = vrot.slane %v3592, 4
      %v3659 = vmax.f32 %v3592, %v3658
      %v3660 = vrot.slane %v3659, 2
      %v3661 = vmax.f32 %v3659, %v3660
      %v3662 = vrot.slane %v3661, 1
      %v3663 = vmax.f32 %v3661, %v3662
      %v3664 = vrot.slane %v3593, 4
      %v3665 = vmax.f32 %v3593, %v3664
      %v3666 = vrot.slane %v3665, 2
      %v3667 = vmax.f32 %v3665, %v3666
      %v3668 = vrot.slane %v3667, 1
      %v3669 = vmax.f32 %v3667, %v3668
      %v3670 = vrot.slane %v3594, 4
      %v3671 = vmax.f32 %v3594, %v3670
      %v3672 = vrot.slane %v3671, 2
      %v3673 = vmax.f32 %v3671, %v3672
      %v3674 = vrot.slane %v3673, 1
      %v3675 = vmax.f32 %v3673, %v3674
      %v3676 = vrot.slane %v3595, 4
      %v3677 = vmax.f32 %v3595, %v3676
      %v3678 = vrot.slane %v3677, 2
      %v3679 = vmax.f32 %v3677, %v3678
      %v3680 = vrot.slane %v3679, 1
      %v3681 = vmax.f32 %v3679, %v3680
      %v3682 = vrot.slane %v3596, 4
      %v3683 = vmax.f32 %v3596, %v3682
      %v3684 = vrot.slane %v3683, 2
      %v3685 = vmax.f32 %v3683, %v3684
      %v3686 = vrot.slane %v3685, 1
      %v3687 = vmax.f32 %v3685, %v3686
      %v3688 = vrot.slane %v3597, 4
      %v3689 = vmax.f32 %v3597, %v3688
      %v3690 = vrot.slane %v3689, 2
      %v3691 = vmax.f32 %v3689, %v3690
      %v3692 = vrot.slane %v3691, 1
      %v3693 = vmax.f32 %v3691, %v3692
      %v3694 = vadd.f32 %v3566, %v3603
      %v3695 = vadd.f32 %v3567, %v3609
      %v3696 = vadd.f32 %v3568, %v3615
      %v3697 = vadd.f32 %v3569, %v3621
      %v3698 = vadd.f32 %v3570, %v3627
      %v3699 = vadd.f32 %v3571, %v3633
      %v3700 = vadd.f32 %v3572, %v3639
      %v3701 = vadd.f32 %v3573, %v3645
      %v3702 = vadd.f32 %v3574, %v3651
      %v3703 = vadd.f32 %v3575, %v3657
      %v3704 = vadd.f32 %v3576, %v3663
      %v3705 = vadd.f32 %v3577, %v3669
      %v3706 = vadd.f32 %v3578, %v3675
      %v3707 = vadd.f32 %v3579, %v3681
      %v3708 = vadd.f32 %v3580, %v3687
      %v3709 = vadd.f32 %v3581, %v3693
      %vm3726 = vcmask 1041409
      %v3727 = vsel %vm3726, %v3702, %v3694
      %v3728 = vsel %vm3726, %v3703, %v3695
      %v3729 = vsel %vm3726, %v3704, %v3696
      %v3730 = vsel %vm3726, %v3705, %v3697
      %v3731 = vsel %vm3726, %v3706, %v3698
      %v3732 = vsel %vm3726, %v3707, %v3699
      %v3733 = vsel %vm3726, %v3708, %v3700
      %v3734 = vsel %vm3726, %v3709, %v3701
      %v3743 = vld [vmem:[%s2] sm:$0xff]
      %v3744 = vld [vmem:[%s2 + $0x8] sm:$0xff]
      %v3747 = vlaneseq
      %v3748 = vshrl.u32 %v3747, 7
      %v3749 = vsub.s32 0, %v3748
      %v3750 = vrot.slane %v3743, %v3749
      %v3751 = vlaneseq
      %v3752 = vshrl.u32 %v3751, 7
      %v3753 = vsub.s32 1, %v3752
      %v3754 = vrot.slane %v3743, %v3753
      %v3755 = vlaneseq
      %v3756 = vshrl.u32 %v3755, 7
      %v3757 = vsub.s32 2, %v3756
      %v3758 = vrot.slane %v3743, %v3757
      %v3759 = vlaneseq
      %v3760 = vshrl.u32 %v3759, 7
      %v3761 = vsub.s32 3, %v3760
      %v3762 = vrot.slane %v3743, %v3761
      %v3763 = vlaneseq
      %v3764 = vshrl.u32 %v3763, 7
      %v3765 = vsub.s32 4, %v3764
      %v3766 = vrot.slane %v3743, %v3765
      %v3767 = vlaneseq
      %v3768 = vshrl.u32 %v3767, 7
      %v3769 = vsub.s32 5, %v3768
      %v3770 = vrot.slane %v3743, %v3769
      %v3771 = vlaneseq
      %v3772 = vshrl.u32 %v3771, 7
      %v3773 = vsub.s32 6, %v3772
      %v3774 = vrot.slane %v3743, %v3773
      %v3775 = vlaneseq
      %v3776 = vshrl.u32 %v3775, 7
      %v3777 = vsub.s32 7, %v3776
      %v3778 = vrot.slane %v3743, %v3777
      %v3779 = vlaneseq
      %v3780 = vshrl.u32 %v3779, 7
      %v3781 = vsub.s32 0, %v3780
      %v3782 = vrot.slane %v3744, %v3781
      %v3783 = vlaneseq
      %v3784 = vshrl.u32 %v3783, 7
      %v3785 = vsub.s32 1, %v3784
      %v3786 = vrot.slane %v3744, %v3785
      %v3787 = vlaneseq
      %v3788 = vshrl.u32 %v3787, 7
      %v3789 = vsub.s32 2, %v3788
      %v3790 = vrot.slane %v3744, %v3789
      %v3791 = vlaneseq
      %v3792 = vshrl.u32 %v3791, 7
      %v3793 = vsub.s32 3, %v3792
      %v3794 = vrot.slane %v3744, %v3793
      %v3795 = vlaneseq
      %v3796 = vshrl.u32 %v3795, 7
      %v3797 = vsub.s32 4, %v3796
      %v3798 = vrot.slane %v3744, %v3797
      %v3799 = vlaneseq
      %v3800 = vshrl.u32 %v3799, 7
      %v3801 = vsub.s32 5, %v3800
      %v3802 = vrot.slane %v3744, %v3801
      %v3803 = vlaneseq
      %v3804 = vshrl.u32 %v3803, 7
      %v3805 = vsub.s32 6, %v3804
      %v3806 = vrot.slane %v3744, %v3805
      %v3807 = vlaneseq
      %v3808 = vshrl.u32 %v3807, 7
      %v3809 = vsub.s32 7, %v3808
      %v3810 = vrot.slane %v3744, %v3809
      %v3827 = vmul.f32 %v3727, %v3750
      %v3828 = vmul.f32 %v3728, %v3754
      %v3829 = vmul.f32 %v3729, %v3758
      %v3830 = vmul.f32 %v3730, %v3762
      %v3831 = vmul.f32 %v3731, %v3766
      %v3832 = vmul.f32 %v3732, %v3770
      %v3833 = vmul.f32 %v3733, %v3774
      %v3834 = vmul.f32 %v3734, %v3778
      %v3835 = vmul.f32 %v3727, %v3782
      %v3836 = vmul.f32 %v3728, %v3786
      %v3837 = vmul.f32 %v3729, %v3790
      %v3838 = vmul.f32 %v3730, %v3794
      %v3839 = vmul.f32 %v3731, %v3798
      %v3840 = vmul.f32 %v3732, %v3802
      %v3841 = vmul.f32 %v3733, %v3806
      %v3842 = vmul.f32 %v3734, %v3810
      %v3843 = vld [vmem:[%s3] sm:$0xff]
      %v3844 = vld [vmem:[%s3 + $0x8] sm:$0xff]
      %v3847 = vlaneseq
      %v3848 = vshrl.u32 %v3847, 7
      %v3849 = vsub.s32 0, %v3848
      %v3850 = vrot.slane %v3843, %v3849
      %v3851 = vlaneseq
      %v3852 = vshrl.u32 %v3851, 7
      %v3853 = vsub.s32 1, %v3852
      %v3854 = vrot.slane %v3843, %v3853
      %v3855 = vlaneseq
      %v3856 = vshrl.u32 %v3855, 7
      %v3857 = vsub.s32 2, %v3856
      %v3858 = vrot.slane %v3843, %v3857
      %v3859 = vlaneseq
      %v3860 = vshrl.u32 %v3859, 7
      %v3861 = vsub.s32 3, %v3860
      %v3862 = vrot.slane %v3843, %v3861
      %v3863 = vlaneseq
      %v3864 = vshrl.u32 %v3863, 7
      %v3865 = vsub.s32 4, %v3864
      %v3866 = vrot.slane %v3843, %v3865
      %v3867 = vlaneseq
      %v3868 = vshrl.u32 %v3867, 7
      %v3869 = vsub.s32 5, %v3868
      %v3870 = vrot.slane %v3843, %v3869
      %v3871 = vlaneseq
      %v3872 = vshrl.u32 %v3871, 7
      %v3873 = vsub.s32 6, %v3872
      %v3874 = vrot.slane %v3843, %v3873
      %v3875 = vlaneseq
      %v3876 = vshrl.u32 %v3875, 7
      %v3877 = vsub.s32 7, %v3876
      %v3878 = vrot.slane %v3843, %v3877
      %v3879 = vlaneseq
      %v3880 = vshrl.u32 %v3879, 7
      %v3881 = vsub.s32 0, %v3880
      %v3882 = vrot.slane %v3844, %v3881
      %v3883 = vlaneseq
      %v3884 = vshrl.u32 %v3883, 7
      %v3885 = vsub.s32 1, %v3884
      %v3886 = vrot.slane %v3844, %v3885
      %v3887 = vlaneseq
      %v3888 = vshrl.u32 %v3887, 7
      %v3889 = vsub.s32 2, %v3888
      %v3890 = vrot.slane %v3844, %v3889
      %v3891 = vlaneseq
      %v3892 = vshrl.u32 %v3891, 7
      %v3893 = vsub.s32 3, %v3892
      %v3894 = vrot.slane %v3844, %v3893
      %v3895 = vlaneseq
      %v3896 = vshrl.u32 %v3895, 7
      %v3897 = vsub.s32 4, %v3896
      %v3898 = vrot.slane %v3844, %v3897
      %v3899 = vlaneseq
      %v3900 = vshrl.u32 %v3899, 7
      %v3901 = vsub.s32 5, %v3900
      %v3902 = vrot.slane %v3844, %v3901
      %v3903 = vlaneseq
      %v3904 = vshrl.u32 %v3903, 7
      %v3905 = vsub.s32 6, %v3904
      %v3906 = vrot.slane %v3844, %v3905
      %v3907 = vlaneseq
      %v3908 = vshrl.u32 %v3907, 7
      %v3909 = vsub.s32 7, %v3908
      %v3910 = vrot.slane %v3844, %v3909
      %v3927 = vadd.f32 %v3827, %v3850
      %v3928 = vadd.f32 %v3828, %v3854
      %v3929 = vadd.f32 %v3829, %v3858
      %v3930 = vadd.f32 %v3830, %v3862
      %v3931 = vadd.f32 %v3831, %v3866
      %v3932 = vadd.f32 %v3832, %v3870
      %v3933 = vadd.f32 %v3833, %v3874
      %v3934 = vadd.f32 %v3834, %v3878
      %v3935 = vadd.f32 %v3835, %v3882
      %v3936 = vadd.f32 %v3836, %v3886
      %v3937 = vadd.f32 %v3837, %v3890
      %v3938 = vadd.f32 %v3838, %v3894
      %v3939 = vadd.f32 %v3839, %v3898
      %v3940 = vadd.f32 %v3840, %v3902
      %v3941 = vadd.f32 %v3841, %v3906
      %v3942 = vadd.f32 %v3842, %v3910
      %v3959 = vcombine.low %v3927, %v3928
      %v3960 = vcombine.low %v3929, %v3930
      %v3962 = vunpack.c.l.s4 1983009808
      %v3963 = vunpack.c.0.s8 %v3962
      %v3964 = vlaneseq
      %v3965 = vshrl.u32 %v3964, 7
      %v3966 = vsub.s32 %v3963, %v3965
      %v3967 = vrot.slane %v3959, %v3966
      %v3969 = vunpack.c.l.s4 1983009808
      %v3970 = vunpack.c.0.s8 %v3969
      %v3971 = vlaneseq
      %v3972 = vshrl.u32 %v3971, 7
      %v3973 = vsub.s32 %v3970, %v3972
      %v3974 = vrot.slane %v3960, %v3973
      %v3975 = vcombine.low %v3967, %v3974
      %v3976 = vcombine.low %v3931, %v3932
      %v3977 = vcombine.low %v3933, %v3934
      %v3979 = vunpack.c.l.s4 1983009808
      %v3980 = vunpack.c.0.s8 %v3979
      %v3981 = vlaneseq
      %v3982 = vshrl.u32 %v3981, 7
      %v3983 = vsub.s32 %v3980, %v3982
      %v3984 = vrot.slane %v3976, %v3983
      %v3986 = vunpack.c.l.s4 1983009808
      %v3987 = vunpack.c.0.s8 %v3986
      %v3988 = vlaneseq
      %v3989 = vshrl.u32 %v3988, 7
      %v3990 = vsub.s32 %v3987, %v3989
      %v3991 = vrot.slane %v3977, %v3990
      %v3992 = vcombine.low %v3984, %v3991
      %v3993 = vcombine.low %v3935, %v3936
      %v3994 = vcombine.low %v3937, %v3938
      %v3996 = vunpack.c.l.s4 1983009808
      %v3997 = vunpack.c.0.s8 %v3996
      %v3998 = vlaneseq
      %v3999 = vshrl.u32 %v3998, 7
      %v4000 = vsub.s32 %v3997, %v3999
      %v4001 = vrot.slane %v3993, %v4000
      %v4003 = vunpack.c.l.s4 1983009808
      %v4004 = vunpack.c.0.s8 %v4003
      %v4005 = vlaneseq
      %v4006 = vshrl.u32 %v4005, 7
      %v4007 = vsub.s32 %v4004, %v4006
      %v4008 = vrot.slane %v3994, %v4007
      %v4009 = vcombine.low %v4001, %v4008
      %v4010 = vcombine.low %v3939, %v3940
      %v4011 = vcombine.low %v3941, %v3942
      %v4013 = vunpack.c.l.s4 1983009808
      %v4014 = vunpack.c.0.s8 %v4013
      %v4015 = vlaneseq
      %v4016 = vshrl.u32 %v4015, 7
      %v4017 = vsub.s32 %v4014, %v4016
      %v4018 = vrot.slane %v4010, %v4017
      %v4020 = vunpack.c.l.s4 1983009808
      %v4021 = vunpack.c.0.s8 %v4020
      %v4022 = vlaneseq
      %v4023 = vshrl.u32 %v4022, 7
      %v4024 = vsub.s32 %v4021, %v4023
      %v4025 = vrot.slane %v4011, %v4024
      %v4026 = vcombine.low %v4018, %v4025
      %4031 = vst [vmem:[#allocation4] sm:$0xff] %v3975
      %4032 = vst [vmem:[#allocation4 + $0x8] sm:$0xff] %v3992
      %4033 = vst [vmem:[#allocation4 + $0x10] sm:$0xff] %v4009
      %4034 = vst [vmem:[#allocation4 + $0x18] sm:$0xff] %v4026
    $region25: #{densenet121_reid_forward.1} parent=1 // pred_fallthru
      _
    // Predicated region
    $region26: #{densenet121_reid_forward.1} parent=1 // pred_check
      _
    $region27: #{densenet121_reid_forward.1} parent=1 // pred_check_branch
      %4036 = sbr.rel (0) target = $region29
    $region28: #{densenet121_reid_forward.1} parent=1 // pred_region
      %s4038 = ssub.s32 512, 512
      %4039 = vsyncadd [#allocation5], %s4038
      %s4041 = sshll.u32 [#allocation4], 4
      %s4042 = int_to_ptr.vmem [resolvable:$true] %s4041
      %4044 = dma.vmem_to_hbm [thread:$0]  %s4042, 512, %s4, [#allocation5]
    $region29: #{densenet121_reid_forward.1} parent=1 // pred_fallthru
      _
    // Predicated region
    $region30: #{densenet121_reid_forward.1} parent=1 // pred_check
      _
    $region31: #{densenet121_reid_forward.1} parent=1 // pred_check_branch
      %4046 = sbr.rel (0) target = $region33
    $region32: #{densenet121_reid_forward.1} parent=1 // pred_region
      %4047 = dma.done [#allocation5], 512
    $region33: #{densenet121_reid_forward.1} parent=1 // pred_fallthru
      _
    %4048 = vsyncpa [#allocation5], 1

</llo_original>
